<compile_context>
chip_gen: v6e
topology: v6e:2x2x1
jax: 0.10.0
libtpu: 0.0.40
codegen_flags: <defaults>
</compile_context>

<pallas_src>
import functools

import jax
import jax.numpy as jnp
from jax.experimental import pallas as pl
from jax.experimental.pallas import tpu as pltpu

LEAKY_SLOPE = 0.2
BN_EPS = 1e-5
LANE = 128
TARGET_M_TILE = 512          # output pixels per grid step (M tiling target)

_SUPER_TAPS = ((0, 0), (0, 1), (1, 0), (1, 1))   # (di, dj); t = di*2 + dj


def _round_up(n, m):
    return ((n + m - 1) // m) * m


@functools.lru_cache(maxsize=None)
def _vmem_limit_bytes():
    # ~3/4 of physical VMEM, capped at 96 MiB (96 MiB on v5e/v6e with 128 MiB
    # physical, 48 MiB on v7x with 64 MiB physical).  Safe 48 MiB fallback.
    try:
        cap = getattr(pltpu.get_tpu_info(), "vmem_capacity_bytes", None)
        if cap:
            return int(min(96 * 1024 * 1024, (cap * 3) // 4))
    except Exception:
        pass
    return 48 * 1024 * 1024


# ---------------------------------------------------------------------------
# Kernel 1: 4x4 / stride-2 conv on a phase-folded input + fused epilogue
# ---------------------------------------------------------------------------
def _conv_kernel(x_ref, w_ref, b_ref, *refs, tr, wo, cf, cout, mode, fused_k,
                 multi_tile):
    """x_ref : (1, Hs, Ws, cf)  phase-folded padded input, cf = 4*Cin (bf16)
       w_ref : (16*Cin, Coutp)  [fused_k]  K-stacked weights (bf16)
               (4, cf, Coutp)   [!fused_k] per-super-tap weights (bf16)
       b_ref : (1, cout)        bias (f32)
       refs  : y_ref (1, m_tile, cout) [, stats_ref (1, 1, 2, cout)]
               [, patch scratch (m_tile, 16*Cin)]"""
    if fused_k:
        patch_ref = refs[-1]
        refs = refs[:-1]
    y_ref = refs[0]
    stats_ref = refs[1] if mode == "bn_pre" else None

    m = tr * wo
    if multi_tile:
        r0 = pl.program_id(1) * tr

    def piece(di, dj):
        if multi_tile:
            p = x_ref[0, pl.ds(r0 + di, tr), dj:dj + wo, :]
        else:
            p = x_ref[0, di:di + tr, dj:dj + wo, :]
        return p.reshape(m, cf)                              # (m, 4*Cin) bf16

    if fused_k:
        # In-kernel im2col: one (m, K = 16*Cin) patch in VMEM, one MXU matmul.
        for t, (di, dj) in enumerate(_SUPER_TAPS):
            patch_ref[:, t * cf:(t + 1) * cf] = piece(di, dj)
        acc = jnp.dot(patch_ref[...], w_ref[...],
                      preferred_element_type=jnp.float32)
    else:
        # Small-Cin fallback: 4 super-tap dots with the real K = 4*Cin each,
        # accumulated in registers (no 128-padded contraction, no RMW scratch).
        acc = jnp.zeros((m, w_ref.shape[-1]), jnp.float32)
        for t, (di, dj) in enumerate(_SUPER_TAPS):
            acc = acc + jnp.dot(piece(di, dj), w_ref[t],
                                preferred_element_type=jnp.float32)

    y = acc[:, :cout] + b_ref[...]          # f32 epilogue on the real channels

    if mode == "lrelu":
        y = jnp.where(y >= 0.0, y, LEAKY_SLOPE * y)
        y_ref[0] = y.astype(y_ref.dtype)
    else:  # "bn_pre": pre-BN activation + per-tile channel sum / sum-of-squares
        yb = y.astype(y_ref.dtype)
        y_ref[0] = yb
        y32 = yb.astype(jnp.float32)   # stats on the values BN pass-2 will see
        s1 = jnp.sum(y32, axis=0, keepdims=True)
        s2 = jnp.sum(y32 * y32, axis=0, keepdims=True)
        stats_ref[0, 0] = jnp.concatenate([s1, s2], axis=0)


def conv_layer(xfold, w, bias, *, ho, wo, mode):
    """xfold: (B, Hs, Ws, 4*Cin) bf16 phase-folded zero-padded input.
       w: (Cout, Cin, 4, 4) f32, bias: (Cout,) f32.
       Returns y (B, Ho*Wo, Cout) bf16 [, stats (B, n_mt, 2, Cout) f32]."""
    B, hs, ws, cf = xfold.shape
    cout, cin, kh, kw = w.shape
    assert (kh, kw) == (4, 4) and cf == 4 * cin
    K = kh * kw * cin
    coutp = _round_up(cout, LANE)

    # Weight re-order matching the patch layout:
    #   K index = (di*2+dj)*4*Cin + (pi*2+pj)*Cin + c  <->  w[o, c, di*2+pi, dj*2+pj]
    wt = jnp.transpose(w.astype(jnp.float32), (2, 3, 1, 0))       # (kh, kw, cin, cout)
    wt = wt.reshape(2, 2, 2, 2, cin, cout)                        # (di, pi, dj, pj, c, o)
    wt = jnp.transpose(wt, (0, 2, 1, 3, 4, 5)).reshape(K, cout)
    wt = jnp.pad(wt, ((0, 0), (0, coutp - cout))).astype(jnp.bfloat16)
    bt = bias.astype(jnp.float32).reshape(1, cout)

    # Single K-stacked matmul when the scratch lane offsets are 128-aligned,
    # otherwise 4 real-K super-tap dots (tiny-Cin layers are HBM-bound anyway).
    fused_k = (cf % LANE == 0)
    if not fused_k:
        wt = wt.reshape(4, cf, coutp)

    # M (= Ho*Wo) row tiling: at most TARGET_M_TILE output pixels per step.
    tr = max(1, min(ho, TARGET_M_TILE // max(wo, 1)))
    while ho % tr:
        tr -= 1
    if (tr * wo) % 8 and tr != ho:
        tr = ho
    n_mt = ho // tr
    m_tile = tr * wo
    m = ho * wo
    multi_tile = n_mt > 1

    out_shape = [jax.ShapeDtypeStruct((B, m, cout), jnp.bfloat16)]
    out_specs = [pl.BlockSpec((1, m_tile, cout), lambda b, t: (b, t, 0))]
    if mode == "bn_pre":
        out_shape.append(jax.ShapeDtypeStruct((B, n_mt, 2, cout), jnp.float32))
        out_specs.append(pl.BlockSpec((1, 1, 2, cout), lambda b, t: (b, t, 0, 0)))

    in_specs = [
        pl.BlockSpec((1, hs, ws, cf), lambda b, t: (b, 0, 0, 0)),
        pl.BlockSpec(wt.shape, lambda b, t: (0,) * wt.ndim),
        pl.BlockSpec((1, cout), lambda b, t: (0, 0)),
    ]
    scratch = [pltpu.VMEM((m_tile, K), jnp.bfloat16)] if fused_k else []

    cost = pl.CostEstimate(
        flops=2 * B * m * K * coutp,
        transcendentals=0,
        bytes_accessed=int(xfold.size * 2 + wt.size * 2 + B * m * cout * 2))

    kern = functools.partial(_conv_kernel, tr=tr, wo=wo, cf=cf, cout=cout,
                             mode=mode, fused_k=fused_k, multi_tile=multi_tile)
    return pl.pallas_call(
        kern,
        grid=(B, n_mt),
        in_specs=in_specs,
        out_specs=tuple(out_specs) if mode == "bn_pre" else out_specs[0],
        out_shape=tuple(out_shape) if mode == "bn_pre" else out_shape[0],
        scratch_shapes=scratch,
        compiler_params=pltpu.CompilerParams(
            dimension_semantics=("parallel", "parallel"),
            vmem_limit_bytes=_vmem_limit_bytes()),
        cost_estimate=cost,
    )(xfold, wt, bt)


# ---------------------------------------------------------------------------
# Kernel 2: BN3 affine + leaky_relu + 4x4 valid conv (Cout=1) + sigmoid
# ---------------------------------------------------------------------------
def _final_kernel(y_ref, sc_ref, sh_ref, w_ref, b_ref, o_ref):
    z = y_ref[0].astype(jnp.float32) * sc_ref[...] + sh_ref[...]
    z = jnp.where(z >= 0.0, z, LEAKY_SLOPE * z)
    v = jnp.sum(z * w_ref[...], axis=1, keepdims=True)        # (M3, 1)
    v = jnp.sum(v, axis=0, keepdims=True) + b_ref[...]        # (1, 1)
    o_ref[0] = (1.0 / (1.0 + jnp.exp(-v))).astype(o_ref.dtype)


def final_layer(y3, scale3, shift3, w4, b4, *, h3, w3):
    B, m3, c3 = y3.shape
    cout, cin, kh, kw = w4.shape
    # TODO(synk): generalize to conv4 outputs larger than 1x1 (would need the
    # generic conv path); architecture=None on 32x32 inputs yields exactly 1x1.
    assert cout == 1 and cin == c3 and (h3, w3) == (kh, kw)
    wmat = jnp.transpose(w4[0].astype(jnp.float32), (1, 2, 0)).reshape(kh * kw, c3)
    return pl.pallas_call(
        _final_kernel,
        grid=(B,),
        in_specs=[
            pl.BlockSpec((1, m3, c3), lambda b: (b, 0, 0)),
            pl.BlockSpec((1, c3), lambda b: (0, 0)),
            pl.BlockSpec((1, c3), lambda b: (0, 0)),
            pl.BlockSpec((kh * kw, c3), lambda b: (0, 0)),
            pl.BlockSpec((1, 1), lambda b: (0, 0)),
        ],
        out_specs=pl.BlockSpec((1, 1, 1), lambda b: (b, 0, 0)),
        out_shape=jax.ShapeDtypeStruct((B, 1, 1), jnp.float32),
        compiler_params=pltpu.CompilerParams(
            dimension_semantics=("parallel",),
            vmem_limit_bytes=_vmem_limit_bytes()),
    )(y3, scale3.reshape(1, c3), shift3.reshape(1, c3), wmat,
      b4.astype(jnp.float32).reshape(1, 1))


# ---------------------------------------------------------------------------
# Wrapper-side layout / BN plumbing (single XLA fusion per activation)
# ---------------------------------------------------------------------------
def _fold(x_nhwc, pad=1, s=2):
    """Zero-pad spatially, then space-to-depth by the stride:
    (B, H, W, C) -> (B, (H+2p)/s, (W+2p)/s, s*s*C), channel = (pi*s+pj)*C + c."""
    b, h, w, c = x_nhwc.shape
    xp = jnp.pad(x_nhwc, ((0, 0), (pad, pad), (pad, pad), (0, 0)))
    hp, wp = h + 2 * pad, w + 2 * pad
    assert hp % s == 0 and wp % s == 0
    v = xp.reshape(b, hp // s, s, wp // s, s, c)
    v = jnp.transpose(v, (0, 1, 3, 2, 4, 5))
    return v.reshape(b, hp // s, wp // s, s * s * c)


def _to_next_input(y, h, w, scale=None, shift=None):
    """(B, h*w, C) activation -> next conv's phase-folded padded input.  If
    scale/shift are given, the BN affine + leaky_relu (BN pass 2) are fused
    into the same pass, applied BEFORE the zero padding (so pad stays zero)."""
    b, m, c = y.shape
    z = y.reshape(b, h, w, c)
    if scale is not None:
        z = z.astype(jnp.float32) * scale.reshape(1, 1, 1, c) + shift.reshape(1, 1, 1, c)
        z = jnp.where(z >= 0.0, z, LEAKY_SLOPE * z)
    return _fold(z.astype(jnp.bfloat16))


def _bn_affine(stats, gamma, beta, count):
    """(B, n_mt, 2, C) per-tile (sum, sumsq) partials -> per-channel scale/shift.
    Biased variance, matching PyTorch BatchNorm2d training-mode forward."""
    s = jnp.sum(stats.astype(jnp.float32), axis=(0, 1))          # (2, C)
    mean = s[0] / count
    var = jnp.maximum(s[1] / count - mean * mean, 0.0)
    inv = jax.lax.rsqrt(var + BN_EPS)
    scale = gamma.astype(jnp.float32) * inv
    shift = beta.astype(jnp.float32) - mean * scale
    return scale, shift


def discriminator_forward(params, x_nchw):
    b, ch, H, W = x_nchw.shape
    x = jnp.transpose(x_nchw, (0, 2, 3, 1)).astype(jnp.bfloat16)      # NHWC bf16

    # layer 1: conv(4,2,1) + bias + leaky_relu (fused epilogue)
    h1, w1 = H // 2, W // 2
    y1 = conv_layer(_fold(x), params["w1"], params["b1"], ho=h1, wo=w1,
                    mode="lrelu")

    # layer 2: conv -> pre-BN y + stats; BN affine + lrelu fused into the next
    # layout pass
    h2, w2 = h1 // 2, w1 // 2
    y2, st2 = conv_layer(_to_next_input(y1, h1, w1), params["w2"], params["b2"],
                         ho=h2, wo=w2, mode="bn_pre")
    sc2, sh2 = _bn_affine(st2, params["g2"], params["be2"], float(b * h2 * w2))

    # layer 3
    h3, w3 = h2 // 2, w2 // 2
    y3, st3 = conv_layer(_to_next_input(y2, h2, w2, sc2, sh2), params["w3"],
                         params["b3"], ho=h3, wo=w3, mode="bn_pre")
    sc3, sh3 = _bn_affine(st3, params["g3"], params["be3"], float(b * h3 * w3))

    # layer 4: BN3 + leaky_relu + conv(4,1,0, Cout=1) + sigmoid, one kernel
    out = final_layer(y3, sc3, sh3, params["w4"], params["b4"], h3=h3, w3=w3)
    return out.reshape(b, 1, 1, 1)                                  # NCHW, f32


# ---------------------------------------------------------------------------
# Pure-JAX reference (PyTorch train-mode semantics) for a sanity check
# ---------------------------------------------------------------------------
def reference_forward(params, x_nchw):
    x = x_nchw.astype(jnp.float32)

    def conv(h, w, bb, stride, pad):
        out = jax.lax.conv_general_dilated(
            h, w.astype(jnp.float32), window_strides=(stride, stride),
            padding=((pad, pad), (pad, pad)),
            dimension_numbers=("NCHW", "OIHW", "NCHW"),
            precision=jax.lax.Precision.HIGHEST)
        return out + bb.reshape(1, -1, 1, 1)

    def bn(h, gamma, beta):
        mean = jnp.mean(h, axis=(0, 2, 3), keepdims=True)
        var = jnp.mean((h - mean) ** 2, axis=(0, 2, 3), keepdims=True)
        hn = (h - mean) * jax.lax.rsqrt(var + BN_EPS)
        return hn * gamma.reshape(1, -1, 1, 1) + beta.reshape(1, -1, 1, 1)

    def lrelu(h):
        return jnp.where(h >= 0.0, h, LEAKY_SLOPE * h)

    h = lrelu(conv(x, params["w1"], params["b1"], 2, 1))
    h = lrelu(bn(conv(h, params["w2"], params["b2"], 2, 1), params["g2"], params["be2"]))
    h = lrelu(bn(conv(h, params["w3"], params["b3"], 2, 1), params["g3"], params["be3"]))
    h = jax.nn.sigmoid(conv(h, params["w4"], params["b4"], 1, 0))
    return h


if __name__ == "__main__":
    key = jax.random.PRNGKey(0)
    ks = jax.random.split(key, 12)

    # Discriminator(d=16, channels=1) on 32x32 inputs:
    # spatial 32 -> 16 -> 8 -> 4 -> 1, channels 1 -> 8 -> 32 -> 64 -> 1.
    batch, channels, img, d = 2, 1, 32, 16

    def w_init(k, shape):
        return 0.02 * jax.random.normal(k, shape, jnp.float32)

    params = {
        "w1": w_init(ks[0], (d // 2, channels, 4, 4)),
        "b1": 0.02 * jax.random.normal(ks[1], (d // 2,), jnp.float32),
        "w2": w_init(ks[2], (d * 2, d // 2, 4, 4)),
        "b2": 0.02 * jax.random.normal(ks[3], (d * 2,), jnp.float32),
        "g2": 1.0 + 0.1 * jax.random.normal(ks[4], (d * 2,), jnp.float32),
        "be2": 0.1 * jax.random.normal(ks[5], (d * 2,), jnp.float32),
        "w3": w_init(ks[6], (d * 4, d * 2, 4, 4)),
        "b3": 0.02 * jax.random.normal(ks[7], (d * 4,), jnp.float32),
        "g3": 1.0 + 0.1 * jax.random.normal(ks[8], (d * 4,), jnp.float32),
        "be3": 0.1 * jax.random.normal(ks[9], (d * 4,), jnp.float32),
        "w4": w_init(ks[10], (1, d * 4, 4, 4)),
        "b4": jnp.zeros((1,), jnp.float32),
    }
    x = jax.random.normal(ks[11], (batch, channels, img, img), jnp.float32)

    fwd = jax.jit(discriminator_forward)
    out = jax.block_until_ready(fwd(params, x))

    ref = reference_forward(params, x)
    err = float(jnp.max(jnp.abs(out.astype(jnp.float32) - ref)))
    if out.shape == (batch, 1, 1, 1) and err < 5e-2:
        print("KERNEL_OK")
    else:
        print(f"KERNEL_MISMATCH shape={out.shape} max_abs_err={err}")
</pallas_src>

<mosaic_0001>
module attributes {stable_mosaic.version = 11 : i64} {
  func.func @_conv_kernel(%arg0: i32, %arg1: i32, %arg2: memref<1x17x17x4xbf16, #tpu.memory_space<vmem>>, %arg3: memref<4x4x128xbf16, #tpu.memory_space<vmem>>, %arg4: memref<1x8xf32, #tpu.memory_space<vmem>>, %arg5: memref<1x256x8xbf16, #tpu.memory_space<vmem>>) attributes {dimension_semantics = [#tpu.dimension_semantics<parallel>, #tpu.dimension_semantics<parallel>], iteration_bounds = array<i64: 2, 1>, scalar_prefetch = 0 : i64, scratch_operands = 0 : i64, tpu.core_type = #tpu.core_type<tc>, window_params = [{transform_indices = @transform_0, window_bounds = array<i64: 1, 17, 17, 4>}, {pipeline_mode = #tpu.pipeline_mode<synchronous>, transform_indices = @transform_1, window_bounds = array<i64: 4, 4, 128>}, {pipeline_mode = #tpu.pipeline_mode<synchronous>, transform_indices = @transform_2, window_bounds = array<i64: 1, 8>}, {transform_indices = @transform_3, window_bounds = array<i64: 1, 256, 8>}]} {
    %cst = arith.constant 0.000000e+00 : f32
    %0 = vector.broadcast %cst : f32 to vector<256x128xf32>
    %c0 = arith.constant 0 : index
    %c0_0 = arith.constant 0 : index
    %c0_1 = arith.constant 0 : index
    %c0_2 = arith.constant 0 : index
    %1 = vector.load %arg2[%c0, %c0_0, %c0_1, %c0_2] : memref<1x17x17x4xbf16, #tpu.memory_space<vmem>>, vector<1x16x16x4xbf16>
    %2 = vector.shape_cast %1 : vector<1x16x16x4xbf16> to vector<16x16x4xbf16>
    %3 = vector.shape_cast %2 : vector<16x16x4xbf16> to vector<256x4xbf16>
    %c0_3 = arith.constant 0 : index
    %c0_4 = arith.constant 0 : index
    %c0_5 = arith.constant 0 : index
    %4 = vector.load %arg3[%c0_3, %c0_4, %c0_5] : memref<4x4x128xbf16, #tpu.memory_space<vmem>>, vector<1x4x128xbf16>
    %5 = vector.shape_cast %4 : vector<1x4x128xbf16> to vector<4x128xbf16>
    %cst_6 = arith.constant dense<0.000000e+00> : vector<256x128xf32>
    %6 = tpu.matmul %3, %5, %cst_6 {dimension_numbers = #tpu.dot_dimension_numbers<[1], [0], [0], [1], [0, 0, 1, 1], [], []>} : vector<256x4xbf16>, vector<4x128xbf16>, vector<256x128xf32> -> vector<256x128xf32>
    %7 = arith.addf %0, %6 : vector<256x128xf32>
    %c0_7 = arith.constant 0 : index
    %c0_8 = arith.constant 0 : index
    %c1 = arith.constant 1 : index
    %c0_9 = arith.constant 0 : index
    %8 = vector.load %arg2[%c0_7, %c0_8, %c1, %c0_9] : memref<1x17x17x4xbf16, #tpu.memory_space<vmem>>, vector<1x16x16x4xbf16>
    %9 = vector.shape_cast %8 : vector<1x16x16x4xbf16> to vector<16x16x4xbf16>
    %10 = vector.shape_cast %9 : vector<16x16x4xbf16> to vector<256x4xbf16>
    %c1_10 = arith.constant 1 : index
    %c0_11 = arith.constant 0 : index
    %c0_12 = arith.constant 0 : index
    %11 = vector.load %arg3[%c1_10, %c0_11, %c0_12] : memref<4x4x128xbf16, #tpu.memory_space<vmem>>, vector<1x4x128xbf16>
    %12 = vector.shape_cast %11 : vector<1x4x128xbf16> to vector<4x128xbf16>
    %cst_13 = arith.constant dense<0.000000e+00> : vector<256x128xf32>
    %13 = tpu.matmul %10, %12, %cst_13 {dimension_numbers = #tpu.dot_dimension_numbers<[1], [0], [0], [1], [0, 0, 1, 1], [], []>} : vector<256x4xbf16>, vector<4x128xbf16>, vector<256x128xf32> -> vector<256x128xf32>
    %14 = arith.addf %7, %13 : vector<256x128xf32>
    %c0_14 = arith.constant 0 : index
    %c1_15 = arith.constant 1 : index
    %c0_16 = arith.constant 0 : index
    %c0_17 = arith.constant 0 : index
    %15 = vector.load %arg2[%c0_14, %c1_15, %c0_16, %c0_17] : memref<1x17x17x4xbf16, #tpu.memory_space<vmem>>, vector<1x16x16x4xbf16>
    %16 = vector.shape_cast %15 : vector<1x16x16x4xbf16> to vector<16x16x4xbf16>
    %17 = vector.shape_cast %16 : vector<16x16x4xbf16> to vector<256x4xbf16>
    %c2 = arith.constant 2 : index
    %c0_18 = arith.constant 0 : index
    %c0_19 = arith.constant 0 : index
    %18 = vector.load %arg3[%c2, %c0_18, %c0_19] : memref<4x4x128xbf16, #tpu.memory_space<vmem>>, vector<1x4x128xbf16>
    %19 = vector.shape_cast %18 : vector<1x4x128xbf16> to vector<4x128xbf16>
    %cst_20 = arith.constant dense<0.000000e+00> : vector<256x128xf32>
    %20 = tpu.matmul %17, %19, %cst_20 {dimension_numbers = #tpu.dot_dimension_numbers<[1], [0], [0], [1], [0, 0, 1, 1], [], []>} : vector<256x4xbf16>, vector<4x128xbf16>, vector<256x128xf32> -> vector<256x128xf32>
    %21 = arith.addf %14, %20 : vector<256x128xf32>
    %c0_21 = arith.constant 0 : index
    %c1_22 = arith.constant 1 : index
    %c1_23 = arith.constant 1 : index
    %c0_24 = arith.constant 0 : index
    %22 = vector.load %arg2[%c0_21, %c1_22, %c1_23, %c0_24] : memref<1x17x17x4xbf16, #tpu.memory_space<vmem>>, vector<1x16x16x4xbf16>
    %23 = vector.shape_cast %22 : vector<1x16x16x4xbf16> to vector<16x16x4xbf16>
    %24 = vector.shape_cast %23 : vector<16x16x4xbf16> to vector<256x4xbf16>
    %c3 = arith.constant 3 : index
    %c0_25 = arith.constant 0 : index
    %c0_26 = arith.constant 0 : index
    %25 = vector.load %arg3[%c3, %c0_25, %c0_26] : memref<4x4x128xbf16, #tpu.memory_space<vmem>>, vector<1x4x128xbf16>
    %26 = vector.shape_cast %25 : vector<1x4x128xbf16> to vector<4x128xbf16>
    %cst_27 = arith.constant dense<0.000000e+00> : vector<256x128xf32>
    %27 = tpu.matmul %24, %26, %cst_27 {dimension_numbers = #tpu.dot_dimension_numbers<[1], [0], [0], [1], [0, 0, 1, 1], [], []>} : vector<256x4xbf16>, vector<4x128xbf16>, vector<256x128xf32> -> vector<256x128xf32>
    %28 = arith.addf %21, %27 : vector<256x128xf32>
    %29 = vector.extract_strided_slice %28 {offsets = [0, 0], sizes = [256, 8], strides = [1, 1]} : vector<256x128xf32> to vector<256x8xf32>
    %c0_28 = arith.constant 0 : index
    %c0_29 = arith.constant 0 : index
    %30 = vector.load %arg4[%c0_28, %c0_29] : memref<1x8xf32, #tpu.memory_space<vmem>>, vector<1x8xf32>
    %31 = vector.broadcast %30 : vector<1x8xf32> to vector<256x8xf32>
    %32 = arith.addf %29, %31 : vector<256x8xf32>
    %cst_30 = arith.constant 0.000000e+00 : f32
    %33 = vector.broadcast %cst_30 : f32 to vector<256x8xf32>
    %34 = arith.cmpf oge, %32, %33 : vector<256x8xf32>
    %cst_31 = arith.constant 2.000000e-01 : f32
    %35 = vector.broadcast %cst_31 : f32 to vector<256x8xf32>
    %36 = arith.mulf %35, %32 : vector<256x8xf32>
    %37 = arith.select %34, %32, %36 : vector<256x8xi1>, vector<256x8xf32>
    %38 = arith.truncf %37 : vector<256x8xf32> to vector<256x8xbf16>
    %c0_32 = arith.constant 0 : index
    %c0_33 = arith.constant 0 : index
    %c0_34 = arith.constant 0 : index
    %39 = vector.load %arg5[%c0_32, %c0_33, %c0_34] : memref<1x256x8xbf16, #tpu.memory_space<vmem>>, vector<1x256x8xbf16>
    %40 = vector.shape_cast %39 : vector<1x256x8xbf16> to vector<256x8xbf16>
    %41 = vector.shape_cast %38 : vector<256x8xbf16> to vector<1x256x8xbf16>
    tpu.vector_store %arg5[%c0_32, %c0_33, %c0_34], %41 {strides = array<i32>} : memref<1x256x8xbf16, #tpu.memory_space<vmem>>, vector<1x256x8xbf16>,
    return
  }
  func.func @transform_0(%arg0: i32, %arg1: i32) -> (i32, i32, i32, i32) {
    %c0_i32 = arith.constant 0 : i32
    %c0_i32_0 = arith.constant 0 : i32
    %c0_i32_1 = arith.constant 0 : i32
    %c0_i32_2 = arith.constant 0 : i32
    return %arg0, %c0_i32, %c0_i32_0, %c0_i32_1 : i32, i32, i32, i32
  }
  func.func @transform_1(%arg0: i32, %arg1: i32) -> (i32, i32, i32) {
    %c0_i32 = arith.constant 0 : i32
    %c0_i32_0 = arith.constant 0 : i32
    %c0_i32_1 = arith.constant 0 : i32
    %c0_i32_2 = arith.constant 0 : i32
    return %c0_i32, %c0_i32_0, %c0_i32_1 : i32, i32, i32
  }
  func.func @transform_2(%arg0: i32, %arg1: i32) -> (i32, i32) {
    %c0_i32 = arith.constant 0 : i32
    %c0_i32_0 = arith.constant 0 : i32
    %c0_i32_1 = arith.constant 0 : i32
    return %c0_i32, %c0_i32_0 : i32, i32
  }
  func.func @transform_3(%arg0: i32, %arg1: i32) -> (i32, i32, i32) {
    %c0_i32 = arith.constant 0 : i32
    %c0_i32_0 = arith.constant 0 : i32
    return %arg0, %arg1, %c0_i32 : i32, i32, i32
  }
}

module attributes {stable_mosaic.version = 11 : i64} {
  func.func @_conv_kernel(%arg0: i32, %arg1: i32, %arg2: memref<1x9x9x32xbf16, #tpu.memory_space<vmem>>, %arg3: memref<4x32x128xbf16, #tpu.memory_space<vmem>>, %arg4: memref<1x32xf32, #tpu.memory_space<vmem>>, %arg5: memref<1x64x32xbf16, #tpu.memory_space<vmem>>, %arg6: memref<1x1x2x32xf32, #tpu.memory_space<vmem>>) attributes {dimension_semantics = [#tpu.dimension_semantics<parallel>, #tpu.dimension_semantics<parallel>], iteration_bounds = array<i64: 2, 1>, scalar_prefetch = 0 : i64, scratch_operands = 0 : i64, tpu.core_type = #tpu.core_type<tc>, window_params = [{transform_indices = @transform_0, window_bounds = array<i64: 1, 9, 9, 32>}, {pipeline_mode = #tpu.pipeline_mode<synchronous>, transform_indices = @transform_1, window_bounds = array<i64: 4, 32, 128>}, {pipeline_mode = #tpu.pipeline_mode<synchronous>, transform_indices = @transform_2, window_bounds = array<i64: 1, 32>}, {transform_indices = @transform_3, window_bounds = array<i64: 1, 64, 32>}, {transform_indices = @transform_4, window_bounds = array<i64: 1, 1, 2, 32>}]} {
    %cst = arith.constant 0.000000e+00 : f32
    %0 = vector.broadcast %cst : f32 to vector<64x128xf32>
    %c0 = arith.constant 0 : index
    %c0_0 = arith.constant 0 : index
    %c0_1 = arith.constant 0 : index
    %c0_2 = arith.constant 0 : index
    %1 = vector.load %arg2[%c0, %c0_0, %c0_1, %c0_2] : memref<1x9x9x32xbf16, #tpu.memory_space<vmem>>, vector<1x8x8x32xbf16>
    %2 = vector.shape_cast %1 : vector<1x8x8x32xbf16> to vector<8x8x32xbf16>
    %3 = vector.shape_cast %2 : vector<8x8x32xbf16> to vector<64x32xbf16>
    %c0_3 = arith.constant 0 : index
    %c0_4 = arith.constant 0 : index
    %c0_5 = arith.constant 0 : index
    %4 = vector.load %arg3[%c0_3, %c0_4, %c0_5] : memref<4x32x128xbf16, #tpu.memory_space<vmem>>, vector<1x32x128xbf16>
    %5 = vector.shape_cast %4 : vector<1x32x128xbf16> to vector<32x128xbf16>
    %cst_6 = arith.constant dense<0.000000e+00> : vector<64x128xf32>
    %6 = tpu.matmul %3, %5, %cst_6 {dimension_numbers = #tpu.dot_dimension_numbers<[1], [0], [0], [1], [0, 0, 1, 1], [], []>} : vector<64x32xbf16>, vector<32x128xbf16>, vector<64x128xf32> -> vector<64x128xf32>
    %7 = arith.addf %0, %6 : vector<64x128xf32>
    %c0_7 = arith.constant 0 : index
    %c0_8 = arith.constant 0 : index
    %c1 = arith.constant 1 : index
    %c0_9 = arith.constant 0 : index
    %8 = vector.load %arg2[%c0_7, %c0_8, %c1, %c0_9] : memref<1x9x9x32xbf16, #tpu.memory_space<vmem>>, vector<1x8x8x32xbf16>
    %9 = vector.shape_cast %8 : vector<1x8x8x32xbf16> to vector<8x8x32xbf16>
    %10 = vector.shape_cast %9 : vector<8x8x32xbf16> to vector<64x32xbf16>
    %c1_10 = arith.constant 1 : index
    %c0_11 = arith.constant 0 : index
    %c0_12 = arith.constant 0 : index
    %11 = vector.load %arg3[%c1_10, %c0_11, %c0_12] : memref<4x32x128xbf16, #tpu.memory_space<vmem>>, vector<1x32x128xbf16>
    %12 = vector.shape_cast %11 : vector<1x32x128xbf16> to vector<32x128xbf16>
    %cst_13 = arith.constant dense<0.000000e+00> : vector<64x128xf32>
    %13 = tpu.matmul %10, %12, %cst_13 {dimension_numbers = #tpu.dot_dimension_numbers<[1], [0], [0], [1], [0, 0, 1, 1], [], []>} : vector<64x32xbf16>, vector<32x128xbf16>, vector<64x128xf32> -> vector<64x128xf32>
    %14 = arith.addf %7, %13 : vector<64x128xf32>
    %c0_14 = arith.constant 0 : index
    %c1_15 = arith.constant 1 : index
    %c0_16 = arith.constant 0 : index
    %c0_17 = arith.constant 0 : index
    %15 = vector.load %arg2[%c0_14, %c1_15, %c0_16, %c0_17] : memref<1x9x9x32xbf16, #tpu.memory_space<vmem>>, vector<1x8x8x32xbf16>
    %16 = vector.shape_cast %15 : vector<1x8x8x32xbf16> to vector<8x8x32xbf16>
    %17 = vector.shape_cast %16 : vector<8x8x32xbf16> to vector<64x32xbf16>
    %c2 = arith.constant 2 : index
    %c0_18 = arith.constant 0 : index
    %c0_19 = arith.constant 0 : index
    %18 = vector.load %arg3[%c2, %c0_18, %c0_19] : memref<4x32x128xbf16, #tpu.memory_space<vmem>>, vector<1x32x128xbf16>
    %19 = vector.shape_cast %18 : vector<1x32x128xbf16> to vector<32x128xbf16>
    %cst_20 = arith.constant dense<0.000000e+00> : vector<64x128xf32>
    %20 = tpu.matmul %17, %19, %cst_20 {dimension_numbers = #tpu.dot_dimension_numbers<[1], [0], [0], [1], [0, 0, 1, 1], [], []>} : vector<64x32xbf16>, vector<32x128xbf16>, vector<64x128xf32> -> vector<64x128xf32>
    %21 = arith.addf %14, %20 : vector<64x128xf32>
    %c0_21 = arith.constant 0 : index
    %c1_22 = arith.constant 1 : index
    %c1_23 = arith.constant 1 : index
    %c0_24 = arith.constant 0 : index
    %22 = vector.load %arg2[%c0_21, %c1_22, %c1_23, %c0_24] : memref<1x9x9x32xbf16, #tpu.memory_space<vmem>>, vector<1x8x8x32xbf16>
    %23 = vector.shape_cast %22 : vector<1x8x8x32xbf16> to vector<8x8x32xbf16>
    %24 = vector.shape_cast %23 : vector<8x8x32xbf16> to vector<64x32xbf16>
    %c3 = arith.constant 3 : index
    %c0_25 = arith.constant 0 : index
    %c0_26 = arith.constant 0 : index
    %25 = vector.load %arg3[%c3, %c0_25, %c0_26] : memref<4x32x128xbf16, #tpu.memory_space<vmem>>, vector<1x32x128xbf16>
    %26 = vector.shape_cast %25 : vector<1x32x128xbf16> to vector<32x128xbf16>
    %cst_27 = arith.constant dense<0.000000e+00> : vector<64x128xf32>
    %27 = tpu.matmul %24, %26, %cst_27 {dimension_numbers = #tpu.dot_dimension_numbers<[1], [0], [0], [1], [0, 0, 1, 1], [], []>} : vector<64x32xbf16>, vector<32x128xbf16>, vector<64x128xf32> -> vector<64x128xf32>
    %28 = arith.addf %21, %27 : vector<64x128xf32>
    %29 = vector.extract_strided_slice %28 {offsets = [0, 0], sizes = [64, 32], strides = [1, 1]} : vector<64x128xf32> to vector<64x32xf32>
    %c0_28 = arith.constant 0 : index
    %c0_29 = arith.constant 0 : index
    %30 = vector.load %arg4[%c0_28, %c0_29] : memref<1x32xf32, #tpu.memory_space<vmem>>, vector<1x32xf32>
    %31 = vector.broadcast %30 : vector<1x32xf32> to vector<64x32xf32>
    %32 = arith.addf %29, %31 : vector<64x32xf32>
    %33 = arith.truncf %32 : vector<64x32xf32> to vector<64x32xbf16>
    %c0_30 = arith.constant 0 : index
    %c0_31 = arith.constant 0 : index
    %c0_32 = arith.constant 0 : index
    %34 = vector.load %arg5[%c0_30, %c0_31, %c0_32] : memref<1x64x32xbf16, #tpu.memory_space<vmem>>, vector<1x64x32xbf16>
    %35 = vector.shape_cast %34 : vector<1x64x32xbf16> to vector<64x32xbf16>
    %36 = vector.shape_cast %33 : vector<64x32xbf16> to vector<1x64x32xbf16>
    tpu.vector_store %arg5[%c0_30, %c0_31, %c0_32], %36 {strides = array<i32>} : memref<1x64x32xbf16, #tpu.memory_space<vmem>>, vector<1x64x32xbf16>,
    %37 = arith.extf %33 : vector<64x32xbf16> to vector<64x32xf32>
    %cst_33 = arith.constant dense<0.000000e+00> : vector<32xf32>
    %38 = vector.multi_reduction <add>, %37, %cst_33 [0] : vector<64x32xf32> to vector<32xf32>
    %39 = vector.shape_cast %38 : vector<32xf32> to vector<1x32xf32>
    %40 = arith.mulf %37, %37 : vector<64x32xf32>
    %cst_34 = arith.constant dense<0.000000e+00> : vector<32xf32>
    %41 = vector.multi_reduction <add>, %40, %cst_34 [0] : vector<64x32xf32> to vector<32xf32>
    %42 = vector.shape_cast %41 : vector<32xf32> to vector<1x32xf32>
    %43 = tpu.concatenate %39, %42 in 0 : vector<1x32xf32>, vector<1x32xf32> -> vector<2x32xf32>
    %c0_35 = arith.constant 0 : index
    %c0_36 = arith.constant 0 : index
    %c0_37 = arith.constant 0 : index
    %c0_38 = arith.constant 0 : index
    %44 = vector.load %arg6[%c0_35, %c0_36, %c0_37, %c0_38] : memref<1x1x2x32xf32, #tpu.memory_space<vmem>>, vector<1x1x2x32xf32>
    %45 = vector.shape_cast %44 : vector<1x1x2x32xf32> to vector<2x32xf32>
    %46 = vector.shape_cast %43 : vector<2x32xf32> to vector<1x1x2x32xf32>
    tpu.vector_store %arg6[%c0_35, %c0_36, %c0_37, %c0_38], %46 {strides = array<i32>} : memref<1x1x2x32xf32, #tpu.memory_space<vmem>>, vector<1x1x2x32xf32>,
    return
  }
  func.func @transform_0(%arg0: i32, %arg1: i32) -> (i32, i32, i32, i32) {
    %c0_i32 = arith.constant 0 : i32
    %c0_i32_0 = arith.constant 0 : i32
    %c0_i32_1 = arith.constant 0 : i32
    %c0_i32_2 = arith.constant 0 : i32
    return %arg0, %c0_i32, %c0_i32_0, %c0_i32_1 : i32, i32, i32, i32
  }
  func.func @transform_1(%arg0: i32, %arg1: i32) -> (i32, i32, i32) {
    %c0_i32 = arith.constant 0 : i32
    %c0_i32_0 = arith.constant 0 : i32
    %c0_i32_1 = arith.constant 0 : i32
    %c0_i32_2 = arith.constant 0 : i32
    return %c0_i32, %c0_i32_0, %c0_i32_1 : i32, i32, i32
  }
  func.func @transform_2(%arg0: i32, %arg1: i32) -> (i32, i32) {
    %c0_i32 = arith.constant 0 : i32
    %c0_i32_0 = arith.constant 0 : i32
    %c0_i32_1 = arith.constant 0 : i32
    return %c0_i32, %c0_i32_0 : i32, i32
  }
  func.func @transform_3(%arg0: i32, %arg1: i32) -> (i32, i32, i32) {
    %c0_i32 = arith.constant 0 : i32
    %c0_i32_0 = arith.constant 0 : i32
    return %arg0, %arg1, %c0_i32 : i32, i32, i32
  }
  func.func @transform_4(%arg0: i32, %arg1: i32) -> (i32, i32, i32, i32) {
    %c0_i32 = arith.constant 0 : i32
    %c0_i32_0 = arith.constant 0 : i32
    %c0_i32_1 = arith.constant 0 : i32
    return %arg0, %arg1, %c0_i32, %c0_i32_0 : i32, i32, i32, i32
  }
}

module attributes {stable_mosaic.version = 11 : i64} {
  func.func @_conv_kernel(%arg0: i32, %arg1: i32, %arg2: memref<1x5x5x128xbf16, #tpu.memory_space<vmem>>, %arg3: memref<512x128xbf16, #tpu.memory_space<vmem>>, %arg4: memref<1x64xf32, #tpu.memory_space<vmem>>, %arg5: memref<1x16x64xbf16, #tpu.memory_space<vmem>>, %arg6: memref<1x1x2x64xf32, #tpu.memory_space<vmem>>, %arg7: memref<16x512xbf16, #tpu.memory_space<vmem>>) attributes {dimension_semantics = [#tpu.dimension_semantics<parallel>, #tpu.dimension_semantics<parallel>], iteration_bounds = array<i64: 2, 1>, scalar_prefetch = 0 : i64, scratch_operands = 1 : i64, tpu.core_type = #tpu.core_type<tc>, window_params = [{transform_indices = @transform_0, window_bounds = array<i64: 1, 5, 5, 128>}, {pipeline_mode = #tpu.pipeline_mode<synchronous>, transform_indices = @transform_1, window_bounds = array<i64: 512, 128>}, {pipeline_mode = #tpu.pipeline_mode<synchronous>, transform_indices = @transform_2, window_bounds = array<i64: 1, 64>}, {transform_indices = @transform_3, window_bounds = array<i64: 1, 16, 64>}, {transform_indices = @transform_4, window_bounds = array<i64: 1, 1, 2, 64>}]} {
    %c0 = arith.constant 0 : index
    %c0_0 = arith.constant 0 : index
    %c0_1 = arith.constant 0 : index
    %c0_2 = arith.constant 0 : index
    %0 = vector.load %arg2[%c0, %c0_0, %c0_1, %c0_2] : memref<1x5x5x128xbf16, #tpu.memory_space<vmem>>, vector<1x4x4x128xbf16>
    %1 = vector.shape_cast %0 : vector<1x4x4x128xbf16> to vector<4x4x128xbf16>
    %2 = vector.shape_cast %1 : vector<4x4x128xbf16> to vector<16x128xbf16>
    %c0_3 = arith.constant 0 : index
    %c0_4 = arith.constant 0 : index
    %3 = vector.load %arg7[%c0_3, %c0_4] : memref<16x512xbf16, #tpu.memory_space<vmem>>, vector<16x128xbf16>
    tpu.vector_store %arg7[%c0_3, %c0_4], %2 {strides = array<i32>} : memref<16x512xbf16, #tpu.memory_space<vmem>>, vector<16x128xbf16>,
    %c0_5 = arith.constant 0 : index
    %c0_6 = arith.constant 0 : index
    %c1 = arith.constant 1 : index
    %c0_7 = arith.constant 0 : index
    %4 = vector.load %arg2[%c0_5, %c0_6, %c1, %c0_7] : memref<1x5x5x128xbf16, #tpu.memory_space<vmem>>, vector<1x4x4x128xbf16>
    %5 = vector.shape_cast %4 : vector<1x4x4x128xbf16> to vector<4x4x128xbf16>
    %6 = vector.shape_cast %5 : vector<4x4x128xbf16> to vector<16x128xbf16>
    %c0_8 = arith.constant 0 : index
    %c128 = arith.constant 128 : index
    %7 = vector.load %arg7[%c0_8, %c128] : memref<16x512xbf16, #tpu.memory_space<vmem>>, vector<16x128xbf16>
    tpu.vector_store %arg7[%c0_8, %c128], %6 {strides = array<i32>} : memref<16x512xbf16, #tpu.memory_space<vmem>>, vector<16x128xbf16>,
    %c0_9 = arith.constant 0 : index
    %c1_10 = arith.constant 1 : index
    %c0_11 = arith.constant 0 : index
    %c0_12 = arith.constant 0 : index
    %8 = vector.load %arg2[%c0_9, %c1_10, %c0_11, %c0_12] : memref<1x5x5x128xbf16, #tpu.memory_space<vmem>>, vector<1x4x4x128xbf16>
    %9 = vector.shape_cast %8 : vector<1x4x4x128xbf16> to vector<4x4x128xbf16>
    %10 = vector.shape_cast %9 : vector<4x4x128xbf16> to vector<16x128xbf16>
    %c0_13 = arith.constant 0 : index
    %c256 = arith.constant 256 : index
    %11 = vector.load %arg7[%c0_13, %c256] : memref<16x512xbf16, #tpu.memory_space<vmem>>, vector<16x128xbf16>
    tpu.vector_store %arg7[%c0_13, %c256], %10 {strides = array<i32>} : memref<16x512xbf16, #tpu.memory_space<vmem>>, vector<16x128xbf16>,
    %c0_14 = arith.constant 0 : index
    %c1_15 = arith.constant 1 : index
    %c1_16 = arith.constant 1 : index
    %c0_17 = arith.constant 0 : index
    %12 = vector.load %arg2[%c0_14, %c1_15, %c1_16, %c0_17] : memref<1x5x5x128xbf16, #tpu.memory_space<vmem>>, vector<1x4x4x128xbf16>
    %13 = vector.shape_cast %12 : vector<1x4x4x128xbf16> to vector<4x4x128xbf16>
    %14 = vector.shape_cast %13 : vector<4x4x128xbf16> to vector<16x128xbf16>
    %c0_18 = arith.constant 0 : index
    %c384 = arith.constant 384 : index
    %15 = vector.load %arg7[%c0_18, %c384] : memref<16x512xbf16, #tpu.memory_space<vmem>>, vector<16x128xbf16>
    tpu.vector_store %arg7[%c0_18, %c384], %14 {strides = array<i32>} : memref<16x512xbf16, #tpu.memory_space<vmem>>, vector<16x128xbf16>,
    %c0_19 = arith.constant 0 : index
    %c0_20 = arith.constant 0 : index
    %16 = vector.load %arg7[%c0_19, %c0_20] : memref<16x512xbf16, #tpu.memory_space<vmem>>, vector<16x512xbf16>
    %c0_21 = arith.constant 0 : index
    %c0_22 = arith.constant 0 : index
    %17 = vector.load %arg3[%c0_21, %c0_22] : memref<512x128xbf16, #tpu.memory_space<vmem>>, vector<512x128xbf16>
    %cst = arith.constant dense<0.000000e+00> : vector<16x128xf32>
    %18 = tpu.matmul %16, %17, %cst {dimension_numbers = #tpu.dot_dimension_numbers<[1], [0], [0], [1], [0, 0, 1, 1], [], []>} : vector<16x512xbf16>, vector<512x128xbf16>, vector<16x128xf32> -> vector<16x128xf32>
    %19 = vector.extract_strided_slice %18 {offsets = [0, 0], sizes = [16, 64], strides = [1, 1]} : vector<16x128xf32> to vector<16x64xf32>
    %c0_23 = arith.constant 0 : index
    %c0_24 = arith.constant 0 : index
    %20 = vector.load %arg4[%c0_23, %c0_24] : memref<1x64xf32, #tpu.memory_space<vmem>>, vector<1x64xf32>
    %21 = vector.broadcast %20 : vector<1x64xf32> to vector<16x64xf32>
    %22 = arith.addf %19, %21 : vector<16x64xf32>
    %23 = arith.truncf %22 : vector<16x64xf32> to vector<16x64xbf16>
    %c0_25 = arith.constant 0 : index
    %c0_26 = arith.constant 0 : index
    %c0_27 = arith.constant 0 : index
    %24 = vector.load %arg5[%c0_25, %c0_26, %c0_27] : memref<1x16x64xbf16, #tpu.memory_space<vmem>>, vector<1x16x64xbf16>
    %25 = vector.shape_cast %24 : vector<1x16x64xbf16> to vector<16x64xbf16>
    %26 = vector.shape_cast %23 : vector<16x64xbf16> to vector<1x16x64xbf16>
    tpu.vector_store %arg5[%c0_25, %c0_26, %c0_27], %26 {strides = array<i32>} : memref<1x16x64xbf16, #tpu.memory_space<vmem>>, vector<1x16x64xbf16>,
    %27 = arith.extf %23 : vector<16x64xbf16> to vector<16x64xf32>
    %cst_28 = arith.constant dense<0.000000e+00> : vector<64xf32>
    %28 = vector.multi_reduction <add>, %27, %cst_28 [0] : vector<16x64xf32> to vector<64xf32>
    %29 = vector.shape_cast %28 : vector<64xf32> to vector<1x64xf32>
    %30 = arith.mulf %27, %27 : vector<16x64xf32>
    %cst_29 = arith.constant dense<0.000000e+00> : vector<64xf32>
    %31 = vector.multi_reduction <add>, %30, %cst_29 [0] : vector<16x64xf32> to vector<64xf32>
    %32 = vector.shape_cast %31 : vector<64xf32> to vector<1x64xf32>
    %33 = tpu.concatenate %29, %32 in 0 : vector<1x64xf32>, vector<1x64xf32> -> vector<2x64xf32>
    %c0_30 = arith.constant 0 : index
    %c0_31 = arith.constant 0 : index
    %c0_32 = arith.constant 0 : index
    %c0_33 = arith.constant 0 : index
    %34 = vector.load %arg6[%c0_30, %c0_31, %c0_32, %c0_33] : memref<1x1x2x64xf32, #tpu.memory_space<vmem>>, vector<1x1x2x64xf32>
    %35 = vector.shape_cast %34 : vector<1x1x2x64xf32> to vector<2x64xf32>
    %36 = vector.shape_cast %33 : vector<2x64xf32> to vector<1x1x2x64xf32>
    tpu.vector_store %arg6[%c0_30, %c0_31, %c0_32, %c0_33], %36 {strides = array<i32>} : memref<1x1x2x64xf32, #tpu.memory_space<vmem>>, vector<1x1x2x64xf32>,
    return
  }
  func.func @transform_0(%arg0: i32, %arg1: i32) -> (i32, i32, i32, i32) {
    %c0_i32 = arith.constant 0 : i32
    %c0_i32_0 = arith.constant 0 : i32
    %c0_i32_1 = arith.constant 0 : i32
    %c0_i32_2 = arith.constant 0 : i32
    return %arg0, %c0_i32, %c0_i32_0, %c0_i32_1 : i32, i32, i32, i32
  }
  func.func @transform_1(%arg0: i32, %arg1: i32) -> (i32, i32) {
    %c0_i32 = arith.constant 0 : i32
    %c0_i32_0 = arith.constant 0 : i32
    %c0_i32_1 = arith.constant 0 : i32
    return %c0_i32, %c0_i32_0 : i32, i32
  }
  func.func @transform_2(%arg0: i32, %arg1: i32) -> (i32, i32) {
    %c0_i32 = arith.constant 0 : i32
    %c0_i32_0 = arith.constant 0 : i32
    %c0_i32_1 = arith.constant 0 : i32
    return %c0_i32, %c0_i32_0 : i32, i32
  }
  func.func @transform_3(%arg0: i32, %arg1: i32) -> (i32, i32, i32) {
    %c0_i32 = arith.constant 0 : i32
    %c0_i32_0 = arith.constant 0 : i32
    return %arg0, %arg1, %c0_i32 : i32, i32, i32
  }
  func.func @transform_4(%arg0: i32, %arg1: i32) -> (i32, i32, i32, i32) {
    %c0_i32 = arith.constant 0 : i32
    %c0_i32_0 = arith.constant 0 : i32
    %c0_i32_1 = arith.constant 0 : i32
    return %arg0, %arg1, %c0_i32, %c0_i32_0 : i32, i32, i32, i32
  }
}

module attributes {stable_mosaic.version = 11 : i64} {
  func.func @_final_kernel(%arg0: i32, %arg1: memref<1x16x64xbf16, #tpu.memory_space<vmem>>, %arg2: memref<1x64xf32, #tpu.memory_space<vmem>>, %arg3: memref<1x64xf32, #tpu.memory_space<vmem>>, %arg4: memref<16x64xf32, #tpu.memory_space<vmem>>, %arg5: memref<1x1xf32, #tpu.memory_space<vmem>>, %arg6: memref<1x1x1xf32, #tpu.memory_space<vmem>>) attributes {dimension_semantics = [#tpu.dimension_semantics<parallel>], iteration_bounds = array<i64: 2>, scalar_prefetch = 0 : i64, scratch_operands = 0 : i64, tpu.core_type = #tpu.core_type<tc>, window_params = [{transform_indices = @transform_0, window_bounds = array<i64: 1, 16, 64>}, {pipeline_mode = #tpu.pipeline_mode<synchronous>, transform_indices = @transform_1, window_bounds = array<i64: 1, 64>}, {pipeline_mode = #tpu.pipeline_mode<synchronous>, transform_indices = @transform_2, window_bounds = array<i64: 1, 64>}, {pipeline_mode = #tpu.pipeline_mode<synchronous>, transform_indices = @transform_3, window_bounds = array<i64: 16, 64>}, {pipeline_mode = #tpu.pipeline_mode<synchronous>, transform_indices = @transform_4, window_bounds = array<i64: 1, 1>}, {transform_indices = @transform_5, window_bounds = array<i64: 1, 1, 1>}]} {
    %c0 = arith.constant 0 : index
    %c0_0 = arith.constant 0 : index
    %c0_1 = arith.constant 0 : index
    %0 = vector.load %arg1[%c0, %c0_0, %c0_1] : memref<1x16x64xbf16, #tpu.memory_space<vmem>>, vector<1x16x64xbf16>
    %1 = vector.shape_cast %0 : vector<1x16x64xbf16> to vector<16x64xbf16>
    %2 = arith.extf %1 : vector<16x64xbf16> to vector<16x64xf32>
    %c0_2 = arith.constant 0 : index
    %c0_3 = arith.constant 0 : index
    %3 = vector.load %arg2[%c0_2, %c0_3] : memref<1x64xf32, #tpu.memory_space<vmem>>, vector<1x64xf32>
    %4 = vector.broadcast %3 : vector<1x64xf32> to vector<16x64xf32>
    %5 = arith.mulf %2, %4 : vector<16x64xf32>
    %c0_4 = arith.constant 0 : index
    %c0_5 = arith.constant 0 : index
    %6 = vector.load %arg3[%c0_4, %c0_5] : memref<1x64xf32, #tpu.memory_space<vmem>>, vector<1x64xf32>
    %7 = vector.broadcast %6 : vector<1x64xf32> to vector<16x64xf32>
    %8 = arith.addf %5, %7 : vector<16x64xf32>
    %cst = arith.constant 0.000000e+00 : f32
    %9 = vector.broadcast %cst : f32 to vector<16x64xf32>
    %10 = arith.cmpf oge, %8, %9 : vector<16x64xf32>
    %cst_6 = arith.constant 2.000000e-01 : f32
    %11 = vector.broadcast %cst_6 : f32 to vector<16x64xf32>
    %12 = arith.mulf %11, %8 : vector<16x64xf32>
    %13 = arith.select %10, %8, %12 : vector<16x64xi1>, vector<16x64xf32>
    %c0_7 = arith.constant 0 : index
    %c0_8 = arith.constant 0 : index
    %14 = vector.load %arg4[%c0_7, %c0_8] : memref<16x64xf32, #tpu.memory_space<vmem>>, vector<16x64xf32>
    %15 = arith.mulf %13, %14 : vector<16x64xf32>
    %cst_9 = arith.constant dense<0.000000e+00> : vector<16xf32>
    %16 = vector.multi_reduction <add>, %15, %cst_9 [1] : vector<16x64xf32> to vector<16xf32>
    %17 = vector.shape_cast %16 : vector<16xf32> to vector<16x1xf32>
    %cst_10 = arith.constant dense<0.000000e+00> : vector<1xf32>
    %18 = vector.multi_reduction <add>, %17, %cst_10 [0] : vector<16x1xf32> to vector<1xf32>
    %19 = vector.shape_cast %18 : vector<1xf32> to vector<1x1xf32>
    %c0_11 = arith.constant 0 : index
    %c0_12 = arith.constant 0 : index
    %20 = vector.load %arg5[%c0_11, %c0_12] : memref<1x1xf32, #tpu.memory_space<vmem>>, vector<1x1xf32>
    %21 = arith.addf %19, %20 : vector<1x1xf32>
    %cst_13 = arith.constant 0.000000e+00 : f32
    %22 = vector.broadcast %cst_13 : f32 to vector<1x1xf32>
    %23 = arith.subf %22, %21 : vector<1x1xf32>
    %24 = math.exp %23 : vector<1x1xf32>
    %cst_14 = arith.constant 1.000000e+00 : f32
    %25 = vector.broadcast %cst_14 : f32 to vector<1x1xf32>
    %26 = arith.addf %25, %24 : vector<1x1xf32>
    %cst_15 = arith.constant 1.000000e+00 : f32
    %27 = vector.broadcast %cst_15 : f32 to vector<1x1xf32>
    %28 = arith.divf %27, %26 : vector<1x1xf32>
    %c0_16 = arith.constant 0 : index
    %c0_17 = arith.constant 0 : index
    %c0_18 = arith.constant 0 : index
    %29 = vector.load %arg6[%c0_16, %c0_17, %c0_18] : memref<1x1x1xf32, #tpu.memory_space<vmem>>, vector<1x1x1xf32>
    %30 = vector.shape_cast %29 : vector<1x1x1xf32> to vector<1x1xf32>
    %31 = vector.shape_cast %28 : vector<1x1xf32> to vector<1x1x1xf32>
    tpu.vector_store %arg6[%c0_16, %c0_17, %c0_18], %31 {strides = array<i32>} : memref<1x1x1xf32, #tpu.memory_space<vmem>>, vector<1x1x1xf32>,
    return
  }
  func.func @transform_0(%arg0: i32) -> (i32, i32, i32) {
    %c0_i32 = arith.constant 0 : i32
    %c0_i32_0 = arith.constant 0 : i32
    %c0_i32_1 = arith.constant 0 : i32
    return %arg0, %c0_i32, %c0_i32_0 : i32, i32, i32
  }
  func.func @transform_1(%arg0: i32) -> (i32, i32) {
    %c0_i32 = arith.constant 0 : i32
    %c0_i32_0 = arith.constant 0 : i32
    %c0_i32_1 = arith.constant 0 : i32
    return %c0_i32, %c0_i32_0 : i32, i32
  }
  func.func @transform_2(%arg0: i32) -> (i32, i32) {
    %c0_i32 = arith.constant 0 : i32
    %c0_i32_0 = arith.constant 0 : i32
    %c0_i32_1 = arith.constant 0 : i32
    return %c0_i32, %c0_i32_0 : i32, i32
  }
  func.func @transform_3(%arg0: i32) -> (i32, i32) {
    %c0_i32 = arith.constant 0 : i32
    %c0_i32_0 = arith.constant 0 : i32
    %c0_i32_1 = arith.constant 0 : i32
    return %c0_i32, %c0_i32_0 : i32, i32
  }
  func.func @transform_4(%arg0: i32) -> (i32, i32) {
    %c0_i32 = arith.constant 0 : i32
    %c0_i32_0 = arith.constant 0 : i32
    %c0_i32_1 = arith.constant 0 : i32
    return %c0_i32, %c0_i32_0 : i32, i32
  }
  func.func @transform_5(%arg0: i32) -> (i32, i32, i32) {
    %c0_i32 = arith.constant 0 : i32
    %c0_i32_0 = arith.constant 0 : i32
    %c0_i32_1 = arith.constant 0 : i32
    return %arg0, %c0_i32, %c0_i32_0 : i32, i32, i32
  }
}

</mosaic_0001>

<llo_original>
// kernel: discriminator_forward.4
$region0: #{discriminator_forward.4}
  #allocation0 [shape = 'u32[]', space=smem, size = 0x4, offset = 0x4, fixed_abs, tag = 'smem constant byte address 0x4 - core index']
  #allocation1 [shape = 'u32[144,128]{1,0:T(1,128)}', space=vmem, size = 0x12000, scoped, tag = 'internal scratch']
  %s0 = inlined_call_operand.vmem [shape: bf16[2,17,17,4], index: 0, kind: input, shape index: {}]
  %s1 = inlined_call_operand.vmem [shape: bf16[4,4,128], index: 1, kind: input, shape index: {}]
  %s2 = inlined_call_operand.vmem [shape: f32[1,8], index: 2, kind: input, shape index: {}]
  %s3 = inlined_call_operand.vmem [shape: bf16[2,256,8], index: 3, kind: output, shape index: {}]
  %s4 = sld [smem:[#allocation0]]
  $region45: #{discriminator_forward.4} parent=0
    _
  %s6 = ssub.s32 1, %s4
  %s7 = scalar_select 0, %s6, %s4
  loop: start=0, step=1, limit=4
  $region2: #{discriminator_forward.4} parent=0 // loop_pre_header
    _
  $region3: #{discriminator_forward.4} parent=0 // loop_header
    %s9 = sphi 0, %s13
    %p10 = scmp.ge.s32.totalorder %s9, 4
    %s16 = sphi 0, %s28
    %s17 = sphi 0, %s24
    %s18 = sphi 0, %s16
    %s19 = sphi 0, %s17
    %s20 = sphi 0, %s18
    %s21 = sphi 0, %s19
    %s31 = sphi 0, %s33
    %s34 = sphi 0, %s31
    %s35 = sphi 0, %s34
    %s51 = sphi 0, %s35
    %s55 = sphi 0, %s55
    %s57 = sphi 0, %s55
    %s58 = sphi 0, %s57
    %s72 = sphi 0, %s58
    %s76 = sphi 0, %s76
    %s78 = sphi 0, %s76
    %s79 = sphi 0, %s78
    %s93 = sphi 0, %s79
    %s101 = sphi 0, %s103
    %s104 = sphi 0, %s101
    %s105 = sphi 0, %s104
    %s121 = sphi 0, %s105
  $region4: #{discriminator_forward.4} parent=0 // loop_header_branch
    %12 = sbr.rel (%p10) target = $region8
  $region5: #{discriminator_forward.4} parent=0 // loop_body
    %s14 = ssub.s32 %s9, 1
    %s15 = ssub.s32 %s9, 2
    %s22 = sadd.s32 1, %s17
    %p23 = scmp.ge.s32.totalorder %s22, 1
    %s24 = scalar_select %p23, 0, %s22
    %s25 = sadd.s32 1, %s16
    %s26 = scalar_select %p23, %s25, %s16
    %p27 = scmp.ge.s32.totalorder %s26, 2
    %s28 = scalar_select %p27, 0, %s26
    %s29 = ssub.s32 %s16, %s28
    %p30 = scmp.eq.s32.totalorder %s29, 0
    %s32 = sadd.s32 %s31, 1
    %s33 = scalar_select %p30, %s31, %s32
    %p36 = pneg %p30
    %p37 = scmp.eq.s32.totalorder %s9, 1
    %p38 = por %p36, %p37
    %p39 = scmp.ne.s32.totalorder %s31, %s34
    %p40 = scmp.eq.s32.totalorder %s9, 0
    %p41 = por %p39, %p40
    %p42 = scmp.ne.s32.totalorder %s31, %s34
    %p43 = scmp.eq.s32.totalorder %s14, 1
    %p44 = por %p42, %p43
    %p45 = scmp.ne.s32.totalorder %s34, %s35
    %p46 = scmp.eq.s32.totalorder %s14, 0
    %p47 = por %p45, %p46
    %p48 = scmp.ne.s32.totalorder %s34, %s35
    %p49 = scmp.eq.s32.totalorder %s15, 1
    %p50 = por %p48, %p49
    %p52 = scmp.ne.s32.totalorder %s35, %s51
    %p53 = scmp.eq.s32.totalorder %s15, 0
    %p54 = por %p52, %p53
    %s56 = sadd.s32 %s55, 1
    %p59 = scmp.eq.s32.totalorder %s9, 1
    %p60 = scmp.ne.s32.totalorder %s55, %s57
    %p61 = scmp.eq.s32.totalorder %s9, 0
    %p62 = por %p60, %p61
    %p63 = scmp.ne.s32.totalorder %s55, %s57
    %p64 = scmp.eq.s32.totalorder %s14, 1
    %p65 = por %p63, %p64
    %p66 = scmp.ne.s32.totalorder %s57, %s58
    %p67 = scmp.eq.s32.totalorder %s14, 0
    %p68 = por %p66, %p67
    %p69 = scmp.ne.s32.totalorder %s57, %s58
    %p70 = scmp.eq.s32.totalorder %s15, 1
    %p71 = por %p69, %p70
    %p73 = scmp.ne.s32.totalorder %s58, %s72
    %p74 = scmp.eq.s32.totalorder %s15, 0
    %p75 = por %p73, %p74
    %s77 = sadd.s32 %s76, 1
    %p80 = scmp.eq.s32.totalorder %s9, 1
    %p81 = scmp.ne.s32.totalorder %s76, %s78
    %p82 = scmp.eq.s32.totalorder %s9, 0
    %p83 = por %p81, %p82
    %p84 = scmp.ne.s32.totalorder %s76, %s78
    %p85 = scmp.eq.s32.totalorder %s14, 1
    %p86 = por %p84, %p85
    %p87 = scmp.ne.s32.totalorder %s78, %s79
    %p88 = scmp.eq.s32.totalorder %s14, 0
    %p89 = por %p87, %p88
    %p90 = scmp.ne.s32.totalorder %s78, %s79
    %p91 = scmp.eq.s32.totalorder %s15, 1
    %p92 = por %p90, %p91
    %p94 = scmp.ne.s32.totalorder %s79, %s93
    %p95 = scmp.eq.s32.totalorder %s15, 0
    %p96 = por %p94, %p95
    %s97 = ssub.s32 %s16, %s28
    %s98 = ssub.s32 %s17, %s24
    %s99 = sor.u32 %s97, %s98
    %p100 = scmp.eq.s32.totalorder %s99, 0
    %s102 = sadd.s32 %s101, 1
    %s103 = scalar_select %p100, %s101, %s102
    %p106 = pneg %p100
    %p107 = scmp.eq.s32.totalorder %s9, 1
    %p108 = por %p106, %p107
    %p109 = scmp.ne.s32.totalorder %s101, %s104
    %p110 = scmp.eq.s32.totalorder %s9, 0
    %p111 = por %p109, %p110
    %p112 = scmp.ne.s32.totalorder %s101, %s104
    %p113 = scmp.eq.s32.totalorder %s14, 1
    %p114 = por %p112, %p113
    %p115 = scmp.ne.s32.totalorder %s104, %s105
    %p116 = scmp.eq.s32.totalorder %s14, 0
    %p117 = por %p115, %p116
    %p118 = scmp.ne.s32.totalorder %s104, %s105
    %p119 = scmp.eq.s32.totalorder %s15, 1
    %p120 = por %p118, %p119
    %p122 = scmp.ne.s32.totalorder %s105, %s121
    %p123 = scmp.eq.s32.totalorder %s15, 0
    %p124 = por %p122, %p123
    %p125 = scmp.le.s32.totalorder 1, %s9
    %p126 = scmp.lt.s32.totalorder %s9, 3
    %p127 = pnand %p125, %p126
    %p128 = pneg %p127
    // Predicated region
    $region9: #{discriminator_forward.4} parent=5 // pred_check
      _
    $region10: #{discriminator_forward.4} parent=5 // pred_check_branch
      %130 = sbr.rel (%p127) target = $region12
    $region11: #{discriminator_forward.4} parent=5 // pred_region
      %s131 = ssub.s32 %s9, 1
      // Predicated region
      $region13: #{discriminator_forward.4} parent=11 // pred_check
        %p132 = pneg %p68
      $region14: #{discriminator_forward.4} parent=11 // pred_check_branch
        %134 = sbr.rel (%p132) target = $region16
      $region15: #{discriminator_forward.4} parent=11 // pred_region
        _
      $region16: #{discriminator_forward.4} parent=11 // pred_fallthru
        _
      // Predicated region
      $region17: #{discriminator_forward.4} parent=11 // pred_check
        %p135 = pneg %p89
      $region18: #{discriminator_forward.4} parent=11 // pred_check_branch
        %137 = sbr.rel (%p135) target = $region20
      $region19: #{discriminator_forward.4} parent=11 // pred_region
        _
      $region20: #{discriminator_forward.4} parent=11 // pred_fallthru
        _
    $region12: #{discriminator_forward.4} parent=5 // pred_fallthru
      _
    %p138 = scmp.lt.s32.totalorder %s9, 2
    // Predicated region
    $region21: #{discriminator_forward.4} parent=5 // pred_check
      %p139 = pneg %p138
    $region22: #{discriminator_forward.4} parent=5 // pred_check_branch
      %141 = sbr.rel (%p139) target = $region24
    $region23: #{discriminator_forward.4} parent=5 // pred_region
      // Predicated region
      $region25: #{discriminator_forward.4} parent=23 // pred_check
        %p142 = pneg %p41
      $region26: #{discriminator_forward.4} parent=23 // pred_check_branch
        %144 = sbr.rel (%p142) target = $region28
      $region27: #{discriminator_forward.4} parent=23 // pred_region
        %p145 = scmp.lt.s32.totalorder %s16, 1
        %s146 = scalar_select %p145, %s16, 1
        %s147 = smul.addr %s146, 51
        %s148 = smul.addr %s147, 4
        %s149 = scalar_lea.vmem %s0, %s148
      $region28: #{discriminator_forward.4} parent=23 // pred_fallthru
        _
    $region24: #{discriminator_forward.4} parent=5 // pred_fallthru
      _
    %p150 = scmp.le.s32.totalorder 1, %s9
    %p151 = scmp.lt.s32.totalorder %s9, 3
    %p152 = pnand %p150, %p151
    %p153 = pneg %p152
    // Predicated region
    $region29: #{discriminator_forward.4} parent=5 // pred_check
      _
    $region30: #{discriminator_forward.4} parent=5 // pred_check_branch
      %155 = sbr.rel (%p152) target = $region32
    $region31: #{discriminator_forward.4} parent=5 // pred_region
      %s156 = ssub.s32 %s9, 1
      %p157 = scmp.lt.s32.totalorder %s18, 1
      %s158 = scalar_select %p157, %s18, 1
      %s159 = smul.addr %s158, 51
      %s160 = smul.addr %s159, 4
      %s161 = scalar_lea.vmem %s0, %s160
      %p162 = pneg %p47
      %p163 = pneg %p44
      %p164 = pneg %p68
      %p165 = pneg %p65
      %p166 = pneg %p89
      %p167 = pneg %p86
      %p168 = pneg %p117
      %p169 = pneg %p114
      %s170 = smul.u32 32, %s19
      %p171 = scmp.lt.s32.totalorder %s18, 1
      %s172 = scalar_select %p171, %s18, 1
      %p173 = scmp.lt.s32.totalorder %s170, 31
      %s174 = scalar_select %p173, %s170, 31
      %s175 = smul.addr %s172, 32
      %s176 = sadd.s32 %s174, %s175
      %s177 = smul.addr %s176, 4
      %s178 = scalar_lea.vmem %s3, %s177
      %p179 = scmp.lt.s32.totalorder %s18, 1
      %s180 = scalar_select %p179, %s18, 1
      %s181 = smul.addr %s180, 51
      %s182 = smul.addr %s181, 4
      %s183 = scalar_lea.vmem %s0, %s182
      %s184 = smul.u32 32, %s19
      %p185 = scmp.lt.s32.totalorder %s18, 1
      %s186 = scalar_select %p185, %s18, 1
      %p187 = scmp.lt.s32.totalorder %s184, 31
      %s188 = scalar_select %p187, %s184, 31
      %s189 = smul.addr %s186, 32
      %s190 = sadd.s32 %s188, %s189
      %s191 = smul.addr %s190, 4
      %s192 = scalar_lea.vmem %s3, %s191
      %s193 = smul.u32 32, %s19
      %v195 = vld [vmem:[%s183] sm:$0xf]
      %v196 = vld [vmem:[%s183 + $0x4] sm:$0xf]
      %v197 = vld [vmem:[%s183 + $0xc] sm:$0xf]
      %v198 = vld [vmem:[%s183 + $0x10] sm:$0xf]
      %v199 = vld [vmem:[%s183 + $0x18] sm:$0xf]
      %v200 = vld [vmem:[%s183 + $0x1c] sm:$0xf]
      %v201 = vld [vmem:[%s183 + $0x24] sm:$0xf]
      %v202 = vld [vmem:[%s183 + $0x28] sm:$0xf]
      %v203 = vld [vmem:[%s183 + $0x30] sm:$0xf]
      %v204 = vld [vmem:[%s183 + $0x34] sm:$0xf]
      %v205 = vld [vmem:[%s183 + $0x3c] sm:$0xf]
      %v206 = vld [vmem:[%s183 + $0x40] sm:$0xf]
      %v207 = vld [vmem:[%s183 + $0x48] sm:$0xf]
      %v208 = vld [vmem:[%s183 + $0x4c] sm:$0xf]
      %v209 = vld [vmem:[%s183 + $0x54] sm:$0xf]
      %v210 = vld [vmem:[%s183 + $0x58] sm:$0xf]
      %v211 = vld [vmem:[%s183 + $0x60] sm:$0xf]
      %v212 = vld [vmem:[%s183 + $0x64] sm:$0xf]
      %v213 = vld [vmem:[%s183 + $0x6c] sm:$0xf]
      %v214 = vld [vmem:[%s183 + $0x70] sm:$0xf]
      %v215 = vld [vmem:[%s183 + $0x78] sm:$0xf]
      %v216 = vld [vmem:[%s183 + $0x7c] sm:$0xf]
      %v217 = vld [vmem:[%s183 + $0x84] sm:$0xf]
      %v218 = vld [vmem:[%s183 + $0x88] sm:$0xf]
      %v219 = vld [vmem:[%s183 + $0x90] sm:$0xf]
      %v220 = vld [vmem:[%s183 + $0x94] sm:$0xf]
      %v221 = vld [vmem:[%s183 + $0x9c] sm:$0xf]
      %v222 = vld [vmem:[%s183 + $0xa0] sm:$0xf]
      %v223 = vld [vmem:[%s183 + $0xa8] sm:$0xf]
      %v224 = vld [vmem:[%s183 + $0xac] sm:$0xf]
      %v225 = vld [vmem:[%s183 + $0xb4] sm:$0xf]
      %v226 = vld [vmem:[%s183 + $0xb8] sm:$0xf]
      %v227 = vld [vmem:[%s1] sm:$0x3]
      %v228 = vld [vmem:[%s183 + $0x8] sm:$0x1]
      %v229 = vld [vmem:[%s183 + $0x14] sm:$0x1]
      %v230 = vld [vmem:[%s183 + $0x20] sm:$0x1]
      %v231 = vld [vmem:[%s183 + $0x2c] sm:$0x1]
      %v232 = vld [vmem:[%s183 + $0x38] sm:$0x1]
      %v233 = vld [vmem:[%s183 + $0x44] sm:$0x1]
      %v234 = vld [vmem:[%s183 + $0x50] sm:$0x1]
      %v235 = vld [vmem:[%s183 + $0x5c] sm:$0x1]
      %v236 = vld [vmem:[%s183 + $0x68] sm:$0x1]
      %v237 = vld [vmem:[%s183 + $0x74] sm:$0x1]
      %v238 = vld [vmem:[%s183 + $0x80] sm:$0x1]
      %v239 = vld [vmem:[%s183 + $0x8c] sm:$0x1]
      %v240 = vld [vmem:[%s183 + $0x98] sm:$0x1]
      %v241 = vld [vmem:[%s183 + $0xa4] sm:$0x1]
      %v242 = vld [vmem:[%s183 + $0xb0] sm:$0x1]
      %v243 = vld [vmem:[%s183 + $0xbc] sm:$0x1]
      %vm244 = vsmask.f32 3328
      %vm245 = vsmask.f32 7440
      %vm246 = vmor %vm244, %vm245
      %v248 = vshrl.u32 %v195, 16
      %v250 = vrot.slane %v248, 4
      %v251 = vshll.u32 %v195, 16
      %v253 = vrot.slane %v251, 5
      %v254 = vor.u32 %v250, %v253
      %v255 = vrot.slane %v254, 4
      %v257 = vshll.u32 %v196, 16
      %v259 = vrot.slane %v257, 5
      %v260 = vsel %vm246, %v255, %v259
      %v261 = vshrl.u32 %v196, 16
      %v263 = vrot.slane %v261, 4
      %v264 = vor.u32 %v263, %v259
      %v265 = vrot.slane %v264, 4
      %v267 = vshll.u32 %v228, 16
      %v269 = vrot.slane %v267, 5
      %v270 = vsel %vm246, %v265, %v269
      %v272 = vshrl.u32 %v197, 16
      %v274 = vrot.slane %v272, 4
      %v275 = vshll.u32 %v197, 16
      %v277 = vrot.slane %v275, 5
      %v278 = vor.u32 %v274, %v277
      %v279 = vrot.slane %v278, 4
      %v281 = vshll.u32 %v198, 16
      %v283 = vrot.slane %v281, 5
      %v284 = vsel %vm246, %v279, %v283
      %v285 = vshrl.u32 %v198, 16
      %v287 = vrot.slane %v285, 4
      %v288 = vor.u32 %v287, %v283
      %v289 = vrot.slane %v288, 4
      %v291 = vshll.u32 %v229, 16
      %v293 = vrot.slane %v291, 5
      %v294 = vsel %vm246, %v289, %v293
      %v296 = vshrl.u32 %v199, 16
      %v298 = vrot.slane %v296, 4
      %v299 = vshll.u32 %v199, 16
      %v301 = vrot.slane %v299, 5
      %v302 = vor.u32 %v298, %v301
      %v303 = vrot.slane %v302, 4
      %v305 = vshll.u32 %v200, 16
      %v307 = vrot.slane %v305, 5
      %v308 = vsel %vm246, %v303, %v307
      %v309 = vshrl.u32 %v200, 16
      %v311 = vrot.slane %v309, 4
      %v312 = vor.u32 %v311, %v307
      %v313 = vrot.slane %v312, 4
      %v315 = vshll.u32 %v230, 16
      %v317 = vrot.slane %v315, 5
      %v318 = vsel %vm246, %v313, %v317
      %v320 = vshrl.u32 %v201, 16
      %v322 = vrot.slane %v320, 4
      %v323 = vshll.u32 %v201, 16
      %v325 = vrot.slane %v323, 5
      %v326 = vor.u32 %v322, %v325
      %v327 = vrot.slane %v326, 4
      %v329 = vshll.u32 %v202, 16
      %v331 = vrot.slane %v329, 5
      %v332 = vsel %vm246, %v327, %v331
      %v333 = vshrl.u32 %v202, 16
      %v335 = vrot.slane %v333, 4
      %v336 = vor.u32 %v335, %v331
      %v337 = vrot.slane %v336, 4
      %v339 = vshll.u32 %v231, 16
      %v341 = vrot.slane %v339, 5
      %v342 = vsel %vm246, %v337, %v341
      %v344 = vshrl.u32 %v203, 16
      %v346 = vrot.slane %v344, 4
      %v347 = vshll.u32 %v203, 16
      %v349 = vrot.slane %v347, 5
      %v350 = vor.u32 %v346, %v349
      %v351 = vrot.slane %v350, 4
      %v353 = vshll.u32 %v204, 16
      %v355 = vrot.slane %v353, 5
      %v356 = vsel %vm246, %v351, %v355
      %v357 = vshrl.u32 %v204, 16
      %v359 = vrot.slane %v357, 4
      %v360 = vor.u32 %v359, %v355
      %v361 = vrot.slane %v360, 4
      %v363 = vshll.u32 %v232, 16
      %v365 = vrot.slane %v363, 5
      %v366 = vsel %vm246, %v361, %v365
      %v368 = vshrl.u32 %v205, 16
      %v370 = vrot.slane %v368, 4
      %v371 = vshll.u32 %v205, 16
      %v373 = vrot.slane %v371, 5
      %v374 = vor.u32 %v370, %v373
      %v375 = vrot.slane %v374, 4
      %v377 = vshll.u32 %v206, 16
      %v379 = vrot.slane %v377, 5
      %v380 = vsel %vm246, %v375, %v379
      %v381 = vshrl.u32 %v206, 16
      %v383 = vrot.slane %v381, 4
      %v384 = vor.u32 %v383, %v379
      %v385 = vrot.slane %v384, 4
      %v387 = vshll.u32 %v233, 16
      %v389 = vrot.slane %v387, 5
      %v390 = vsel %vm246, %v385, %v389
      %v392 = vshrl.u32 %v207, 16
      %v394 = vrot.slane %v392, 4
      %v395 = vshll.u32 %v207, 16
      %v397 = vrot.slane %v395, 5
      %v398 = vor.u32 %v394, %v397
      %v399 = vrot.slane %v398, 4
      %v401 = vshll.u32 %v208, 16
      %v403 = vrot.slane %v401, 5
      %v404 = vsel %vm246, %v399, %v403
      %v405 = vshrl.u32 %v208, 16
      %v407 = vrot.slane %v405, 4
      %v408 = vor.u32 %v407, %v403
      %v409 = vrot.slane %v408, 4
      %v411 = vshll.u32 %v234, 16
      %v413 = vrot.slane %v411, 5
      %v414 = vsel %vm246, %v409, %v413
      %v416 = vshrl.u32 %v209, 16
      %v418 = vrot.slane %v416, 4
      %v419 = vshll.u32 %v209, 16
      %v421 = vrot.slane %v419, 5
      %v422 = vor.u32 %v418, %v421
      %v423 = vrot.slane %v422, 4
      %v425 = vshll.u32 %v210, 16
      %v427 = vrot.slane %v425, 5
      %v428 = vsel %vm246, %v423, %v427
      %v429 = vshrl.u32 %v210, 16
      %v431 = vrot.slane %v429, 4
      %v432 = vor.u32 %v431, %v427
      %v433 = vrot.slane %v432, 4
      %v435 = vshll.u32 %v235, 16
      %v437 = vrot.slane %v435, 5
      %v438 = vsel %vm246, %v433, %v437
      %v440 = vshrl.u32 %v211, 16
      %v442 = vrot.slane %v440, 4
      %v443 = vshll.u32 %v211, 16
      %v445 = vrot.slane %v443, 5
      %v446 = vor.u32 %v442, %v445
      %v447 = vrot.slane %v446, 4
      %v449 = vshll.u32 %v212, 16
      %v451 = vrot.slane %v449, 5
      %v452 = vsel %vm246, %v447, %v451
      %v453 = vshrl.u32 %v212, 16
      %v455 = vrot.slane %v453, 4
      %v456 = vor.u32 %v455, %v451
      %v457 = vrot.slane %v456, 4
      %v459 = vshll.u32 %v236, 16
      %v461 = vrot.slane %v459, 5
      %v462 = vsel %vm246, %v457, %v461
      %v464 = vshrl.u32 %v213, 16
      %v466 = vrot.slane %v464, 4
      %v467 = vshll.u32 %v213, 16
      %v469 = vrot.slane %v467, 5
      %v470 = vor.u32 %v466, %v469
      %v471 = vrot.slane %v470, 4
      %v473 = vshll.u32 %v214, 16
      %v475 = vrot.slane %v473, 5
      %v476 = vsel %vm246, %v471, %v475
      %v477 = vshrl.u32 %v214, 16
      %v479 = vrot.slane %v477, 4
      %v480 = vor.u32 %v479, %v475
      %v481 = vrot.slane %v480, 4
      %v483 = vshll.u32 %v237, 16
      %v485 = vrot.slane %v483, 5
      %v486 = vsel %vm246, %v481, %v485
      %v488 = vshrl.u32 %v215, 16
      %v490 = vrot.slane %v488, 4
      %v491 = vshll.u32 %v215, 16
      %v493 = vrot.slane %v491, 5
      %v494 = vor.u32 %v490, %v493
      %v495 = vrot.slane %v494, 4
      %v497 = vshll.u32 %v216, 16
      %v499 = vrot.slane %v497, 5
      %v500 = vsel %vm246, %v495, %v499
      %v501 = vshrl.u32 %v216, 16
      %v503 = vrot.slane %v501, 4
      %v504 = vor.u32 %v503, %v499
      %v505 = vrot.slane %v504, 4
      %v507 = vshll.u32 %v238, 16
      %v509 = vrot.slane %v507, 5
      %v510 = vsel %vm246, %v505, %v509
      %v512 = vshrl.u32 %v217, 16
      %v514 = vrot.slane %v512, 4
      %v515 = vshll.u32 %v217, 16
      %v517 = vrot.slane %v515, 5
      %v518 = vor.u32 %v514, %v517
      %v519 = vrot.slane %v518, 4
      %v521 = vshll.u32 %v218, 16
      %v523 = vrot.slane %v521, 5
      %v524 = vsel %vm246, %v519, %v523
      %v525 = vshrl.u32 %v218, 16
      %v527 = vrot.slane %v525, 4
      %v528 = vor.u32 %v527, %v523
      %v529 = vrot.slane %v528, 4
      %v531 = vshll.u32 %v239, 16
      %v533 = vrot.slane %v531, 5
      %v534 = vsel %vm246, %v529, %v533
      %v536 = vshrl.u32 %v219, 16
      %v538 = vrot.slane %v536, 4
      %v539 = vshll.u32 %v219, 16
      %v541 = vrot.slane %v539, 5
      %v542 = vor.u32 %v538, %v541
      %v543 = vrot.slane %v542, 4
      %v545 = vshll.u32 %v220, 16
      %v547 = vrot.slane %v545, 5
      %v548 = vsel %vm246, %v543, %v547
      %v549 = vshrl.u32 %v220, 16
      %v551 = vrot.slane %v549, 4
      %v552 = vor.u32 %v551, %v547
      %v553 = vrot.slane %v552, 4
      %v555 = vshll.u32 %v240, 16
      %v557 = vrot.slane %v555, 5
      %v558 = vsel %vm246, %v553, %v557
      %v560 = vshrl.u32 %v221, 16
      %v562 = vrot.slane %v560, 4
      %v563 = vshll.u32 %v221, 16
      %v565 = vrot.slane %v563, 5
      %v566 = vor.u32 %v562, %v565
      %v567 = vrot.slane %v566, 4
      %v569 = vshll.u32 %v222, 16
      %v571 = vrot.slane %v569, 5
      %v572 = vsel %vm246, %v567, %v571
      %v573 = vshrl.u32 %v222, 16
      %v575 = vrot.slane %v573, 4
      %v576 = vor.u32 %v575, %v571
      %v577 = vrot.slane %v576, 4
      %v579 = vshll.u32 %v241, 16
      %v581 = vrot.slane %v579, 5
      %v582 = vsel %vm246, %v577, %v581
      %v584 = vshrl.u32 %v223, 16
      %v586 = vrot.slane %v584, 4
      %v587 = vshll.u32 %v223, 16
      %v589 = vrot.slane %v587, 5
      %v590 = vor.u32 %v586, %v589
      %v591 = vrot.slane %v590, 4
      %v593 = vshll.u32 %v224, 16
      %v595 = vrot.slane %v593, 5
      %v596 = vsel %vm246, %v591, %v595
      %v597 = vshrl.u32 %v224, 16
      %v599 = vrot.slane %v597, 4
      %v600 = vor.u32 %v599, %v595
      %v601 = vrot.slane %v600, 4
      %v603 = vshll.u32 %v242, 16
      %v605 = vrot.slane %v603, 5
      %v606 = vsel %vm246, %v601, %v605
      %v608 = vshrl.u32 %v225, 16
      %v610 = vrot.slane %v608, 4
      %v611 = vshll.u32 %v225, 16
      %v613 = vrot.slane %v611, 5
      %v614 = vor.u32 %v610, %v613
      %v615 = vrot.slane %v614, 4
      %v617 = vshll.u32 %v226, 16
      %v619 = vrot.slane %v617, 5
      %v620 = vsel %vm246, %v615, %v619
      %v621 = vshrl.u32 %v226, 16
      %v623 = vrot.slane %v621, 4
      %v624 = vor.u32 %v623, %v619
      %v625 = vrot.slane %v624, 4
      %v627 = vshll.u32 %v243, 16
      %v629 = vrot.slane %v627, 5
      %v630 = vsel %vm246, %v625, %v629
      %s631 = scalar_lea.vmem %s1, 2
      %v632 = vld [vmem:[%s631] sm:$0x3]
      %v633 = vunpack.c.l.b16 %v260
      %v634 = vunpack.c.l.b16 %v270
      %v635 = vunpack.c.l.b16 %v284
      %v636 = vunpack.c.l.b16 %v294
      %v637 = vunpack.c.l.b16 %v308
      %v638 = vunpack.c.l.b16 %v318
      %v639 = vunpack.c.l.b16 %v332
      %v640 = vunpack.c.l.b16 %v342
      %v641 = vunpack.c.l.b16 %v356
      %v642 = vunpack.c.l.b16 %v366
      %v643 = vunpack.c.l.b16 %v380
      %v644 = vunpack.c.l.b16 %v390
      %v645 = vunpack.c.l.b16 %v404
      %v646 = vunpack.c.l.b16 %v414
      %v647 = vunpack.c.l.b16 %v428
      %v648 = vunpack.c.l.b16 %v438
      %v649 = vunpack.c.l.b16 %v452
      %v650 = vunpack.c.l.b16 %v462
      %v651 = vunpack.c.l.b16 %v476
      %v652 = vunpack.c.l.b16 %v486
      %v653 = vunpack.c.l.b16 %v500
      %v654 = vunpack.c.l.b16 %v510
      %v655 = vunpack.c.l.b16 %v524
      %v656 = vunpack.c.l.b16 %v534
      %v657 = vunpack.c.l.b16 %v548
      %v658 = vunpack.c.l.b16 %v558
      %v659 = vunpack.c.l.b16 %v572
      %v660 = vunpack.c.l.b16 %v582
      %v661 = vunpack.c.l.b16 %v596
      %v662 = vunpack.c.l.b16 %v606
      %v663 = vunpack.c.l.b16 %v620
      %v664 = vunpack.c.l.b16 %v630
      %v665 = vpack.c.b16 %v634, %v633
      %v666 = vpack.c.b16 %v636, %v635
      %v667 = vpack.c.b16 %v638, %v637
      %v668 = vpack.c.b16 %v640, %v639
      %v669 = vpack.c.b16 %v642, %v641
      %v670 = vpack.c.b16 %v644, %v643
      %v671 = vpack.c.b16 %v646, %v645
      %v672 = vpack.c.b16 %v648, %v647
      %v673 = vpack.c.b16 %v650, %v649
      %v674 = vpack.c.b16 %v652, %v651
      %v675 = vpack.c.b16 %v654, %v653
      %v676 = vpack.c.b16 %v656, %v655
      %v677 = vpack.c.b16 %v658, %v657
      %v678 = vpack.c.b16 %v660, %v659
      %v679 = vpack.c.b16 %v662, %v661
      %v680 = vpack.c.b16 %v664, %v663
      %vm681 = vcmask 31744
      %v683 = vsel %vm681, %v665, 0
      %v686 = vsel %vm681, %v666, 0
      %v689 = vsel %vm681, %v667, 0
      %v692 = vsel %vm681, %v668, 0
      %v695 = vsel %vm681, %v669, 0
      %v698 = vsel %vm681, %v670, 0
      %v701 = vsel %vm681, %v671, 0
      %v704 = vsel %vm681, %v672, 0
      %v707 = vsel %vm681, %v673, 0
      %v710 = vsel %vm681, %v674, 0
      %v713 = vsel %vm681, %v675, 0
      %v716 = vsel %vm681, %v676, 0
      %v719 = vsel %vm681, %v677, 0
      %v722 = vsel %vm681, %v678, 0
      %v725 = vsel %vm681, %v679, 0
      %v728 = vsel %vm681, %v680, 0
      %vm730 = vcmask 1041408
      %v732 = vsel %vm730, %v632, 0
      %734 = vmatprep.subr.bf16.mxu0 0
      %735 = vmatpush1.bf16.msra.mxu0 0
      %736 = vmatprep.subr.bf16.mxu0 0
      %737 = vmatpush1.bf16.msra.mxu0 0
      %738 = vmatprep.subr.bf16.mxu0 0
      %739 = vmatpush1.bf16.msra.mxu0 0
      %740 = vmatprep.subr.bf16.mxu0 0
      %741 = vmatpush1.bf16.msra.mxu0 0
      %742 = vmatprep.subr.bf16.mxu0 0
      %743 = vmatpush1.bf16.msra.mxu0 0
      %744 = vmatprep.subr.bf16.mxu0 0
      %745 = vmatpush1.bf16.msra.mxu0 0
      %746 = vmatprep.subr.bf16.mxu0 0
      %747 = vmatpush1.bf16.msra.mxu0 0
      %748 = vmatprep.subr.bf16.mxu0 0
      %749 = vmatpush1.bf16.msra.mxu0 %v732
      %750 = vmatprep.subr.bf16.mxu0 0
      %751 = vmatpush2.bf16.msra.mxu0 0
      %752 = vmatprep.subr.bf16.mxu0 0
      %753 = vmatpush2.bf16.msra.mxu0 0
      %754 = vmatprep.subr.bf16.mxu0 0
      %755 = vmatpush2.bf16.msra.mxu0 0
      %756 = vmatprep.subr.bf16.mxu0 0
      %757 = vmatpush2.bf16.msra.mxu0 0
      %758 = vmatprep.subr.bf16.mxu0 0
      %759 = vmatpush2.bf16.msra.mxu0 0
      %760 = vmatprep.subr.bf16.mxu0 0
      %761 = vmatpush2.bf16.msra.mxu0 0
      %762 = vmatprep.subr.bf16.mxu0 0
      %763 = vmatpush2.bf16.msra.mxu0 0
      %764 = vmatprep.subr.bf16.mxu0 0
      %765 = vmatpush2.bf16.msra.mxu0 0
      %766 = vmatprep.mubr.bf16.mxu0 0
      %767 = vmatmul.mubr.bf16.gmra.mxu0 %v683
      %v768 = vpop.f32.mrf.mxu0
      %v769 = vadd.f32 0.0, %v768
      %v770 = vpop.f32.mrf.mxu0
      %v771 = vpop.f32.mrf.mxu0
      %v772 = vadd.f32 0.0, %v771
      %v773 = vpop.f32.mrf.mxu0
      %774 = vmatprep.mubr.bf16.mxu0 0
      %775 = vmatmul.mubr.bf16.gmra.mxu0 %v686
      %v776 = vpop.f32.mrf.mxu0
      %v777 = vadd.f32 0.0, %v776
      %v778 = vpop.f32.mrf.mxu0
      %v779 = vpop.f32.mrf.mxu0
      %v780 = vadd.f32 0.0, %v779
      %v781 = vpop.f32.mrf.mxu0
      %782 = vmatprep.mubr.bf16.mxu0 0
      %783 = vmatmul.mubr.bf16.gmra.mxu0 %v689
      %v784 = vpop.f32.mrf.mxu0
      %v785 = vadd.f32 0.0, %v784
      %v786 = vpop.f32.mrf.mxu0
      %v787 = vpop.f32.mrf.mxu0
      %v788 = vadd.f32 0.0, %v787
      %v789 = vpop.f32.mrf.mxu0
      %790 = vmatprep.mubr.bf16.mxu0 0
      %791 = vmatmul.mubr.bf16.gmra.mxu0 %v692
      %v792 = vpop.f32.mrf.mxu0
      %v793 = vadd.f32 0.0, %v792
      %v794 = vpop.f32.mrf.mxu0
      %v795 = vpop.f32.mrf.mxu0
      %v796 = vadd.f32 0.0, %v795
      %v797 = vpop.f32.mrf.mxu0
      %798 = vmatprep.mubr.bf16.mxu0 0
      %799 = vmatmul.mubr.bf16.gmra.mxu0 %v695
      %v800 = vpop.f32.mrf.mxu0
      %v801 = vadd.f32 0.0, %v800
      %v802 = vpop.f32.mrf.mxu0
      %v803 = vpop.f32.mrf.mxu0
      %v804 = vadd.f32 0.0, %v803
      %v805 = vpop.f32.mrf.mxu0
      %806 = vmatprep.mubr.bf16.mxu0 0
      %807 = vmatmul.mubr.bf16.gmra.mxu0 %v698
      %v808 = vpop.f32.mrf.mxu0
      %v809 = vadd.f32 0.0, %v808
      %v810 = vpop.f32.mrf.mxu0
      %v811 = vpop.f32.mrf.mxu0
      %v812 = vadd.f32 0.0, %v811
      %v813 = vpop.f32.mrf.mxu0
      %814 = vmatprep.mubr.bf16.mxu0 0
      %815 = vmatmul.mubr.bf16.gmra.mxu0 %v701
      %v816 = vpop.f32.mrf.mxu0
      %v817 = vadd.f32 0.0, %v816
      %v818 = vpop.f32.mrf.mxu0
      %v819 = vpop.f32.mrf.mxu0
      %v820 = vadd.f32 0.0, %v819
      %v821 = vpop.f32.mrf.mxu0
      %822 = vmatprep.mubr.bf16.mxu0 0
      %823 = vmatmul.mubr.bf16.gmra.mxu0 %v704
      %v824 = vpop.f32.mrf.mxu0
      %v825 = vadd.f32 0.0, %v824
      %v826 = vpop.f32.mrf.mxu0
      %v827 = vpop.f32.mrf.mxu0
      %v828 = vadd.f32 0.0, %v827
      %v829 = vpop.f32.mrf.mxu0
      %830 = vmatprep.mubr.bf16.mxu0 0
      %831 = vmatmul.mubr.bf16.gmra.mxu0 %v707
      %v832 = vpop.f32.mrf.mxu0
      %v833 = vadd.f32 0.0, %v832
      %v834 = vpop.f32.mrf.mxu0
      %v835 = vpop.f32.mrf.mxu0
      %v836 = vadd.f32 0.0, %v835
      %v837 = vpop.f32.mrf.mxu0
      %838 = vmatprep.mubr.bf16.mxu0 0
      %839 = vmatmul.mubr.bf16.gmra.mxu0 %v710
      %v840 = vpop.f32.mrf.mxu0
      %v841 = vadd.f32 0.0, %v840
      %v842 = vpop.f32.mrf.mxu0
      %v843 = vpop.f32.mrf.mxu0
      %v844 = vadd.f32 0.0, %v843
      %v845 = vpop.f32.mrf.mxu0
      %846 = vmatprep.mubr.bf16.mxu0 0
      %847 = vmatmul.mubr.bf16.gmra.mxu0 %v713
      %v848 = vpop.f32.mrf.mxu0
      %v849 = vadd.f32 0.0, %v848
      %v850 = vpop.f32.mrf.mxu0
      %v851 = vpop.f32.mrf.mxu0
      %v852 = vadd.f32 0.0, %v851
      %v853 = vpop.f32.mrf.mxu0
      %854 = vmatprep.mubr.bf16.mxu0 0
      %855 = vmatmul.mubr.bf16.gmra.mxu0 %v716
      %v856 = vpop.f32.mrf.mxu0
      %v857 = vadd.f32 0.0, %v856
      %v858 = vpop.f32.mrf.mxu0
      %v859 = vpop.f32.mrf.mxu0
      %v860 = vadd.f32 0.0, %v859
      %v861 = vpop.f32.mrf.mxu0
      %862 = vmatprep.mubr.bf16.mxu0 0
      %863 = vmatmul.mubr.bf16.gmra.mxu0 %v719
      %v864 = vpop.f32.mrf.mxu0
      %v865 = vadd.f32 0.0, %v864
      %v866 = vpop.f32.mrf.mxu0
      %v867 = vpop.f32.mrf.mxu0
      %v868 = vadd.f32 0.0, %v867
      %v869 = vpop.f32.mrf.mxu0
      %870 = vmatprep.mubr.bf16.mxu0 0
      %871 = vmatmul.mubr.bf16.gmra.mxu0 %v722
      %v872 = vpop.f32.mrf.mxu0
      %v873 = vadd.f32 0.0, %v872
      %v874 = vpop.f32.mrf.mxu0
      %v875 = vpop.f32.mrf.mxu0
      %v876 = vadd.f32 0.0, %v875
      %v877 = vpop.f32.mrf.mxu0
      %878 = vmatprep.mubr.bf16.mxu0 0
      %879 = vmatmul.mubr.bf16.gmra.mxu0 %v725
      %v880 = vpop.f32.mrf.mxu0
      %v881 = vadd.f32 0.0, %v880
      %v882 = vpop.f32.mrf.mxu0
      %v883 = vpop.f32.mrf.mxu0
      %v884 = vadd.f32 0.0, %v883
      %v885 = vpop.f32.mrf.mxu0
      %886 = vmatprep.mubr.bf16.mxu0 0
      %887 = vmatmul.mubr.bf16.gmra.mxu0 %v728
      %v888 = vpop.f32.mrf.mxu0
      %v889 = vadd.f32 0.0, %v888
      %v890 = vpop.f32.mrf.mxu0
      %v891 = vpop.f32.mrf.mxu0
      %v892 = vadd.f32 0.0, %v891
      %v893 = vpop.f32.mrf.mxu0
      %894 = vdwg.mxu0
      %v927 = vunpack.c.l.b16 %v195
      %v928 = vunpack.c.l.b16 %v196
      %v929 = vunpack.c.l.b16 %v197
      %v930 = vunpack.c.l.b16 %v198
      %v931 = vunpack.c.l.b16 %v199
      %v932 = vunpack.c.l.b16 %v200
      %v933 = vunpack.c.l.b16 %v201
      %v934 = vunpack.c.l.b16 %v202
      %v935 = vunpack.c.l.b16 %v203
      %v936 = vunpack.c.l.b16 %v204
      %v937 = vunpack.c.l.b16 %v205
      %v938 = vunpack.c.l.b16 %v206
      %v939 = vunpack.c.l.b16 %v207
      %v940 = vunpack.c.l.b16 %v208
      %v941 = vunpack.c.l.b16 %v209
      %v942 = vunpack.c.l.b16 %v210
      %v943 = vunpack.c.l.b16 %v211
      %v944 = vunpack.c.l.b16 %v212
      %v945 = vunpack.c.l.b16 %v213
      %v946 = vunpack.c.l.b16 %v214
      %v947 = vunpack.c.l.b16 %v215
      %v948 = vunpack.c.l.b16 %v216
      %v949 = vunpack.c.l.b16 %v217
      %v950 = vunpack.c.l.b16 %v218
      %v951 = vunpack.c.l.b16 %v219
      %v952 = vunpack.c.l.b16 %v220
      %v953 = vunpack.c.l.b16 %v221
      %v954 = vunpack.c.l.b16 %v222
      %v955 = vunpack.c.l.b16 %v223
      %v956 = vunpack.c.l.b16 %v224
      %v957 = vunpack.c.l.b16 %v225
      %v958 = vunpack.c.l.b16 %v226
      %v959 = vpack.c.b16 %v928, %v927
      %v960 = vpack.c.b16 %v930, %v929
      %v961 = vpack.c.b16 %v932, %v931
      %v962 = vpack.c.b16 %v934, %v933
      %v963 = vpack.c.b16 %v936, %v935
      %v964 = vpack.c.b16 %v938, %v937
      %v965 = vpack.c.b16 %v940, %v939
      %v966 = vpack.c.b16 %v942, %v941
      %v967 = vpack.c.b16 %v944, %v943
      %v968 = vpack.c.b16 %v946, %v945
      %v969 = vpack.c.b16 %v948, %v947
      %v970 = vpack.c.b16 %v950, %v949
      %v971 = vpack.c.b16 %v952, %v951
      %v972 = vpack.c.b16 %v954, %v953
      %v973 = vpack.c.b16 %v956, %v955
      %v974 = vpack.c.b16 %v958, %v957
      %v976 = vsel %vm681, %v959, 0
      %v979 = vsel %vm681, %v960, 0
      %v982 = vsel %vm681, %v961, 0
      %v985 = vsel %vm681, %v962, 0
      %v988 = vsel %vm681, %v963, 0
      %v991 = vsel %vm681, %v964, 0
      %v994 = vsel %vm681, %v965, 0
      %v997 = vsel %vm681, %v966, 0
      %v1000 = vsel %vm681, %v967, 0
      %v1003 = vsel %vm681, %v968, 0
      %v1006 = vsel %vm681, %v969, 0
      %v1009 = vsel %vm681, %v970, 0
      %v1012 = vsel %vm681, %v971, 0
      %v1015 = vsel %vm681, %v972, 0
      %v1018 = vsel %vm681, %v973, 0
      %v1021 = vsel %vm681, %v974, 0
      %v1024 = vsel %vm730, %v227, 0
      %1026 = vmatprep.subr.bf16.mxu0 0
      %1027 = vmatpush1.bf16.msra.mxu0 0
      %1028 = vmatprep.subr.bf16.mxu0 0
      %1029 = vmatpush1.bf16.msra.mxu0 0
      %1030 = vmatprep.subr.bf16.mxu0 0
      %1031 = vmatpush1.bf16.msra.mxu0 0
      %1032 = vmatprep.subr.bf16.mxu0 0
      %1033 = vmatpush1.bf16.msra.mxu0 0
      %1034 = vmatprep.subr.bf16.mxu0 0
      %1035 = vmatpush1.bf16.msra.mxu0 0
      %1036 = vmatprep.subr.bf16.mxu0 0
      %1037 = vmatpush1.bf16.msra.mxu0 0
      %1038 = vmatprep.subr.bf16.mxu0 0
      %1039 = vmatpush1.bf16.msra.mxu0 0
      %1040 = vmatprep.subr.bf16.mxu0 0
      %1041 = vmatpush1.bf16.msra.mxu0 %v1024
      %1042 = vmatprep.subr.bf16.mxu0 0
      %1043 = vmatpush2.bf16.msra.mxu0 0
      %1044 = vmatprep.subr.bf16.mxu0 0
      %1045 = vmatpush2.bf16.msra.mxu0 0
      %1046 = vmatprep.subr.bf16.mxu0 0
      %1047 = vmatpush2.bf16.msra.mxu0 0
      %1048 = vmatprep.subr.bf16.mxu0 0
      %1049 = vmatpush2.bf16.msra.mxu0 0
      %1050 = vmatprep.subr.bf16.mxu0 0
      %1051 = vmatpush2.bf16.msra.mxu0 0
      %1052 = vmatprep.subr.bf16.mxu0 0
      %1053 = vmatpush2.bf16.msra.mxu0 0
      %1054 = vmatprep.subr.bf16.mxu0 0
      %1055 = vmatpush2.bf16.msra.mxu0 0
      %1056 = vmatprep.subr.bf16.mxu0 0
      %1057 = vmatpush2.bf16.msra.mxu0 0
      %1058 = vmatprep.mubr.bf16.mxu0 0
      %1059 = vmatmul.mubr.bf16.gmra.mxu0 %v976
      %v1060 = vpop.f32.mrf.mxu0
      %v1061 = vadd.f32 %v769, %v1060
      %v1062 = vpop.f32.mrf.mxu0
      %v1063 = vpop.f32.mrf.mxu0
      %v1064 = vadd.f32 %v772, %v1063
      %v1065 = vpop.f32.mrf.mxu0
      %1066 = vmatprep.mubr.bf16.mxu0 0
      %1067 = vmatmul.mubr.bf16.gmra.mxu0 %v979
      %v1068 = vpop.f32.mrf.mxu0
      %v1069 = vadd.f32 %v777, %v1068
      %v1070 = vpop.f32.mrf.mxu0
      %v1071 = vpop.f32.mrf.mxu0
      %v1072 = vadd.f32 %v780, %v1071
      %v1073 = vpop.f32.mrf.mxu0
      %1074 = vmatprep.mubr.bf16.mxu0 0
      %1075 = vmatmul.mubr.bf16.gmra.mxu0 %v982
      %v1076 = vpop.f32.mrf.mxu0
      %v1077 = vadd.f32 %v785, %v1076
      %v1078 = vpop.f32.mrf.mxu0
      %v1079 = vpop.f32.mrf.mxu0
      %v1080 = vadd.f32 %v788, %v1079
      %v1081 = vpop.f32.mrf.mxu0
      %1082 = vmatprep.mubr.bf16.mxu0 0
      %1083 = vmatmul.mubr.bf16.gmra.mxu0 %v985
      %v1084 = vpop.f32.mrf.mxu0
      %v1085 = vadd.f32 %v793, %v1084
      %v1086 = vpop.f32.mrf.mxu0
      %v1087 = vpop.f32.mrf.mxu0
      %v1088 = vadd.f32 %v796, %v1087
      %v1089 = vpop.f32.mrf.mxu0
      %1090 = vmatprep.mubr.bf16.mxu0 0
      %1091 = vmatmul.mubr.bf16.gmra.mxu0 %v988
      %v1092 = vpop.f32.mrf.mxu0
      %v1093 = vadd.f32 %v801, %v1092
      %v1094 = vpop.f32.mrf.mxu0
      %v1095 = vpop.f32.mrf.mxu0
      %v1096 = vadd.f32 %v804, %v1095
      %v1097 = vpop.f32.mrf.mxu0
      %1098 = vmatprep.mubr.bf16.mxu0 0
      %1099 = vmatmul.mubr.bf16.gmra.mxu0 %v991
      %v1100 = vpop.f32.mrf.mxu0
      %v1101 = vadd.f32 %v809, %v1100
      %v1102 = vpop.f32.mrf.mxu0
      %v1103 = vpop.f32.mrf.mxu0
      %v1104 = vadd.f32 %v812, %v1103
      %v1105 = vpop.f32.mrf.mxu0
      %1106 = vmatprep.mubr.bf16.mxu0 0
      %1107 = vmatmul.mubr.bf16.gmra.mxu0 %v994
      %v1108 = vpop.f32.mrf.mxu0
      %v1109 = vadd.f32 %v817, %v1108
      %v1110 = vpop.f32.mrf.mxu0
      %v1111 = vpop.f32.mrf.mxu0
      %v1112 = vadd.f32 %v820, %v1111
      %v1113 = vpop.f32.mrf.mxu0
      %1114 = vmatprep.mubr.bf16.mxu0 0
      %1115 = vmatmul.mubr.bf16.gmra.mxu0 %v997
      %v1116 = vpop.f32.mrf.mxu0
      %v1117 = vadd.f32 %v825, %v1116
      %v1118 = vpop.f32.mrf.mxu0
      %v1119 = vpop.f32.mrf.mxu0
      %v1120 = vadd.f32 %v828, %v1119
      %v1121 = vpop.f32.mrf.mxu0
      %1122 = vmatprep.mubr.bf16.mxu0 0
      %1123 = vmatmul.mubr.bf16.gmra.mxu0 %v1000
      %v1124 = vpop.f32.mrf.mxu0
      %v1125 = vadd.f32 %v833, %v1124
      %v1126 = vpop.f32.mrf.mxu0
      %v1127 = vpop.f32.mrf.mxu0
      %v1128 = vadd.f32 %v836, %v1127
      %v1129 = vpop.f32.mrf.mxu0
      %1130 = vmatprep.mubr.bf16.mxu0 0
      %1131 = vmatmul.mubr.bf16.gmra.mxu0 %v1003
      %v1132 = vpop.f32.mrf.mxu0
      %v1133 = vadd.f32 %v841, %v1132
      %v1134 = vpop.f32.mrf.mxu0
      %v1135 = vpop.f32.mrf.mxu0
      %v1136 = vadd.f32 %v844, %v1135
      %v1137 = vpop.f32.mrf.mxu0
      %1138 = vmatprep.mubr.bf16.mxu0 0
      %1139 = vmatmul.mubr.bf16.gmra.mxu0 %v1006
      %v1140 = vpop.f32.mrf.mxu0
      %v1141 = vadd.f32 %v849, %v1140
      %v1142 = vpop.f32.mrf.mxu0
      %v1143 = vpop.f32.mrf.mxu0
      %v1144 = vadd.f32 %v852, %v1143
      %v1145 = vpop.f32.mrf.mxu0
      %1146 = vmatprep.mubr.bf16.mxu0 0
      %1147 = vmatmul.mubr.bf16.gmra.mxu0 %v1009
      %v1148 = vpop.f32.mrf.mxu0
      %v1149 = vadd.f32 %v857, %v1148
      %v1150 = vpop.f32.mrf.mxu0
      %v1151 = vpop.f32.mrf.mxu0
      %v1152 = vadd.f32 %v860, %v1151
      %v1153 = vpop.f32.mrf.mxu0
      %1154 = vmatprep.mubr.bf16.mxu0 0
      %1155 = vmatmul.mubr.bf16.gmra.mxu0 %v1012
      %v1156 = vpop.f32.mrf.mxu0
      %v1157 = vadd.f32 %v865, %v1156
      %v1158 = vpop.f32.mrf.mxu0
      %v1159 = vpop.f32.mrf.mxu0
      %v1160 = vadd.f32 %v868, %v1159
      %v1161 = vpop.f32.mrf.mxu0
      %1162 = vmatprep.mubr.bf16.mxu0 0
      %1163 = vmatmul.mubr.bf16.gmra.mxu0 %v1015
      %v1164 = vpop.f32.mrf.mxu0
      %v1165 = vadd.f32 %v873, %v1164
      %v1166 = vpop.f32.mrf.mxu0
      %v1167 = vpop.f32.mrf.mxu0
      %v1168 = vadd.f32 %v876, %v1167
      %v1169 = vpop.f32.mrf.mxu0
      %1170 = vmatprep.mubr.bf16.mxu0 0
      %1171 = vmatmul.mubr.bf16.gmra.mxu0 %v1018
      %v1172 = vpop.f32.mrf.mxu0
      %v1173 = vadd.f32 %v881, %v1172
      %v1174 = vpop.f32.mrf.mxu0
      %v1175 = vpop.f32.mrf.mxu0
      %v1176 = vadd.f32 %v884, %v1175
      %v1177 = vpop.f32.mrf.mxu0
      %1178 = vmatprep.mubr.bf16.mxu0 0
      %1179 = vmatmul.mubr.bf16.gmra.mxu0 %v1021
      %v1180 = vpop.f32.mrf.mxu0
      %v1181 = vadd.f32 %v889, %v1180
      %v1182 = vpop.f32.mrf.mxu0
      %v1183 = vpop.f32.mrf.mxu0
      %v1184 = vadd.f32 %v892, %v1183
      %v1185 = vpop.f32.mrf.mxu0
      %1186 = vdwg.mxu0
      %s1187 = scalar_lea.vmem %s183, 12
      %v1188 = vld [vmem:[%s1187] sm:$0xf]
      %v1189 = vld [vmem:[%s1187 + $0x4] sm:$0xf]
      %v1190 = vld [vmem:[%s1187 + $0xc] sm:$0xf]
      %v1191 = vld [vmem:[%s1187 + $0x10] sm:$0xf]
      %v1192 = vld [vmem:[%s1187 + $0x18] sm:$0xf]
      %v1193 = vld [vmem:[%s1187 + $0x1c] sm:$0xf]
      %v1194 = vld [vmem:[%s1187 + $0x24] sm:$0xf]
      %v1195 = vld [vmem:[%s1187 + $0x28] sm:$0xf]
      %v1196 = vld [vmem:[%s1187 + $0x30] sm:$0xf]
      %v1197 = vld [vmem:[%s1187 + $0x34] sm:$0xf]
      %v1198 = vld [vmem:[%s1187 + $0x3c] sm:$0xf]
      %v1199 = vld [vmem:[%s1187 + $0x40] sm:$0xf]
      %v1200 = vld [vmem:[%s1187 + $0x48] sm:$0xf]
      %v1201 = vld [vmem:[%s1187 + $0x4c] sm:$0xf]
      %v1202 = vld [vmem:[%s1187 + $0x54] sm:$0xf]
      %v1203 = vld [vmem:[%s1187 + $0x58] sm:$0xf]
      %v1204 = vld [vmem:[%s1187 + $0x60] sm:$0xf]
      %v1205 = vld [vmem:[%s1187 + $0x64] sm:$0xf]
      %v1206 = vld [vmem:[%s1187 + $0x6c] sm:$0xf]
      %v1207 = vld [vmem:[%s1187 + $0x70] sm:$0xf]
      %v1208 = vld [vmem:[%s1187 + $0x78] sm:$0xf]
      %v1209 = vld [vmem:[%s1187 + $0x7c] sm:$0xf]
      %v1210 = vld [vmem:[%s1187 + $0x84] sm:$0xf]
      %v1211 = vld [vmem:[%s1187 + $0x88] sm:$0xf]
      %v1212 = vld [vmem:[%s1187 + $0x90] sm:$0xf]
      %v1213 = vld [vmem:[%s1187 + $0x94] sm:$0xf]
      %v1214 = vld [vmem:[%s1187 + $0x9c] sm:$0xf]
      %v1215 = vld [vmem:[%s1187 + $0xa0] sm:$0xf]
      %v1216 = vld [vmem:[%s1187 + $0xa8] sm:$0xf]
      %v1217 = vld [vmem:[%s1187 + $0xac] sm:$0xf]
      %v1218 = vld [vmem:[%s1187 + $0xb4] sm:$0xf]
      %v1219 = vld [vmem:[%s1187 + $0xb8] sm:$0xf]
      %s1220 = scalar_lea.vmem %s1, 4
      %v1221 = vld [vmem:[%s1220] sm:$0x3]
      %v1254 = vunpack.c.l.b16 %v1188
      %v1255 = vunpack.c.l.b16 %v1189
      %v1256 = vunpack.c.l.b16 %v1190
      %v1257 = vunpack.c.l.b16 %v1191
      %v1258 = vunpack.c.l.b16 %v1192
      %v1259 = vunpack.c.l.b16 %v1193
      %v1260 = vunpack.c.l.b16 %v1194
      %v1261 = vunpack.c.l.b16 %v1195
      %v1262 = vunpack.c.l.b16 %v1196
      %v1263 = vunpack.c.l.b16 %v1197
      %v1264 = vunpack.c.l.b16 %v1198
      %v1265 = vunpack.c.l.b16 %v1199
      %v1266 = vunpack.c.l.b16 %v1200
      %v1267 = vunpack.c.l.b16 %v1201
      %v1268 = vunpack.c.l.b16 %v1202
      %v1269 = vunpack.c.l.b16 %v1203
      %v1270 = vunpack.c.l.b16 %v1204
      %v1271 = vunpack.c.l.b16 %v1205
      %v1272 = vunpack.c.l.b16 %v1206
      %v1273 = vunpack.c.l.b16 %v1207
      %v1274 = vunpack.c.l.b16 %v1208
      %v1275 = vunpack.c.l.b16 %v1209
      %v1276 = vunpack.c.l.b16 %v1210
      %v1277 = vunpack.c.l.b16 %v1211
      %v1278 = vunpack.c.l.b16 %v1212
      %v1279 = vunpack.c.l.b16 %v1213
      %v1280 = vunpack.c.l.b16 %v1214
      %v1281 = vunpack.c.l.b16 %v1215
      %v1282 = vunpack.c.l.b16 %v1216
      %v1283 = vunpack.c.l.b16 %v1217
      %v1284 = vunpack.c.l.b16 %v1218
      %v1285 = vunpack.c.l.b16 %v1219
      %v1286 = vpack.c.b16 %v1255, %v1254
      %v1287 = vpack.c.b16 %v1257, %v1256
      %v1288 = vpack.c.b16 %v1259, %v1258
      %v1289 = vpack.c.b16 %v1261, %v1260
      %v1290 = vpack.c.b16 %v1263, %v1262
      %v1291 = vpack.c.b16 %v1265, %v1264
      %v1292 = vpack.c.b16 %v1267, %v1266
      %v1293 = vpack.c.b16 %v1269, %v1268
      %v1294 = vpack.c.b16 %v1271, %v1270
      %v1295 = vpack.c.b16 %v1273, %v1272
      %v1296 = vpack.c.b16 %v1275, %v1274
      %v1297 = vpack.c.b16 %v1277, %v1276
      %v1298 = vpack.c.b16 %v1279, %v1278
      %v1299 = vpack.c.b16 %v1281, %v1280
      %v1300 = vpack.c.b16 %v1283, %v1282
      %v1301 = vpack.c.b16 %v1285, %v1284
      %v1303 = vsel %vm681, %v1286, 0
      %v1306 = vsel %vm681, %v1287, 0
      %v1309 = vsel %vm681, %v1288, 0
      %v1312 = vsel %vm681, %v1289, 0
      %v1315 = vsel %vm681, %v1290, 0
      %v1318 = vsel %vm681, %v1291, 0
      %v1321 = vsel %vm681, %v1292, 0
      %v1324 = vsel %vm681, %v1293, 0
      %v1327 = vsel %vm681, %v1294, 0
      %v1330 = vsel %vm681, %v1295, 0
      %v1333 = vsel %vm681, %v1296, 0
      %v1336 = vsel %vm681, %v1297, 0
      %v1339 = vsel %vm681, %v1298, 0
      %v1342 = vsel %vm681, %v1299, 0
      %v1345 = vsel %vm681, %v1300, 0
      %v1348 = vsel %vm681, %v1301, 0
      %v1351 = vsel %vm730, %v1221, 0
      %1353 = vmatprep.subr.bf16.mxu0 0
      %1354 = vmatpush1.bf16.msra.mxu0 0
      %1355 = vmatprep.subr.bf16.mxu0 0
      %1356 = vmatpush1.bf16.msra.mxu0 0
      %1357 = vmatprep.subr.bf16.mxu0 0
      %1358 = vmatpush1.bf16.msra.mxu0 0
      %1359 = vmatprep.subr.bf16.mxu0 0
      %1360 = vmatpush1.bf16.msra.mxu0 0
      %1361 = vmatprep.subr.bf16.mxu0 0
      %1362 = vmatpush1.bf16.msra.mxu0 0
      %1363 = vmatprep.subr.bf16.mxu0 0
      %1364 = vmatpush1.bf16.msra.mxu0 0
      %1365 = vmatprep.subr.bf16.mxu0 0
      %1366 = vmatpush1.bf16.msra.mxu0 0
      %1367 = vmatprep.subr.bf16.mxu0 0
      %1368 = vmatpush1.bf16.msra.mxu0 %v1351
      %1369 = vmatprep.subr.bf16.mxu0 0
      %1370 = vmatpush2.bf16.msra.mxu0 0
      %1371 = vmatprep.subr.bf16.mxu0 0
      %1372 = vmatpush2.bf16.msra.mxu0 0
      %1373 = vmatprep.subr.bf16.mxu0 0
      %1374 = vmatpush2.bf16.msra.mxu0 0
      %1375 = vmatprep.subr.bf16.mxu0 0
      %1376 = vmatpush2.bf16.msra.mxu0 0
      %1377 = vmatprep.subr.bf16.mxu0 0
      %1378 = vmatpush2.bf16.msra.mxu0 0
      %1379 = vmatprep.subr.bf16.mxu0 0
      %1380 = vmatpush2.bf16.msra.mxu0 0
      %1381 = vmatprep.subr.bf16.mxu0 0
      %1382 = vmatpush2.bf16.msra.mxu0 0
      %1383 = vmatprep.subr.bf16.mxu0 0
      %1384 = vmatpush2.bf16.msra.mxu0 0
      %1385 = vmatprep.mubr.bf16.mxu0 0
      %1386 = vmatmul.mubr.bf16.gmra.mxu0 %v1303
      %v1387 = vpop.f32.mrf.mxu0
      %v1388 = vadd.f32 0.0, %v1387
      %v1389 = vpop.f32.mrf.mxu0
      %v1390 = vpop.f32.mrf.mxu0
      %v1391 = vadd.f32 0.0, %v1390
      %v1392 = vpop.f32.mrf.mxu0
      %1393 = vmatprep.mubr.bf16.mxu0 0
      %1394 = vmatmul.mubr.bf16.gmra.mxu0 %v1306
      %v1395 = vpop.f32.mrf.mxu0
      %v1396 = vadd.f32 0.0, %v1395
      %v1397 = vpop.f32.mrf.mxu0
      %v1398 = vpop.f32.mrf.mxu0
      %v1399 = vadd.f32 0.0, %v1398
      %v1400 = vpop.f32.mrf.mxu0
      %1401 = vmatprep.mubr.bf16.mxu0 0
      %1402 = vmatmul.mubr.bf16.gmra.mxu0 %v1309
      %v1403 = vpop.f32.mrf.mxu0
      %v1404 = vadd.f32 0.0, %v1403
      %v1405 = vpop.f32.mrf.mxu0
      %v1406 = vpop.f32.mrf.mxu0
      %v1407 = vadd.f32 0.0, %v1406
      %v1408 = vpop.f32.mrf.mxu0
      %1409 = vmatprep.mubr.bf16.mxu0 0
      %1410 = vmatmul.mubr.bf16.gmra.mxu0 %v1312
      %v1411 = vpop.f32.mrf.mxu0
      %v1412 = vadd.f32 0.0, %v1411
      %v1413 = vpop.f32.mrf.mxu0
      %v1414 = vpop.f32.mrf.mxu0
      %v1415 = vadd.f32 0.0, %v1414
      %v1416 = vpop.f32.mrf.mxu0
      %1417 = vmatprep.mubr.bf16.mxu0 0
      %1418 = vmatmul.mubr.bf16.gmra.mxu0 %v1315
      %v1419 = vpop.f32.mrf.mxu0
      %v1420 = vadd.f32 0.0, %v1419
      %v1421 = vpop.f32.mrf.mxu0
      %v1422 = vpop.f32.mrf.mxu0
      %v1423 = vadd.f32 0.0, %v1422
      %v1424 = vpop.f32.mrf.mxu0
      %1425 = vmatprep.mubr.bf16.mxu0 0
      %1426 = vmatmul.mubr.bf16.gmra.mxu0 %v1318
      %v1427 = vpop.f32.mrf.mxu0
      %v1428 = vadd.f32 0.0, %v1427
      %v1429 = vpop.f32.mrf.mxu0
      %v1430 = vpop.f32.mrf.mxu0
      %v1431 = vadd.f32 0.0, %v1430
      %v1432 = vpop.f32.mrf.mxu0
      %1433 = vmatprep.mubr.bf16.mxu0 0
      %1434 = vmatmul.mubr.bf16.gmra.mxu0 %v1321
      %v1435 = vpop.f32.mrf.mxu0
      %v1436 = vadd.f32 0.0, %v1435
      %v1437 = vpop.f32.mrf.mxu0
      %v1438 = vpop.f32.mrf.mxu0
      %v1439 = vadd.f32 0.0, %v1438
      %v1440 = vpop.f32.mrf.mxu0
      %1441 = vmatprep.mubr.bf16.mxu0 0
      %1442 = vmatmul.mubr.bf16.gmra.mxu0 %v1324
      %v1443 = vpop.f32.mrf.mxu0
      %v1444 = vadd.f32 0.0, %v1443
      %v1445 = vpop.f32.mrf.mxu0
      %v1446 = vpop.f32.mrf.mxu0
      %v1447 = vadd.f32 0.0, %v1446
      %v1448 = vpop.f32.mrf.mxu0
      %1449 = vmatprep.mubr.bf16.mxu0 0
      %1450 = vmatmul.mubr.bf16.gmra.mxu0 %v1327
      %v1451 = vpop.f32.mrf.mxu0
      %v1452 = vadd.f32 0.0, %v1451
      %v1453 = vpop.f32.mrf.mxu0
      %v1454 = vpop.f32.mrf.mxu0
      %v1455 = vadd.f32 0.0, %v1454
      %v1456 = vpop.f32.mrf.mxu0
      %1457 = vmatprep.mubr.bf16.mxu0 0
      %1458 = vmatmul.mubr.bf16.gmra.mxu0 %v1330
      %v1459 = vpop.f32.mrf.mxu0
      %v1460 = vadd.f32 0.0, %v1459
      %v1461 = vpop.f32.mrf.mxu0
      %v1462 = vpop.f32.mrf.mxu0
      %v1463 = vadd.f32 0.0, %v1462
      %v1464 = vpop.f32.mrf.mxu0
      %1465 = vmatprep.mubr.bf16.mxu0 0
      %1466 = vmatmul.mubr.bf16.gmra.mxu0 %v1333
      %v1467 = vpop.f32.mrf.mxu0
      %v1468 = vadd.f32 0.0, %v1467
      %v1469 = vpop.f32.mrf.mxu0
      %v1470 = vpop.f32.mrf.mxu0
      %v1471 = vadd.f32 0.0, %v1470
      %v1472 = vpop.f32.mrf.mxu0
      %1473 = vmatprep.mubr.bf16.mxu0 0
      %1474 = vmatmul.mubr.bf16.gmra.mxu0 %v1336
      %v1475 = vpop.f32.mrf.mxu0
      %v1476 = vadd.f32 0.0, %v1475
      %v1477 = vpop.f32.mrf.mxu0
      %v1478 = vpop.f32.mrf.mxu0
      %v1479 = vadd.f32 0.0, %v1478
      %v1480 = vpop.f32.mrf.mxu0
      %1481 = vmatprep.mubr.bf16.mxu0 0
      %1482 = vmatmul.mubr.bf16.gmra.mxu0 %v1339
      %v1483 = vpop.f32.mrf.mxu0
      %v1484 = vadd.f32 0.0, %v1483
      %v1485 = vpop.f32.mrf.mxu0
      %v1486 = vpop.f32.mrf.mxu0
      %v1487 = vadd.f32 0.0, %v1486
      %v1488 = vpop.f32.mrf.mxu0
      %1489 = vmatprep.mubr.bf16.mxu0 0
      %1490 = vmatmul.mubr.bf16.gmra.mxu0 %v1342
      %v1491 = vpop.f32.mrf.mxu0
      %v1492 = vadd.f32 0.0, %v1491
      %v1493 = vpop.f32.mrf.mxu0
      %v1494 = vpop.f32.mrf.mxu0
      %v1495 = vadd.f32 0.0, %v1494
      %v1496 = vpop.f32.mrf.mxu0
      %1497 = vmatprep.mubr.bf16.mxu0 0
      %1498 = vmatmul.mubr.bf16.gmra.mxu0 %v1345
      %v1499 = vpop.f32.mrf.mxu0
      %v1500 = vadd.f32 0.0, %v1499
      %v1501 = vpop.f32.mrf.mxu0
      %v1502 = vpop.f32.mrf.mxu0
      %v1503 = vadd.f32 0.0, %v1502
      %v1504 = vpop.f32.mrf.mxu0
      %1505 = vmatprep.mubr.bf16.mxu0 0
      %1506 = vmatmul.mubr.bf16.gmra.mxu0 %v1348
      %v1507 = vpop.f32.mrf.mxu0
      %v1508 = vadd.f32 0.0, %v1507
      %v1509 = vpop.f32.mrf.mxu0
      %v1510 = vpop.f32.mrf.mxu0
      %v1511 = vadd.f32 0.0, %v1510
      %v1512 = vpop.f32.mrf.mxu0
      %1513 = vdwg.mxu0
      %v1514 = vadd.f32 %v1061, %v1388
      %v1515 = vadd.f32 %v1064, %v1391
      %v1516 = vadd.f32 %v1069, %v1396
      %v1517 = vadd.f32 %v1072, %v1399
      %v1518 = vadd.f32 %v1077, %v1404
      %v1519 = vadd.f32 %v1080, %v1407
      %v1520 = vadd.f32 %v1085, %v1412
      %v1521 = vadd.f32 %v1088, %v1415
      %v1522 = vadd.f32 %v1093, %v1420
      %v1523 = vadd.f32 %v1096, %v1423
      %v1524 = vadd.f32 %v1101, %v1428
      %v1525 = vadd.f32 %v1104, %v1431
      %v1526 = vadd.f32 %v1109, %v1436
      %v1527 = vadd.f32 %v1112, %v1439
      %v1528 = vadd.f32 %v1117, %v1444
      %v1529 = vadd.f32 %v1120, %v1447
      %v1530 = vadd.f32 %v1125, %v1452
      %v1531 = vadd.f32 %v1128, %v1455
      %v1532 = vadd.f32 %v1133, %v1460
      %v1533 = vadd.f32 %v1136, %v1463
      %v1534 = vadd.f32 %v1141, %v1468
      %v1535 = vadd.f32 %v1144, %v1471
      %v1536 = vadd.f32 %v1149, %v1476
      %v1537 = vadd.f32 %v1152, %v1479
      %v1538 = vadd.f32 %v1157, %v1484
      %v1539 = vadd.f32 %v1160, %v1487
      %v1540 = vadd.f32 %v1165, %v1492
      %v1541 = vadd.f32 %v1168, %v1495
      %v1542 = vadd.f32 %v1173, %v1500
      %v1543 = vadd.f32 %v1176, %v1503
      %v1544 = vadd.f32 %v1181, %v1508
      %v1545 = vadd.f32 %v1184, %v1511
      %v1546 = vld [vmem:[%s1187] sm:$0xf]
      %v1547 = vld [vmem:[%s1187 + $0x4] sm:$0xf]
      %v1548 = vld [vmem:[%s1187 + $0x8] sm:$0x1]
      %v1549 = vld [vmem:[%s1187 + $0xc] sm:$0xf]
      %v1550 = vld [vmem:[%s1187 + $0x10] sm:$0xf]
      %v1551 = vld [vmem:[%s1187 + $0x14] sm:$0x1]
      %v1552 = vld [vmem:[%s1187 + $0x18] sm:$0xf]
      %v1553 = vld [vmem:[%s1187 + $0x1c] sm:$0xf]
      %v1554 = vld [vmem:[%s1187 + $0x20] sm:$0x1]
      %v1555 = vld [vmem:[%s1187 + $0x24] sm:$0xf]
      %v1556 = vld [vmem:[%s1187 + $0x28] sm:$0xf]
      %v1557 = vld [vmem:[%s1187 + $0x2c] sm:$0x1]
      %v1558 = vld [vmem:[%s1187 + $0x30] sm:$0xf]
      %v1559 = vld [vmem:[%s1187 + $0x34] sm:$0xf]
      %v1560 = vld [vmem:[%s1187 + $0x38] sm:$0x1]
      %v1561 = vld [vmem:[%s1187 + $0x3c] sm:$0xf]
      %v1562 = vld [vmem:[%s1187 + $0x40] sm:$0xf]
      %v1563 = vld [vmem:[%s1187 + $0x44] sm:$0x1]
      %v1564 = vld [vmem:[%s1187 + $0x48] sm:$0xf]
      %v1565 = vld [vmem:[%s1187 + $0x4c] sm:$0xf]
      %v1566 = vld [vmem:[%s1187 + $0x50] sm:$0x1]
      %v1567 = vld [vmem:[%s1187 + $0x54] sm:$0xf]
      %v1568 = vld [vmem:[%s1187 + $0x58] sm:$0xf]
      %v1569 = vld [vmem:[%s1187 + $0x5c] sm:$0x1]
      %v1570 = vld [vmem:[%s1187 + $0x60] sm:$0xf]
      %v1571 = vld [vmem:[%s1187 + $0x64] sm:$0xf]
      %v1572 = vld [vmem:[%s1187 + $0x68] sm:$0x1]
      %v1573 = vld [vmem:[%s1187 + $0x6c] sm:$0xf]
      %v1574 = vld [vmem:[%s1187 + $0x70] sm:$0xf]
      %v1575 = vld [vmem:[%s1187 + $0x74] sm:$0x1]
      %v1576 = vld [vmem:[%s1187 + $0x78] sm:$0xf]
      %v1577 = vld [vmem:[%s1187 + $0x7c] sm:$0xf]
      %v1578 = vld [vmem:[%s1187 + $0x80] sm:$0x1]
      %v1579 = vld [vmem:[%s1187 + $0x84] sm:$0xf]
      %v1580 = vld [vmem:[%s1187 + $0x88] sm:$0xf]
      %v1581 = vld [vmem:[%s1187 + $0x8c] sm:$0x1]
      %v1582 = vld [vmem:[%s1187 + $0x90] sm:$0xf]
      %v1583 = vld [vmem:[%s1187 + $0x94] sm:$0xf]
      %v1584 = vld [vmem:[%s1187 + $0x98] sm:$0x1]
      %v1585 = vld [vmem:[%s1187 + $0x9c] sm:$0xf]
      %v1586 = vld [vmem:[%s1187 + $0xa0] sm:$0xf]
      %v1587 = vld [vmem:[%s1187 + $0xa4] sm:$0x1]
      %v1588 = vld [vmem:[%s1187 + $0xa8] sm:$0xf]
      %v1589 = vld [vmem:[%s1187 + $0xac] sm:$0xf]
      %v1590 = vld [vmem:[%s1187 + $0xb0] sm:$0x1]
      %v1591 = vld [vmem:[%s1187 + $0xb4] sm:$0xf]
      %v1592 = vld [vmem:[%s1187 + $0xb8] sm:$0xf]
      %v1593 = vld [vmem:[%s1187 + $0xbc] sm:$0x1]
      %v1595 = vshrl.u32 %v1546, 16
      %v1597 = vrot.slane %v1595, 4
      %v1598 = vshll.u32 %v1546, 16
      %v1600 = vrot.slane %v1598, 5
      %v1601 = vor.u32 %v1597, %v1600
      %v1602 = vrot.slane %v1601, 4
      %v1604 = vshll.u32 %v1547, 16
      %v1606 = vrot.slane %v1604, 5
      %v1607 = vsel %vm246, %v1602, %v1606
      %v1608 = vshrl.u32 %v1547, 16
      %v1610 = vrot.slane %v1608, 4
      %v1611 = vor.u32 %v1610, %v1606
      %v1612 = vrot.slane %v1611, 4
      %v1614 = vshll.u32 %v1548, 16
      %v1616 = vrot.slane %v1614, 5
      %v1617 = vsel %vm246, %v1612, %v1616
      %v1619 = vshrl.u32 %v1549, 16
      %v1621 = vrot.slane %v1619, 4
      %v1622 = vshll.u32 %v1549, 16
      %v1624 = vrot.slane %v1622, 5
      %v1625 = vor.u32 %v1621, %v1624
      %v1626 = vrot.slane %v1625, 4
      %v1628 = vshll.u32 %v1550, 16
      %v1630 = vrot.slane %v1628, 5
      %v1631 = vsel %vm246, %v1626, %v1630
      %v1632 = vshrl.u32 %v1550, 16
      %v1634 = vrot.slane %v1632, 4
      %v1635 = vor.u32 %v1634, %v1630
      %v1636 = vrot.slane %v1635, 4
      %v1638 = vshll.u32 %v1551, 16
      %v1640 = vrot.slane %v1638, 5
      %v1641 = vsel %vm246, %v1636, %v1640
      %v1643 = vshrl.u32 %v1552, 16
      %v1645 = vrot.slane %v1643, 4
      %v1646 = vshll.u32 %v1552, 16
      %v1648 = vrot.slane %v1646, 5
      %v1649 = vor.u32 %v1645, %v1648
      %v1650 = vrot.slane %v1649, 4
      %v1652 = vshll.u32 %v1553, 16
      %v1654 = vrot.slane %v1652, 5
      %v1655 = vsel %vm246, %v1650, %v1654
      %v1656 = vshrl.u32 %v1553, 16
      %v1658 = vrot.slane %v1656, 4
      %v1659 = vor.u32 %v1658, %v1654
      %v1660 = vrot.slane %v1659, 4
      %v1662 = vshll.u32 %v1554, 16
      %v1664 = vrot.slane %v1662, 5
      %v1665 = vsel %vm246, %v1660, %v1664
      %v1667 = vshrl.u32 %v1555, 16
      %v1669 = vrot.slane %v1667, 4
      %v1670 = vshll.u32 %v1555, 16
      %v1672 = vrot.slane %v1670, 5
      %v1673 = vor.u32 %v1669, %v1672
      %v1674 = vrot.slane %v1673, 4
      %v1676 = vshll.u32 %v1556, 16
      %v1678 = vrot.slane %v1676, 5
      %v1679 = vsel %vm246, %v1674, %v1678
      %v1680 = vshrl.u32 %v1556, 16
      %v1682 = vrot.slane %v1680, 4
      %v1683 = vor.u32 %v1682, %v1678
      %v1684 = vrot.slane %v1683, 4
      %v1686 = vshll.u32 %v1557, 16
      %v1688 = vrot.slane %v1686, 5
      %v1689 = vsel %vm246, %v1684, %v1688
      %v1691 = vshrl.u32 %v1558, 16
      %v1693 = vrot.slane %v1691, 4
      %v1694 = vshll.u32 %v1558, 16
      %v1696 = vrot.slane %v1694, 5
      %v1697 = vor.u32 %v1693, %v1696
      %v1698 = vrot.slane %v1697, 4
      %v1700 = vshll.u32 %v1559, 16
      %v1702 = vrot.slane %v1700, 5
      %v1703 = vsel %vm246, %v1698, %v1702
      %v1704 = vshrl.u32 %v1559, 16
      %v1706 = vrot.slane %v1704, 4
      %v1707 = vor.u32 %v1706, %v1702
      %v1708 = vrot.slane %v1707, 4
      %v1710 = vshll.u32 %v1560, 16
      %v1712 = vrot.slane %v1710, 5
      %v1713 = vsel %vm246, %v1708, %v1712
      %v1715 = vshrl.u32 %v1561, 16
      %v1717 = vrot.slane %v1715, 4
      %v1718 = vshll.u32 %v1561, 16
      %v1720 = vrot.slane %v1718, 5
      %v1721 = vor.u32 %v1717, %v1720
      %v1722 = vrot.slane %v1721, 4
      %v1724 = vshll.u32 %v1562, 16
      %v1726 = vrot.slane %v1724, 5
      %v1727 = vsel %vm246, %v1722, %v1726
      %v1728 = vshrl.u32 %v1562, 16
      %v1730 = vrot.slane %v1728, 4
      %v1731 = vor.u32 %v1730, %v1726
      %v1732 = vrot.slane %v1731, 4
      %v1734 = vshll.u32 %v1563, 16
      %v1736 = vrot.slane %v1734, 5
      %v1737 = vsel %vm246, %v1732, %v1736
      %v1739 = vshrl.u32 %v1564, 16
      %v1741 = vrot.slane %v1739, 4
      %v1742 = vshll.u32 %v1564, 16
      %v1744 = vrot.slane %v1742, 5
      %v1745 = vor.u32 %v1741, %v1744
      %v1746 = vrot.slane %v1745, 4
      %v1748 = vshll.u32 %v1565, 16
      %v1750 = vrot.slane %v1748, 5
      %v1751 = vsel %vm246, %v1746, %v1750
      %v1752 = vshrl.u32 %v1565, 16
      %v1754 = vrot.slane %v1752, 4
      %v1755 = vor.u32 %v1754, %v1750
      %v1756 = vrot.slane %v1755, 4
      %v1758 = vshll.u32 %v1566, 16
      %v1760 = vrot.slane %v1758, 5
      %v1761 = vsel %vm246, %v1756, %v1760
      %v1763 = vshrl.u32 %v1567, 16
      %v1765 = vrot.slane %v1763, 4
      %v1766 = vshll.u32 %v1567, 16
      %v1768 = vrot.slane %v1766, 5
      %v1769 = vor.u32 %v1765, %v1768
      %v1770 = vrot.slane %v1769, 4
      %v1772 = vshll.u32 %v1568, 16
      %v1774 = vrot.slane %v1772, 5
      %v1775 = vsel %vm246, %v1770, %v1774
      %v1776 = vshrl.u32 %v1568, 16
      %v1778 = vrot.slane %v1776, 4
      %v1779 = vor.u32 %v1778, %v1774
      %v1780 = vrot.slane %v1779, 4
      %v1782 = vshll.u32 %v1569, 16
      %v1784 = vrot.slane %v1782, 5
      %v1785 = vsel %vm246, %v1780, %v1784
      %v1787 = vshrl.u32 %v1570, 16
      %v1789 = vrot.slane %v1787, 4
      %v1790 = vshll.u32 %v1570, 16
      %v1792 = vrot.slane %v1790, 5
      %v1793 = vor.u32 %v1789, %v1792
      %v1794 = vrot.slane %v1793, 4
      %v1796 = vshll.u32 %v1571, 16
      %v1798 = vrot.slane %v1796, 5
      %v1799 = vsel %vm246, %v1794, %v1798
      %v1800 = vshrl.u32 %v1571, 16
      %v1802 = vrot.slane %v1800, 4
      %v1803 = vor.u32 %v1802, %v1798
      %v1804 = vrot.slane %v1803, 4
      %v1806 = vshll.u32 %v1572, 16
      %v1808 = vrot.slane %v1806, 5
      %v1809 = vsel %vm246, %v1804, %v1808
      %v1811 = vshrl.u32 %v1573, 16
      %v1813 = vrot.slane %v1811, 4
      %v1814 = vshll.u32 %v1573, 16
      %v1816 = vrot.slane %v1814, 5
      %v1817 = vor.u32 %v1813, %v1816
      %v1818 = vrot.slane %v1817, 4
      %v1820 = vshll.u32 %v1574, 16
      %v1822 = vrot.slane %v1820, 5
      %v1823 = vsel %vm246, %v1818, %v1822
      %v1824 = vshrl.u32 %v1574, 16
      %v1826 = vrot.slane %v1824, 4
      %v1827 = vor.u32 %v1826, %v1822
      %v1828 = vrot.slane %v1827, 4
      %v1830 = vshll.u32 %v1575, 16
      %v1832 = vrot.slane %v1830, 5
      %v1833 = vsel %vm246, %v1828, %v1832
      %v1835 = vshrl.u32 %v1576, 16
      %v1837 = vrot.slane %v1835, 4
      %v1838 = vshll.u32 %v1576, 16
      %v1840 = vrot.slane %v1838, 5
      %v1841 = vor.u32 %v1837, %v1840
      %v1842 = vrot.slane %v1841, 4
      %v1844 = vshll.u32 %v1577, 16
      %v1846 = vrot.slane %v1844, 5
      %v1847 = vsel %vm246, %v1842, %v1846
      %v1848 = vshrl.u32 %v1577, 16
      %v1850 = vrot.slane %v1848, 4
      %v1851 = vor.u32 %v1850, %v1846
      %v1852 = vrot.slane %v1851, 4
      %v1854 = vshll.u32 %v1578, 16
      %v1856 = vrot.slane %v1854, 5
      %v1857 = vsel %vm246, %v1852, %v1856
      %v1859 = vshrl.u32 %v1579, 16
      %v1861 = vrot.slane %v1859, 4
      %v1862 = vshll.u32 %v1579, 16
      %v1864 = vrot.slane %v1862, 5
      %v1865 = vor.u32 %v1861, %v1864
      %v1866 = vrot.slane %v1865, 4
      %v1868 = vshll.u32 %v1580, 16
      %v1870 = vrot.slane %v1868, 5
      %v1871 = vsel %vm246, %v1866, %v1870
      %v1872 = vshrl.u32 %v1580, 16
      %v1874 = vrot.slane %v1872, 4
      %v1875 = vor.u32 %v1874, %v1870
      %v1876 = vrot.slane %v1875, 4
      %v1878 = vshll.u32 %v1581, 16
      %v1880 = vrot.slane %v1878, 5
      %v1881 = vsel %vm246, %v1876, %v1880
      %v1883 = vshrl.u32 %v1582, 16
      %v1885 = vrot.slane %v1883, 4
      %v1886 = vshll.u32 %v1582, 16
      %v1888 = vrot.slane %v1886, 5
      %v1889 = vor.u32 %v1885, %v1888
      %v1890 = vrot.slane %v1889, 4
      %v1892 = vshll.u32 %v1583, 16
      %v1894 = vrot.slane %v1892, 5
      %v1895 = vsel %vm246, %v1890, %v1894
      %v1896 = vshrl.u32 %v1583, 16
      %v1898 = vrot.slane %v1896, 4
      %v1899 = vor.u32 %v1898, %v1894
      %v1900 = vrot.slane %v1899, 4
      %v1902 = vshll.u32 %v1584, 16
      %v1904 = vrot.slane %v1902, 5
      %v1905 = vsel %vm246, %v1900, %v1904
      %v1907 = vshrl.u32 %v1585, 16
      %v1909 = vrot.slane %v1907, 4
      %v1910 = vshll.u32 %v1585, 16
      %v1912 = vrot.slane %v1910, 5
      %v1913 = vor.u32 %v1909, %v1912
      %v1914 = vrot.slane %v1913, 4
      %v1916 = vshll.u32 %v1586, 16
      %v1918 = vrot.slane %v1916, 5
      %v1919 = vsel %vm246, %v1914, %v1918
      %v1920 = vshrl.u32 %v1586, 16
      %v1922 = vrot.slane %v1920, 4
      %v1923 = vor.u32 %v1922, %v1918
      %v1924 = vrot.slane %v1923, 4
      %v1926 = vshll.u32 %v1587, 16
      %v1928 = vrot.slane %v1926, 5
      %v1929 = vsel %vm246, %v1924, %v1928
      %v1931 = vshrl.u32 %v1588, 16
      %v1933 = vrot.slane %v1931, 4
      %v1934 = vshll.u32 %v1588, 16
      %v1936 = vrot.slane %v1934, 5
      %v1937 = vor.u32 %v1933, %v1936
      %v1938 = vrot.slane %v1937, 4
      %v1940 = vshll.u32 %v1589, 16
      %v1942 = vrot.slane %v1940, 5
      %v1943 = vsel %vm246, %v1938, %v1942
      %v1944 = vshrl.u32 %v1589, 16
      %v1946 = vrot.slane %v1944, 4
      %v1947 = vor.u32 %v1946, %v1942
      %v1948 = vrot.slane %v1947, 4
      %v1950 = vshll.u32 %v1590, 16
      %v1952 = vrot.slane %v1950, 5
      %v1953 = vsel %vm246, %v1948, %v1952
      %v1955 = vshrl.u32 %v1591, 16
      %v1957 = vrot.slane %v1955, 4
      %v1958 = vshll.u32 %v1591, 16
      %v1960 = vrot.slane %v1958, 5
      %v1961 = vor.u32 %v1957, %v1960
      %v1962 = vrot.slane %v1961, 4
      %v1964 = vshll.u32 %v1592, 16
      %v1966 = vrot.slane %v1964, 5
      %v1967 = vsel %vm246, %v1962, %v1966
      %v1968 = vshrl.u32 %v1592, 16
      %v1970 = vrot.slane %v1968, 4
      %v1971 = vor.u32 %v1970, %v1966
      %v1972 = vrot.slane %v1971, 4
      %v1974 = vshll.u32 %v1593, 16
      %v1976 = vrot.slane %v1974, 5
      %v1977 = vsel %vm246, %v1972, %v1976
      %s1978 = scalar_lea.vmem %s1, 6
      %v1979 = vld [vmem:[%s1978] sm:$0x3]
      %v1980 = vunpack.c.l.b16 %v1607
      %v1981 = vunpack.c.l.b16 %v1617
      %v1982 = vunpack.c.l.b16 %v1631
      %v1983 = vunpack.c.l.b16 %v1641
      %v1984 = vunpack.c.l.b16 %v1655
      %v1985 = vunpack.c.l.b16 %v1665
      %v1986 = vunpack.c.l.b16 %v1679
      %v1987 = vunpack.c.l.b16 %v1689
      %v1988 = vunpack.c.l.b16 %v1703
      %v1989 = vunpack.c.l.b16 %v1713
      %v1990 = vunpack.c.l.b16 %v1727
      %v1991 = vunpack.c.l.b16 %v1737
      %v1992 = vunpack.c.l.b16 %v1751
      %v1993 = vunpack.c.l.b16 %v1761
      %v1994 = vunpack.c.l.b16 %v1775
      %v1995 = vunpack.c.l.b16 %v1785
      %v1996 = vunpack.c.l.b16 %v1799
      %v1997 = vunpack.c.l.b16 %v1809
      %v1998 = vunpack.c.l.b16 %v1823
      %v1999 = vunpack.c.l.b16 %v1833
      %v2000 = vunpack.c.l.b16 %v1847
      %v2001 = vunpack.c.l.b16 %v1857
      %v2002 = vunpack.c.l.b16 %v1871
      %v2003 = vunpack.c.l.b16 %v1881
      %v2004 = vunpack.c.l.b16 %v1895
      %v2005 = vunpack.c.l.b16 %v1905
      %v2006 = vunpack.c.l.b16 %v1919
      %v2007 = vunpack.c.l.b16 %v1929
      %v2008 = vunpack.c.l.b16 %v1943
      %v2009 = vunpack.c.l.b16 %v1953
      %v2010 = vunpack.c.l.b16 %v1967
      %v2011 = vunpack.c.l.b16 %v1977
      %v2012 = vpack.c.b16 %v1981, %v1980
      %v2013 = vpack.c.b16 %v1983, %v1982
      %v2014 = vpack.c.b16 %v1985, %v1984
      %v2015 = vpack.c.b16 %v1987, %v1986
      %v2016 = vpack.c.b16 %v1989, %v1988
      %v2017 = vpack.c.b16 %v1991, %v1990
      %v2018 = vpack.c.b16 %v1993, %v1992
      %v2019 = vpack.c.b16 %v1995, %v1994
      %v2020 = vpack.c.b16 %v1997, %v1996
      %v2021 = vpack.c.b16 %v1999, %v1998
      %v2022 = vpack.c.b16 %v2001, %v2000
      %v2023 = vpack.c.b16 %v2003, %v2002
      %v2024 = vpack.c.b16 %v2005, %v2004
      %v2025 = vpack.c.b16 %v2007, %v2006
      %v2026 = vpack.c.b16 %v2009, %v2008
      %v2027 = vpack.c.b16 %v2011, %v2010
      %v2029 = vsel %vm681, %v2012, 0
      %v2032 = vsel %vm681, %v2013, 0
      %v2035 = vsel %vm681, %v2014, 0
      %v2038 = vsel %vm681, %v2015, 0
      %v2041 = vsel %vm681, %v2016, 0
      %v2044 = vsel %vm681, %v2017, 0
      %v2047 = vsel %vm681, %v2018, 0
      %v2050 = vsel %vm681, %v2019, 0
      %v2053 = vsel %vm681, %v2020, 0
      %v2056 = vsel %vm681, %v2021, 0
      %v2059 = vsel %vm681, %v2022, 0
      %v2062 = vsel %vm681, %v2023, 0
      %v2065 = vsel %vm681, %v2024, 0
      %v2068 = vsel %vm681, %v2025, 0
      %v2071 = vsel %vm681, %v2026, 0
      %v2074 = vsel %vm681, %v2027, 0
      %v2077 = vsel %vm730, %v1979, 0
      %2079 = vmatprep.subr.bf16.mxu0 0
      %2080 = vmatpush1.bf16.msra.mxu0 0
      %2081 = vmatprep.subr.bf16.mxu0 0
      %2082 = vmatpush1.bf16.msra.mxu0 0
      %2083 = vmatprep.subr.bf16.mxu0 0
      %2084 = vmatpush1.bf16.msra.mxu0 0
      %2085 = vmatprep.subr.bf16.mxu0 0
      %2086 = vmatpush1.bf16.msra.mxu0 0
      %2087 = vmatprep.subr.bf16.mxu0 0
      %2088 = vmatpush1.bf16.msra.mxu0 0
      %2089 = vmatprep.subr.bf16.mxu0 0
      %2090 = vmatpush1.bf16.msra.mxu0 0
      %2091 = vmatprep.subr.bf16.mxu0 0
      %2092 = vmatpush1.bf16.msra.mxu0 0
      %2093 = vmatprep.subr.bf16.mxu0 0
      %2094 = vmatpush1.bf16.msra.mxu0 %v2077
      %2095 = vmatprep.subr.bf16.mxu0 0
      %2096 = vmatpush2.bf16.msra.mxu0 0
      %2097 = vmatprep.subr.bf16.mxu0 0
      %2098 = vmatpush2.bf16.msra.mxu0 0
      %2099 = vmatprep.subr.bf16.mxu0 0
      %2100 = vmatpush2.bf16.msra.mxu0 0
      %2101 = vmatprep.subr.bf16.mxu0 0
      %2102 = vmatpush2.bf16.msra.mxu0 0
      %2103 = vmatprep.subr.bf16.mxu0 0
      %2104 = vmatpush2.bf16.msra.mxu0 0
      %2105 = vmatprep.subr.bf16.mxu0 0
      %2106 = vmatpush2.bf16.msra.mxu0 0
      %2107 = vmatprep.subr.bf16.mxu0 0
      %2108 = vmatpush2.bf16.msra.mxu0 0
      %2109 = vmatprep.subr.bf16.mxu0 0
      %2110 = vmatpush2.bf16.msra.mxu0 0
      %2111 = vmatprep.mubr.bf16.mxu0 0
      %2112 = vmatmul.mubr.bf16.gmra.mxu0 %v2029
      %v2113 = vpop.f32.mrf.mxu0
      %v2114 = vadd.f32 0.0, %v2113
      %v2115 = vpop.f32.mrf.mxu0
      %v2116 = vpop.f32.mrf.mxu0
      %v2117 = vadd.f32 0.0, %v2116
      %v2118 = vpop.f32.mrf.mxu0
      %2119 = vmatprep.mubr.bf16.mxu0 0
      %2120 = vmatmul.mubr.bf16.gmra.mxu0 %v2032
      %v2121 = vpop.f32.mrf.mxu0
      %v2122 = vadd.f32 0.0, %v2121
      %v2123 = vpop.f32.mrf.mxu0
      %v2124 = vpop.f32.mrf.mxu0
      %v2125 = vadd.f32 0.0, %v2124
      %v2126 = vpop.f32.mrf.mxu0
      %2127 = vmatprep.mubr.bf16.mxu0 0
      %2128 = vmatmul.mubr.bf16.gmra.mxu0 %v2035
      %v2129 = vpop.f32.mrf.mxu0
      %v2130 = vadd.f32 0.0, %v2129
      %v2131 = vpop.f32.mrf.mxu0
      %v2132 = vpop.f32.mrf.mxu0
      %v2133 = vadd.f32 0.0, %v2132
      %v2134 = vpop.f32.mrf.mxu0
      %2135 = vmatprep.mubr.bf16.mxu0 0
      %2136 = vmatmul.mubr.bf16.gmra.mxu0 %v2038
      %v2137 = vpop.f32.mrf.mxu0
      %v2138 = vadd.f32 0.0, %v2137
      %v2139 = vpop.f32.mrf.mxu0
      %v2140 = vpop.f32.mrf.mxu0
      %v2141 = vadd.f32 0.0, %v2140
      %v2142 = vpop.f32.mrf.mxu0
      %2143 = vmatprep.mubr.bf16.mxu0 0
      %2144 = vmatmul.mubr.bf16.gmra.mxu0 %v2041
      %v2145 = vpop.f32.mrf.mxu0
      %v2146 = vadd.f32 0.0, %v2145
      %v2147 = vpop.f32.mrf.mxu0
      %v2148 = vpop.f32.mrf.mxu0
      %v2149 = vadd.f32 0.0, %v2148
      %v2150 = vpop.f32.mrf.mxu0
      %2151 = vmatprep.mubr.bf16.mxu0 0
      %2152 = vmatmul.mubr.bf16.gmra.mxu0 %v2044
      %v2153 = vpop.f32.mrf.mxu0
      %v2154 = vadd.f32 0.0, %v2153
      %v2155 = vpop.f32.mrf.mxu0
      %v2156 = vpop.f32.mrf.mxu0
      %v2157 = vadd.f32 0.0, %v2156
      %v2158 = vpop.f32.mrf.mxu0
      %2159 = vmatprep.mubr.bf16.mxu0 0
      %2160 = vmatmul.mubr.bf16.gmra.mxu0 %v2047
      %v2161 = vpop.f32.mrf.mxu0
      %v2162 = vadd.f32 0.0, %v2161
      %v2163 = vpop.f32.mrf.mxu0
      %v2164 = vpop.f32.mrf.mxu0
      %v2165 = vadd.f32 0.0, %v2164
      %v2166 = vpop.f32.mrf.mxu0
      %2167 = vmatprep.mubr.bf16.mxu0 0
      %2168 = vmatmul.mubr.bf16.gmra.mxu0 %v2050
      %v2169 = vpop.f32.mrf.mxu0
      %v2170 = vadd.f32 0.0, %v2169
      %v2171 = vpop.f32.mrf.mxu0
      %v2172 = vpop.f32.mrf.mxu0
      %v2173 = vadd.f32 0.0, %v2172
      %v2174 = vpop.f32.mrf.mxu0
      %2175 = vmatprep.mubr.bf16.mxu0 0
      %2176 = vmatmul.mubr.bf16.gmra.mxu0 %v2053
      %v2177 = vpop.f32.mrf.mxu0
      %v2178 = vadd.f32 0.0, %v2177
      %v2179 = vpop.f32.mrf.mxu0
      %v2180 = vpop.f32.mrf.mxu0
      %v2181 = vadd.f32 0.0, %v2180
      %v2182 = vpop.f32.mrf.mxu0
      %2183 = vmatprep.mubr.bf16.mxu0 0
      %2184 = vmatmul.mubr.bf16.gmra.mxu0 %v2056
      %v2185 = vpop.f32.mrf.mxu0
      %v2186 = vadd.f32 0.0, %v2185
      %v2187 = vpop.f32.mrf.mxu0
      %v2188 = vpop.f32.mrf.mxu0
      %v2189 = vadd.f32 0.0, %v2188
      %v2190 = vpop.f32.mrf.mxu0
      %2191 = vmatprep.mubr.bf16.mxu0 0
      %2192 = vmatmul.mubr.bf16.gmra.mxu0 %v2059
      %v2193 = vpop.f32.mrf.mxu0
      %v2194 = vadd.f32 0.0, %v2193
      %v2195 = vpop.f32.mrf.mxu0
      %v2196 = vpop.f32.mrf.mxu0
      %v2197 = vadd.f32 0.0, %v2196
      %v2198 = vpop.f32.mrf.mxu0
      %2199 = vmatprep.mubr.bf16.mxu0 0
      %2200 = vmatmul.mubr.bf16.gmra.mxu0 %v2062
      %v2201 = vpop.f32.mrf.mxu0
      %v2202 = vadd.f32 0.0, %v2201
      %v2203 = vpop.f32.mrf.mxu0
      %v2204 = vpop.f32.mrf.mxu0
      %v2205 = vadd.f32 0.0, %v2204
      %v2206 = vpop.f32.mrf.mxu0
      %2207 = vmatprep.mubr.bf16.mxu0 0
      %2208 = vmatmul.mubr.bf16.gmra.mxu0 %v2065
      %v2209 = vpop.f32.mrf.mxu0
      %v2210 = vadd.f32 0.0, %v2209
      %v2211 = vpop.f32.mrf.mxu0
      %v2212 = vpop.f32.mrf.mxu0
      %v2213 = vadd.f32 0.0, %v2212
      %v2214 = vpop.f32.mrf.mxu0
      %2215 = vmatprep.mubr.bf16.mxu0 0
      %2216 = vmatmul.mubr.bf16.gmra.mxu0 %v2068
      %v2217 = vpop.f32.mrf.mxu0
      %v2218 = vadd.f32 0.0, %v2217
      %v2219 = vpop.f32.mrf.mxu0
      %v2220 = vpop.f32.mrf.mxu0
      %v2221 = vadd.f32 0.0, %v2220
      %v2222 = vpop.f32.mrf.mxu0
      %2223 = vmatprep.mubr.bf16.mxu0 0
      %2224 = vmatmul.mubr.bf16.gmra.mxu0 %v2071
      %v2225 = vpop.f32.mrf.mxu0
      %v2226 = vadd.f32 0.0, %v2225
      %v2227 = vpop.f32.mrf.mxu0
      %v2228 = vpop.f32.mrf.mxu0
      %v2229 = vadd.f32 0.0, %v2228
      %v2230 = vpop.f32.mrf.mxu0
      %2231 = vmatprep.mubr.bf16.mxu0 0
      %2232 = vmatmul.mubr.bf16.gmra.mxu0 %v2074
      %v2233 = vpop.f32.mrf.mxu0
      %v2234 = vadd.f32 0.0, %v2233
      %v2235 = vpop.f32.mrf.mxu0
      %v2236 = vpop.f32.mrf.mxu0
      %v2237 = vadd.f32 0.0, %v2236
      %v2238 = vpop.f32.mrf.mxu0
      %2239 = vdwg.mxu0
      %v2240 = vadd.f32 %v1514, %v2114
      %v2241 = vadd.f32 %v1515, %v2117
      %v2242 = vadd.f32 %v1516, %v2122
      %v2243 = vadd.f32 %v1517, %v2125
      %v2244 = vadd.f32 %v1518, %v2130
      %v2245 = vadd.f32 %v1519, %v2133
      %v2246 = vadd.f32 %v1520, %v2138
      %v2247 = vadd.f32 %v1521, %v2141
      %v2248 = vadd.f32 %v1522, %v2146
      %v2249 = vadd.f32 %v1523, %v2149
      %v2250 = vadd.f32 %v1524, %v2154
      %v2251 = vadd.f32 %v1525, %v2157
      %v2252 = vadd.f32 %v1526, %v2162
      %v2253 = vadd.f32 %v1527, %v2165
      %v2254 = vadd.f32 %v1528, %v2170
      %v2255 = vadd.f32 %v1529, %v2173
      %v2256 = vadd.f32 %v1530, %v2178
      %v2257 = vadd.f32 %v1531, %v2181
      %v2258 = vadd.f32 %v1532, %v2186
      %v2259 = vadd.f32 %v1533, %v2189
      %v2260 = vadd.f32 %v1534, %v2194
      %v2261 = vadd.f32 %v1535, %v2197
      %v2262 = vadd.f32 %v1536, %v2202
      %v2263 = vadd.f32 %v1537, %v2205
      %v2264 = vadd.f32 %v1538, %v2210
      %v2265 = vadd.f32 %v1539, %v2213
      %v2266 = vadd.f32 %v1540, %v2218
      %v2267 = vadd.f32 %v1541, %v2221
      %v2268 = vadd.f32 %v1542, %v2226
      %v2269 = vadd.f32 %v1543, %v2229
      %v2270 = vadd.f32 %v1544, %v2234
      %v2271 = vadd.f32 %v1545, %v2237
      %v2272 = vld [vmem:[%s2] sm:$0x1]
      %v2274 = vlaneseq
      %v2275 = vshrl.u32 %v2274, 7
      %v2276 = vsub.s32 0, %v2275
      %v2277 = vrot.slane %v2272, %v2276
      %v2279 = vadd.f32 %v2240, %v2277
      %v2280 = vadd.f32 %v2241, %v2277
      %v2281 = vadd.f32 %v2242, %v2277
      %v2282 = vadd.f32 %v2243, %v2277
      %v2283 = vadd.f32 %v2244, %v2277
      %v2284 = vadd.f32 %v2245, %v2277
      %v2285 = vadd.f32 %v2246, %v2277
      %v2286 = vadd.f32 %v2247, %v2277
      %v2287 = vadd.f32 %v2248, %v2277
      %v2288 = vadd.f32 %v2249, %v2277
      %v2289 = vadd.f32 %v2250, %v2277
      %v2290 = vadd.f32 %v2251, %v2277
      %v2291 = vadd.f32 %v2252, %v2277
      %v2292 = vadd.f32 %v2253, %v2277
      %v2293 = vadd.f32 %v2254, %v2277
      %v2294 = vadd.f32 %v2255, %v2277
      %v2295 = vadd.f32 %v2256, %v2277
      %v2296 = vadd.f32 %v2257, %v2277
      %v2297 = vadd.f32 %v2258, %v2277
      %v2298 = vadd.f32 %v2259, %v2277
      %v2299 = vadd.f32 %v2260, %v2277
      %v2300 = vadd.f32 %v2261, %v2277
      %v2301 = vadd.f32 %v2262, %v2277
      %v2302 = vadd.f32 %v2263, %v2277
      %v2303 = vadd.f32 %v2264, %v2277
      %v2304 = vadd.f32 %v2265, %v2277
      %v2305 = vadd.f32 %v2266, %v2277
      %v2306 = vadd.f32 %v2267, %v2277
      %v2307 = vadd.f32 %v2268, %v2277
      %v2308 = vadd.f32 %v2269, %v2277
      %v2309 = vadd.f32 %v2270, %v2277
      %v2310 = vadd.f32 %v2271, %v2277
      %vm2311 = vcmp.ge.f32.partialorder %v2279, 0.0
      %vm2312 = vcmp.ge.f32.partialorder %v2280, 0.0
      %vm2313 = vcmp.ge.f32.partialorder %v2281, 0.0
      %vm2314 = vcmp.ge.f32.partialorder %v2282, 0.0
      %vm2315 = vcmp.ge.f32.partialorder %v2283, 0.0
      %vm2316 = vcmp.ge.f32.partialorder %v2284, 0.0
      %vm2317 = vcmp.ge.f32.partialorder %v2285, 0.0
      %vm2318 = vcmp.ge.f32.partialorder %v2286, 0.0
      %vm2319 = vcmp.ge.f32.partialorder %v2287, 0.0
      %vm2320 = vcmp.ge.f32.partialorder %v2288, 0.0
      %vm2321 = vcmp.ge.f32.partialorder %v2289, 0.0
      %vm2322 = vcmp.ge.f32.partialorder %v2290, 0.0
      %vm2323 = vcmp.ge.f32.partialorder %v2291, 0.0
      %vm2324 = vcmp.ge.f32.partialorder %v2292, 0.0
      %vm2325 = vcmp.ge.f32.partialorder %v2293, 0.0
      %vm2326 = vcmp.ge.f32.partialorder %v2294, 0.0
      %vm2327 = vcmp.ge.f32.partialorder %v2295, 0.0
      %vm2328 = vcmp.ge.f32.partialorder %v2296, 0.0
      %vm2329 = vcmp.ge.f32.partialorder %v2297, 0.0
      %vm2330 = vcmp.ge.f32.partialorder %v2298, 0.0
      %vm2331 = vcmp.ge.f32.partialorder %v2299, 0.0
      %vm2332 = vcmp.ge.f32.partialorder %v2300, 0.0
      %vm2333 = vcmp.ge.f32.partialorder %v2301, 0.0
      %vm2334 = vcmp.ge.f32.partialorder %v2302, 0.0
      %vm2335 = vcmp.ge.f32.partialorder %v2303, 0.0
      %vm2336 = vcmp.ge.f32.partialorder %v2304, 0.0
      %vm2337 = vcmp.ge.f32.partialorder %v2305, 0.0
      %vm2338 = vcmp.ge.f32.partialorder %v2306, 0.0
      %vm2339 = vcmp.ge.f32.partialorder %v2307, 0.0
      %vm2340 = vcmp.ge.f32.partialorder %v2308, 0.0
      %vm2341 = vcmp.ge.f32.partialorder %v2309, 0.0
      %vm2342 = vcmp.ge.f32.partialorder %v2310, 0.0
      %v2343 = vmul.f32 %v2279, 0.2
      %v2344 = vmul.f32 %v2280, 0.2
      %v2345 = vmul.f32 %v2281, 0.2
      %v2346 = vmul.f32 %v2282, 0.2
      %v2347 = vmul.f32 %v2283, 0.2
      %v2348 = vmul.f32 %v2284, 0.2
      %v2349 = vmul.f32 %v2285, 0.2
      %v2350 = vmul.f32 %v2286, 0.2
      %v2351 = vmul.f32 %v2287, 0.2
      %v2352 = vmul.f32 %v2288, 0.2
      %v2353 = vmul.f32 %v2289, 0.2
      %v2354 = vmul.f32 %v2290, 0.2
      %v2355 = vmul.f32 %v2291, 0.2
      %v2356 = vmul.f32 %v2292, 0.2
      %v2357 = vmul.f32 %v2293, 0.2
      %v2358 = vmul.f32 %v2294, 0.2
      %v2359 = vmul.f32 %v2295, 0.2
      %v2360 = vmul.f32 %v2296, 0.2
      %v2361 = vmul.f32 %v2297, 0.2
      %v2362 = vmul.f32 %v2298, 0.2
      %v2363 = vmul.f32 %v2299, 0.2
      %v2364 = vmul.f32 %v2300, 0.2
      %v2365 = vmul.f32 %v2301, 0.2
      %v2366 = vmul.f32 %v2302, 0.2
      %v2367 = vmul.f32 %v2303, 0.2
      %v2368 = vmul.f32 %v2304, 0.2
      %v2369 = vmul.f32 %v2305, 0.2
      %v2370 = vmul.f32 %v2306, 0.2
      %v2371 = vmul.f32 %v2307, 0.2
      %v2372 = vmul.f32 %v2308, 0.2
      %v2373 = vmul.f32 %v2309, 0.2
      %v2374 = vmul.f32 %v2310, 0.2
      %v2375 = vsel %vm2311, %v2279, %v2343
      %v2376 = vsel %vm2312, %v2280, %v2344
      %v2377 = vsel %vm2313, %v2281, %v2345
      %v2378 = vsel %vm2314, %v2282, %v2346
      %v2379 = vsel %vm2315, %v2283, %v2347
      %v2380 = vsel %vm2316, %v2284, %v2348
      %v2381 = vsel %vm2317, %v2285, %v2349
      %v2382 = vsel %vm2318, %v2286, %v2350
      %v2383 = vsel %vm2319, %v2287, %v2351
      %v2384 = vsel %vm2320, %v2288, %v2352
      %v2385 = vsel %vm2321, %v2289, %v2353
      %v2386 = vsel %vm2322, %v2290, %v2354
      %v2387 = vsel %vm2323, %v2291, %v2355
      %v2388 = vsel %vm2324, %v2292, %v2356
      %v2389 = vsel %vm2325, %v2293, %v2357
      %v2390 = vsel %vm2326, %v2294, %v2358
      %v2391 = vsel %vm2327, %v2295, %v2359
      %v2392 = vsel %vm2328, %v2296, %v2360
      %v2393 = vsel %vm2329, %v2297, %v2361
      %v2394 = vsel %vm2330, %v2298, %v2362
      %v2395 = vsel %vm2331, %v2299, %v2363
      %v2396 = vsel %vm2332, %v2300, %v2364
      %v2397 = vsel %vm2333, %v2301, %v2365
      %v2398 = vsel %vm2334, %v2302, %v2366
      %v2399 = vsel %vm2335, %v2303, %v2367
      %v2400 = vsel %vm2336, %v2304, %v2368
      %v2401 = vsel %vm2337, %v2305, %v2369
      %v2402 = vsel %vm2338, %v2306, %v2370
      %v2403 = vsel %vm2339, %v2307, %v2371
      %v2404 = vsel %vm2340, %v2308, %v2372
      %v2405 = vsel %vm2341, %v2309, %v2373
      %v2406 = vsel %vm2342, %v2310, %v2374
      %v2407 = vpack.c.bf16 %v2376, %v2375
      %v2408 = vpack.c.bf16 %v2378, %v2377
      %v2409 = vpack.c.bf16 %v2380, %v2379
      %v2410 = vpack.c.bf16 %v2382, %v2381
      %v2411 = vpack.c.bf16 %v2384, %v2383
      %v2412 = vpack.c.bf16 %v2386, %v2385
      %v2413 = vpack.c.bf16 %v2388, %v2387
      %v2414 = vpack.c.bf16 %v2390, %v2389
      %v2415 = vpack.c.bf16 %v2392, %v2391
      %v2416 = vpack.c.bf16 %v2394, %v2393
      %v2417 = vpack.c.bf16 %v2396, %v2395
      %v2418 = vpack.c.bf16 %v2398, %v2397
      %v2419 = vpack.c.bf16 %v2400, %v2399
      %v2420 = vpack.c.bf16 %v2402, %v2401
      %v2421 = vpack.c.bf16 %v2404, %v2403
      %v2422 = vpack.c.bf16 %v2406, %v2405
      %v2439 = vunpack.c.l.b16 %v2407
      %v2440 = vunpack.c.h.b16 %v2407
      %v2441 = vunpack.c.l.b16 %v2408
      %v2442 = vunpack.c.h.b16 %v2408
      %v2443 = vunpack.c.l.b16 %v2409
      %v2444 = vunpack.c.h.b16 %v2409
      %v2445 = vunpack.c.l.b16 %v2410
      %v2446 = vunpack.c.h.b16 %v2410
      %v2447 = vunpack.c.l.b16 %v2411
      %v2448 = vunpack.c.h.b16 %v2411
      %v2449 = vunpack.c.l.b16 %v2412
      %v2450 = vunpack.c.h.b16 %v2412
      %v2451 = vunpack.c.l.b16 %v2413
      %v2452 = vunpack.c.h.b16 %v2413
      %v2453 = vunpack.c.l.b16 %v2414
      %v2454 = vunpack.c.h.b16 %v2414
      %v2455 = vunpack.c.l.b16 %v2415
      %v2456 = vunpack.c.h.b16 %v2415
      %v2457 = vunpack.c.l.b16 %v2416
      %v2458 = vunpack.c.h.b16 %v2416
      %v2459 = vunpack.c.l.b16 %v2417
      %v2460 = vunpack.c.h.b16 %v2417
      %v2461 = vunpack.c.l.b16 %v2418
      %v2462 = vunpack.c.h.b16 %v2418
      %v2463 = vunpack.c.l.b16 %v2419
      %v2464 = vunpack.c.h.b16 %v2419
      %v2465 = vunpack.c.l.b16 %v2420
      %v2466 = vunpack.c.h.b16 %v2420
      %v2467 = vunpack.c.l.b16 %v2421
      %v2468 = vunpack.c.h.b16 %v2421
      %v2469 = vunpack.c.l.b16 %v2422
      %v2470 = vunpack.c.h.b16 %v2422
      %v2471 = vpack.c.b16 %v2439, %v2439
      %v2472 = vpack.c.b16 %v2440, %v2440
      %v2473 = vpack.c.b16 %v2441, %v2441
      %v2474 = vpack.c.b16 %v2442, %v2442
      %v2475 = vpack.c.b16 %v2443, %v2443
      %v2476 = vpack.c.b16 %v2444, %v2444
      %v2477 = vpack.c.b16 %v2445, %v2445
      %v2478 = vpack.c.b16 %v2446, %v2446
      %v2479 = vpack.c.b16 %v2447, %v2447
      %v2480 = vpack.c.b16 %v2448, %v2448
      %v2481 = vpack.c.b16 %v2449, %v2449
      %v2482 = vpack.c.b16 %v2450, %v2450
      %v2483 = vpack.c.b16 %v2451, %v2451
      %v2484 = vpack.c.b16 %v2452, %v2452
      %v2485 = vpack.c.b16 %v2453, %v2453
      %v2486 = vpack.c.b16 %v2454, %v2454
      %v2487 = vpack.c.b16 %v2455, %v2455
      %v2488 = vpack.c.b16 %v2456, %v2456
      %v2489 = vpack.c.b16 %v2457, %v2457
      %v2490 = vpack.c.b16 %v2458, %v2458
      %v2491 = vpack.c.b16 %v2459, %v2459
      %v2492 = vpack.c.b16 %v2460, %v2460
      %v2493 = vpack.c.b16 %v2461, %v2461
      %v2494 = vpack.c.b16 %v2462, %v2462
      %v2495 = vpack.c.b16 %v2463, %v2463
      %v2496 = vpack.c.b16 %v2464, %v2464
      %v2497 = vpack.c.b16 %v2465, %v2465
      %v2498 = vpack.c.b16 %v2466, %v2466
      %v2499 = vpack.c.b16 %v2467, %v2467
      %v2500 = vpack.c.b16 %v2468, %v2468
      %v2501 = vpack.c.b16 %v2469, %v2469
      %v2502 = vpack.c.b16 %v2470, %v2470
      %vm2535 = vcmask 60416
      %2536 = vst.msk [vmem:[%s192] sm:$0xf] %vm2535, %v2471
      %2537 = vst.msk [vmem:[%s192 + $0x4] sm:$0xf] %vm2535, %v2472
      %2538 = vst.msk [vmem:[%s192 + $0x8] sm:$0xf] %vm2535, %v2473
      %2539 = vst.msk [vmem:[%s192 + $0xc] sm:$0xf] %vm2535, %v2474
      %2540 = vst.msk [vmem:[%s192 + $0x10] sm:$0xf] %vm2535, %v2475
      %2541 = vst.msk [vmem:[%s192 + $0x14] sm:$0xf] %vm2535, %v2476
      %2542 = vst.msk [vmem:[%s192 + $0x18] sm:$0xf] %vm2535, %v2477
      %2543 = vst.msk [vmem:[%s192 + $0x1c] sm:$0xf] %vm2535, %v2478
      %2544 = vst.msk [vmem:[%s192 + $0x20] sm:$0xf] %vm2535, %v2479
      %2545 = vst.msk [vmem:[%s192 + $0x24] sm:$0xf] %vm2535, %v2480
      %2546 = vst.msk [vmem:[%s192 + $0x28] sm:$0xf] %vm2535, %v2481
      %2547 = vst.msk [vmem:[%s192 + $0x2c] sm:$0xf] %vm2535, %v2482
      %2548 = vst.msk [vmem:[%s192 + $0x30] sm:$0xf] %vm2535, %v2483
      %2549 = vst.msk [vmem:[%s192 + $0x34] sm:$0xf] %vm2535, %v2484
      %2550 = vst.msk [vmem:[%s192 + $0x38] sm:$0xf] %vm2535, %v2485
      %2551 = vst.msk [vmem:[%s192 + $0x3c] sm:$0xf] %vm2535, %v2486
      %2552 = vst.msk [vmem:[%s192 + $0x40] sm:$0xf] %vm2535, %v2487
      %2553 = vst.msk [vmem:[%s192 + $0x44] sm:$0xf] %vm2535, %v2488
      %2554 = vst.msk [vmem:[%s192 + $0x48] sm:$0xf] %vm2535, %v2489
      %2555 = vst.msk [vmem:[%s192 + $0x4c] sm:$0xf] %vm2535, %v2490
      %2556 = vst.msk [vmem:[%s192 + $0x50] sm:$0xf] %vm2535, %v2491
      %2557 = vst.msk [vmem:[%s192 + $0x54] sm:$0xf] %vm2535, %v2492
      %2558 = vst.msk [vmem:[%s192 + $0x58] sm:$0xf] %vm2535, %v2493
      %2559 = vst.msk [vmem:[%s192 + $0x5c] sm:$0xf] %vm2535, %v2494
      %2560 = vst.msk [vmem:[%s192 + $0x60] sm:$0xf] %vm2535, %v2495
      %2561 = vst.msk [vmem:[%s192 + $0x64] sm:$0xf] %vm2535, %v2496
      %2562 = vst.msk [vmem:[%s192 + $0x68] sm:$0xf] %vm2535, %v2497
      %2563 = vst.msk [vmem:[%s192 + $0x6c] sm:$0xf] %vm2535, %v2498
      %2564 = vst.msk [vmem:[%s192 + $0x70] sm:$0xf] %vm2535, %v2499
      %2565 = vst.msk [vmem:[%s192 + $0x74] sm:$0xf] %vm2535, %v2500
      %2566 = vst.msk [vmem:[%s192 + $0x78] sm:$0xf] %vm2535, %v2501
      %2567 = vst.msk [vmem:[%s192 + $0x7c] sm:$0xf] %vm2535, %v2502
      %s2568 = smul.u32 32, %s19
      %p2569 = scmp.lt.s32.totalorder %s18, 1
      %s2570 = scalar_select %p2569, %s18, 1
      %p2571 = scmp.lt.s32.totalorder %s2568, 31
      %s2572 = scalar_select %p2571, %s2568, 31
      %s2573 = smul.addr %s2570, 32
      %s2574 = sadd.s32 %s2572, %s2573
      %s2575 = smul.addr %s2574, 4
      %s2576 = scalar_lea.vmem %s3, %s2575
      // Predicated region
      $region33: #{discriminator_forward.4} parent=31 // pred_check
        %p2577 = pneg %p114
      $region34: #{discriminator_forward.4} parent=31 // pred_check_branch
        %2579 = sbr.rel (%p2577) target = $region36
      $region35: #{discriminator_forward.4} parent=31 // pred_region
        %s2580 = smul.u32 32, %s19
      $region36: #{discriminator_forward.4} parent=31 // pred_fallthru
        _
    $region32: #{discriminator_forward.4} parent=5 // pred_fallthru
      _
    %p2581 = scmp.le.s32.totalorder 2, %s9
    // Predicated region
    $region37: #{discriminator_forward.4} parent=5 // pred_check
      %p2582 = pneg %p2581
    $region38: #{discriminator_forward.4} parent=5 // pred_check_branch
      %2584 = sbr.rel (%p2582) target = $region40
    $region39: #{discriminator_forward.4} parent=5 // pred_region
      %s2585 = ssub.s32 %s9, 2
      // Predicated region
      $region41: #{discriminator_forward.4} parent=39 // pred_check
        %p2586 = pneg %p120
      $region42: #{discriminator_forward.4} parent=39 // pred_check_branch
        %2588 = sbr.rel (%p2586) target = $region44
      $region43: #{discriminator_forward.4} parent=39 // pred_region
        %s2589 = smul.u32 32, %s21
        %p2590 = scmp.lt.s32.totalorder %s20, 1
        %s2591 = scalar_select %p2590, %s20, 1
        %p2592 = scmp.lt.s32.totalorder %s2589, 31
        %s2593 = scalar_select %p2592, %s2589, 31
        %s2594 = smul.addr %s2591, 32
        %s2595 = sadd.s32 %s2593, %s2594
        %s2596 = smul.addr %s2595, 4
        %s2597 = scalar_lea.vmem %s3, %s2596
      $region44: #{discriminator_forward.4} parent=39 // pred_fallthru
        _
    $region40: #{discriminator_forward.4} parent=5 // pred_fallthru
      _
  $region6: #{discriminator_forward.4} parent=0 // loop_footer
    %s13 = sadd.s32 1, %s9
  $region7: #{discriminator_forward.4} parent=0 // loop_footer_branch
    %8 = sbr.rel target = $region3
  $region8: #{discriminator_forward.4} parent=0 // loop_exit
    _

// kernel: discriminator_forward.5
$region0: #{discriminator_forward.5}
  #allocation0 [shape = 'u32[]', space=smem, size = 0x4, offset = 0x4, fixed_abs, tag = 'smem constant byte address 0x4 - core index']
  #allocation1 [shape = 'u32[144,128]{1,0:T(1,128)}', space=vmem, size = 0x12000, scoped, tag = 'internal scratch']
  %s0 = inlined_call_operand.vmem [shape: bf16[2,9,9,32], index: 0, kind: input, shape index: {}]
  %s1 = inlined_call_operand.vmem [shape: bf16[4,32,128], index: 1, kind: input, shape index: {}]
  %s2 = inlined_call_operand.vmem [shape: f32[1,32], index: 2, kind: input, shape index: {}]
  %s3 = inlined_call_operand.vmem [shape: bf16[2,64,32], index: 3, kind: output, shape index: {0}]
  %s4 = inlined_call_operand.vmem [shape: f32[2,1,2,32], index: 4, kind: output, shape index: {1}]
  %5 = xla_tuple %s3, %s4
  %s6 = sld [smem:[#allocation0]]
  $region53: #{discriminator_forward.5} parent=0
    _
  %s8 = ssub.s32 1, %s6
  %s9 = scalar_select 0, %s8, %s6
  loop: start=0, step=1, limit=4
  $region2: #{discriminator_forward.5} parent=0 // loop_pre_header
    _
  $region3: #{discriminator_forward.5} parent=0 // loop_header
    %s11 = sphi 0, %s15
    %p12 = scmp.ge.s32.totalorder %s11, 4
    %s18 = sphi 0, %s30
    %s19 = sphi 0, %s26
    %s20 = sphi 0, %s18
    %s21 = sphi 0, %s19
    %s22 = sphi 0, %s20
    %s23 = sphi 0, %s21
    %s33 = sphi 0, %s35
    %s36 = sphi 0, %s33
    %s37 = sphi 0, %s36
    %s53 = sphi 0, %s37
    %s57 = sphi 0, %s57
    %s59 = sphi 0, %s57
    %s60 = sphi 0, %s59
    %s74 = sphi 0, %s60
    %s78 = sphi 0, %s78
    %s80 = sphi 0, %s78
    %s81 = sphi 0, %s80
    %s95 = sphi 0, %s81
    %s103 = sphi 0, %s105
    %s106 = sphi 0, %s103
    %s107 = sphi 0, %s106
    %s123 = sphi 0, %s107
    %s131 = sphi 0, %s133
    %s134 = sphi 0, %s131
    %s135 = sphi 0, %s134
    %s151 = sphi 0, %s135
  $region4: #{discriminator_forward.5} parent=0 // loop_header_branch
    %14 = sbr.rel (%p12) target = $region8
  $region5: #{discriminator_forward.5} parent=0 // loop_body
    %s16 = ssub.s32 %s11, 1
    %s17 = ssub.s32 %s11, 2
    %s24 = sadd.s32 1, %s19
    %p25 = scmp.ge.s32.totalorder %s24, 1
    %s26 = scalar_select %p25, 0, %s24
    %s27 = sadd.s32 1, %s18
    %s28 = scalar_select %p25, %s27, %s18
    %p29 = scmp.ge.s32.totalorder %s28, 2
    %s30 = scalar_select %p29, 0, %s28
    %s31 = ssub.s32 %s18, %s30
    %p32 = scmp.eq.s32.totalorder %s31, 0
    %s34 = sadd.s32 %s33, 1
    %s35 = scalar_select %p32, %s33, %s34
    %p38 = pneg %p32
    %p39 = scmp.eq.s32.totalorder %s11, 1
    %p40 = por %p38, %p39
    %p41 = scmp.ne.s32.totalorder %s33, %s36
    %p42 = scmp.eq.s32.totalorder %s11, 0
    %p43 = por %p41, %p42
    %p44 = scmp.ne.s32.totalorder %s33, %s36
    %p45 = scmp.eq.s32.totalorder %s16, 1
    %p46 = por %p44, %p45
    %p47 = scmp.ne.s32.totalorder %s36, %s37
    %p48 = scmp.eq.s32.totalorder %s16, 0
    %p49 = por %p47, %p48
    %p50 = scmp.ne.s32.totalorder %s36, %s37
    %p51 = scmp.eq.s32.totalorder %s17, 1
    %p52 = por %p50, %p51
    %p54 = scmp.ne.s32.totalorder %s37, %s53
    %p55 = scmp.eq.s32.totalorder %s17, 0
    %p56 = por %p54, %p55
    %s58 = sadd.s32 %s57, 1
    %p61 = scmp.eq.s32.totalorder %s11, 1
    %p62 = scmp.ne.s32.totalorder %s57, %s59
    %p63 = scmp.eq.s32.totalorder %s11, 0
    %p64 = por %p62, %p63
    %p65 = scmp.ne.s32.totalorder %s57, %s59
    %p66 = scmp.eq.s32.totalorder %s16, 1
    %p67 = por %p65, %p66
    %p68 = scmp.ne.s32.totalorder %s59, %s60
    %p69 = scmp.eq.s32.totalorder %s16, 0
    %p70 = por %p68, %p69
    %p71 = scmp.ne.s32.totalorder %s59, %s60
    %p72 = scmp.eq.s32.totalorder %s17, 1
    %p73 = por %p71, %p72
    %p75 = scmp.ne.s32.totalorder %s60, %s74
    %p76 = scmp.eq.s32.totalorder %s17, 0
    %p77 = por %p75, %p76
    %s79 = sadd.s32 %s78, 1
    %p82 = scmp.eq.s32.totalorder %s11, 1
    %p83 = scmp.ne.s32.totalorder %s78, %s80
    %p84 = scmp.eq.s32.totalorder %s11, 0
    %p85 = por %p83, %p84
    %p86 = scmp.ne.s32.totalorder %s78, %s80
    %p87 = scmp.eq.s32.totalorder %s16, 1
    %p88 = por %p86, %p87
    %p89 = scmp.ne.s32.totalorder %s80, %s81
    %p90 = scmp.eq.s32.totalorder %s16, 0
    %p91 = por %p89, %p90
    %p92 = scmp.ne.s32.totalorder %s80, %s81
    %p93 = scmp.eq.s32.totalorder %s17, 1
    %p94 = por %p92, %p93
    %p96 = scmp.ne.s32.totalorder %s81, %s95
    %p97 = scmp.eq.s32.totalorder %s17, 0
    %p98 = por %p96, %p97
    %s99 = ssub.s32 %s18, %s30
    %s100 = ssub.s32 %s19, %s26
    %s101 = sor.u32 %s99, %s100
    %p102 = scmp.eq.s32.totalorder %s101, 0
    %s104 = sadd.s32 %s103, 1
    %s105 = scalar_select %p102, %s103, %s104
    %p108 = pneg %p102
    %p109 = scmp.eq.s32.totalorder %s11, 1
    %p110 = por %p108, %p109
    %p111 = scmp.ne.s32.totalorder %s103, %s106
    %p112 = scmp.eq.s32.totalorder %s11, 0
    %p113 = por %p111, %p112
    %p114 = scmp.ne.s32.totalorder %s103, %s106
    %p115 = scmp.eq.s32.totalorder %s16, 1
    %p116 = por %p114, %p115
    %p117 = scmp.ne.s32.totalorder %s106, %s107
    %p118 = scmp.eq.s32.totalorder %s16, 0
    %p119 = por %p117, %p118
    %p120 = scmp.ne.s32.totalorder %s106, %s107
    %p121 = scmp.eq.s32.totalorder %s17, 1
    %p122 = por %p120, %p121
    %p124 = scmp.ne.s32.totalorder %s107, %s123
    %p125 = scmp.eq.s32.totalorder %s17, 0
    %p126 = por %p124, %p125
    %s127 = ssub.s32 %s18, %s30
    %s128 = ssub.s32 %s19, %s26
    %s129 = sor.u32 %s127, %s128
    %p130 = scmp.eq.s32.totalorder %s129, 0
    %s132 = sadd.s32 %s131, 1
    %s133 = scalar_select %p130, %s131, %s132
    %p136 = pneg %p130
    %p137 = scmp.eq.s32.totalorder %s11, 1
    %p138 = por %p136, %p137
    %p139 = scmp.ne.s32.totalorder %s131, %s134
    %p140 = scmp.eq.s32.totalorder %s11, 0
    %p141 = por %p139, %p140
    %p142 = scmp.ne.s32.totalorder %s131, %s134
    %p143 = scmp.eq.s32.totalorder %s16, 1
    %p144 = por %p142, %p143
    %p145 = scmp.ne.s32.totalorder %s134, %s135
    %p146 = scmp.eq.s32.totalorder %s16, 0
    %p147 = por %p145, %p146
    %p148 = scmp.ne.s32.totalorder %s134, %s135
    %p149 = scmp.eq.s32.totalorder %s17, 1
    %p150 = por %p148, %p149
    %p152 = scmp.ne.s32.totalorder %s135, %s151
    %p153 = scmp.eq.s32.totalorder %s17, 0
    %p154 = por %p152, %p153
    %p155 = scmp.le.s32.totalorder 1, %s11
    %p156 = scmp.lt.s32.totalorder %s11, 3
    %p157 = pnand %p155, %p156
    %p158 = pneg %p157
    // Predicated region
    $region9: #{discriminator_forward.5} parent=5 // pred_check
      _
    $region10: #{discriminator_forward.5} parent=5 // pred_check_branch
      %160 = sbr.rel (%p157) target = $region12
    $region11: #{discriminator_forward.5} parent=5 // pred_region
      %s161 = ssub.s32 %s11, 1
      // Predicated region
      $region13: #{discriminator_forward.5} parent=11 // pred_check
        %p162 = pneg %p70
      $region14: #{discriminator_forward.5} parent=11 // pred_check_branch
        %164 = sbr.rel (%p162) target = $region16
      $region15: #{discriminator_forward.5} parent=11 // pred_region
        _
      $region16: #{discriminator_forward.5} parent=11 // pred_fallthru
        _
      // Predicated region
      $region17: #{discriminator_forward.5} parent=11 // pred_check
        %p165 = pneg %p91
      $region18: #{discriminator_forward.5} parent=11 // pred_check_branch
        %167 = sbr.rel (%p165) target = $region20
      $region19: #{discriminator_forward.5} parent=11 // pred_region
        _
      $region20: #{discriminator_forward.5} parent=11 // pred_fallthru
        _
    $region12: #{discriminator_forward.5} parent=5 // pred_fallthru
      _
    %p168 = scmp.lt.s32.totalorder %s11, 2
    // Predicated region
    $region21: #{discriminator_forward.5} parent=5 // pred_check
      %p169 = pneg %p168
    $region22: #{discriminator_forward.5} parent=5 // pred_check_branch
      %171 = sbr.rel (%p169) target = $region24
    $region23: #{discriminator_forward.5} parent=5 // pred_region
      // Predicated region
      $region25: #{discriminator_forward.5} parent=23 // pred_check
        %p172 = pneg %p43
      $region26: #{discriminator_forward.5} parent=23 // pred_check_branch
        %174 = sbr.rel (%p172) target = $region28
      $region27: #{discriminator_forward.5} parent=23 // pred_region
        %p175 = scmp.lt.s32.totalorder %s18, 1
        %s176 = scalar_select %p175, %s18, 1
        %s177 = smul.addr %s176, 18
        %s178 = smul.addr %s177, 4
        %s179 = scalar_lea.vmem %s0, %s178
      $region28: #{discriminator_forward.5} parent=23 // pred_fallthru
        _
    $region24: #{discriminator_forward.5} parent=5 // pred_fallthru
      _
    %p180 = scmp.le.s32.totalorder 1, %s11
    %p181 = scmp.lt.s32.totalorder %s11, 3
    %p182 = pnand %p180, %p181
    %p183 = pneg %p182
    // Predicated region
    $region29: #{discriminator_forward.5} parent=5 // pred_check
      _
    $region30: #{discriminator_forward.5} parent=5 // pred_check_branch
      %185 = sbr.rel (%p182) target = $region32
    $region31: #{discriminator_forward.5} parent=5 // pred_region
      %s186 = ssub.s32 %s11, 1
      %p187 = scmp.lt.s32.totalorder %s20, 1
      %s188 = scalar_select %p187, %s20, 1
      %s189 = smul.addr %s188, 18
      %s190 = smul.addr %s189, 4
      %s191 = scalar_lea.vmem %s0, %s190
      %p192 = pneg %p49
      %p193 = pneg %p46
      %p194 = pneg %p70
      %p195 = pneg %p67
      %p196 = pneg %p91
      %p197 = pneg %p88
      %p198 = pneg %p119
      %p199 = pneg %p116
      %s200 = smul.u32 8, %s21
      %p201 = scmp.lt.s32.totalorder %s20, 1
      %s202 = scalar_select %p201, %s20, 1
      %p203 = scmp.lt.s32.totalorder %s200, 7
      %s204 = scalar_select %p203, %s200, 7
      %s205 = smul.addr %s202, 8
      %s206 = sadd.s32 %s204, %s205
      %s207 = smul.addr %s206, 4
      %s208 = scalar_lea.vmem %s3, %s207
      %p209 = pneg %p147
      %p210 = pneg %p144
      %p211 = scmp.lt.s32.totalorder %s20, 1
      %s212 = scalar_select %p211, %s20, 1
      %p213 = scmp.lt.s32.totalorder %s21, 0
      %s214 = scalar_select %p213, %s21, 0
      %s215 = sadd.s32 %s214, %s212
      %s216 = smul.addr %s215, 2
      %s217 = scalar_lea.vmem %s4, %s216
      %p218 = scmp.lt.s32.totalorder %s20, 1
      %s219 = scalar_select %p218, %s20, 1
      %s220 = smul.addr %s219, 18
      %s221 = smul.addr %s220, 4
      %s222 = scalar_lea.vmem %s0, %s221
      %s223 = smul.u32 8, %s21
      %p224 = scmp.lt.s32.totalorder %s20, 1
      %s225 = scalar_select %p224, %s20, 1
      %p226 = scmp.lt.s32.totalorder %s223, 7
      %s227 = scalar_select %p226, %s223, 7
      %s228 = smul.addr %s225, 8
      %s229 = sadd.s32 %s227, %s228
      %s230 = smul.addr %s229, 4
      %s231 = scalar_lea.vmem %s3, %s230
      %s232 = smul.u32 8, %s21
      %p233 = scmp.lt.s32.totalorder %s20, 1
      %s234 = scalar_select %p233, %s20, 1
      %p235 = scmp.lt.s32.totalorder %s21, 0
      %s236 = scalar_select %p235, %s21, 0
      %s237 = sadd.s32 %s236, %s234
      %s238 = smul.addr %s237, 2
      %s239 = scalar_lea.vmem %s4, %s238
      %v241 = vld [vmem:[%s222] sm:$0xf]
      %v242 = vld [vmem:[%s222 + $0x8] sm:$0xf]
      %v243 = vld [vmem:[%s222 + $0x10] sm:$0xf]
      %v244 = vld [vmem:[%s222 + $0x18] sm:$0xf]
      %v245 = vld [vmem:[%s222 + $0x20] sm:$0xf]
      %v246 = vld [vmem:[%s222 + $0x28] sm:$0xf]
      %v247 = vld [vmem:[%s222 + $0x30] sm:$0xf]
      %v248 = vld [vmem:[%s222 + $0x38] sm:$0xf]
      %v249 = vld [vmem:[%s1] sm:$0xf]
      %v250 = vld [vmem:[%s1 + $0x4] sm:$0xf]
      %v251 = vld [vmem:[%s1 + $0x8] sm:$0xf]
      %v252 = vld [vmem:[%s1 + $0xc] sm:$0xf]
      %v253 = vld [vmem:[%s222 + $0x4] sm:$0x1]
      %v254 = vld [vmem:[%s222 + $0xc] sm:$0x1]
      %v255 = vld [vmem:[%s222 + $0x14] sm:$0x1]
      %v256 = vld [vmem:[%s222 + $0x1c] sm:$0x1]
      %v257 = vld [vmem:[%s222 + $0x24] sm:$0x1]
      %v258 = vld [vmem:[%s222 + $0x2c] sm:$0x1]
      %v259 = vld [vmem:[%s222 + $0x34] sm:$0x1]
      %v260 = vld [vmem:[%s222 + $0x3c] sm:$0x1]
      %vm261 = vsmask.f32 3328
      %vm262 = vsmask.f32 7440
      %vm263 = vmor %vm261, %vm262
      %v265 = vshrl.u32 %v241, 16
      %v267 = vrot.slane %v265, 4
      %v268 = vshll.u32 %v241, 16
      %v270 = vrot.slane %v268, 5
      %v271 = vor.u32 %v267, %v270
      %v272 = vrot.slane %v271, 4
      %v274 = vshll.u32 %v253, 16
      %v276 = vrot.slane %v274, 5
      %v277 = vsel %vm263, %v272, %v276
      %v279 = vshrl.u32 %v242, 16
      %v281 = vrot.slane %v279, 4
      %v282 = vshll.u32 %v242, 16
      %v284 = vrot.slane %v282, 5
      %v285 = vor.u32 %v281, %v284
      %v286 = vrot.slane %v285, 4
      %v288 = vshll.u32 %v254, 16
      %v290 = vrot.slane %v288, 5
      %v291 = vsel %vm263, %v286, %v290
      %v293 = vshrl.u32 %v243, 16
      %v295 = vrot.slane %v293, 4
      %v296 = vshll.u32 %v243, 16
      %v298 = vrot.slane %v296, 5
      %v299 = vor.u32 %v295, %v298
      %v300 = vrot.slane %v299, 4
      %v302 = vshll.u32 %v255, 16
      %v304 = vrot.slane %v302, 5
      %v305 = vsel %vm263, %v300, %v304
      %v307 = vshrl.u32 %v244, 16
      %v309 = vrot.slane %v307, 4
      %v310 = vshll.u32 %v244, 16
      %v312 = vrot.slane %v310, 5
      %v313 = vor.u32 %v309, %v312
      %v314 = vrot.slane %v313, 4
      %v316 = vshll.u32 %v256, 16
      %v318 = vrot.slane %v316, 5
      %v319 = vsel %vm263, %v314, %v318
      %v321 = vshrl.u32 %v245, 16
      %v323 = vrot.slane %v321, 4
      %v324 = vshll.u32 %v245, 16
      %v326 = vrot.slane %v324, 5
      %v327 = vor.u32 %v323, %v326
      %v328 = vrot.slane %v327, 4
      %v330 = vshll.u32 %v257, 16
      %v332 = vrot.slane %v330, 5
      %v333 = vsel %vm263, %v328, %v332
      %v335 = vshrl.u32 %v246, 16
      %v337 = vrot.slane %v335, 4
      %v338 = vshll.u32 %v246, 16
      %v340 = vrot.slane %v338, 5
      %v341 = vor.u32 %v337, %v340
      %v342 = vrot.slane %v341, 4
      %v344 = vshll.u32 %v258, 16
      %v346 = vrot.slane %v344, 5
      %v347 = vsel %vm263, %v342, %v346
      %v349 = vshrl.u32 %v247, 16
      %v351 = vrot.slane %v349, 4
      %v352 = vshll.u32 %v247, 16
      %v354 = vrot.slane %v352, 5
      %v355 = vor.u32 %v351, %v354
      %v356 = vrot.slane %v355, 4
      %v358 = vshll.u32 %v259, 16
      %v360 = vrot.slane %v358, 5
      %v361 = vsel %vm263, %v356, %v360
      %v363 = vshrl.u32 %v248, 16
      %v365 = vrot.slane %v363, 4
      %v366 = vshll.u32 %v248, 16
      %v368 = vrot.slane %v366, 5
      %v369 = vor.u32 %v365, %v368
      %v370 = vrot.slane %v369, 4
      %v372 = vshll.u32 %v260, 16
      %v374 = vrot.slane %v372, 5
      %v375 = vsel %vm263, %v370, %v374
      %s376 = scalar_lea.vmem %s1, 16
      %v377 = vld [vmem:[%s376] sm:$0xf]
      %v378 = vld [vmem:[%s376 + $0x4] sm:$0xf]
      %v379 = vld [vmem:[%s376 + $0x8] sm:$0xf]
      %v380 = vld [vmem:[%s376 + $0xc] sm:$0xf]
      %v381 = vunpack.c.l.b16 %v277
      %v382 = vunpack.c.l.b16 %v291
      %v383 = vunpack.c.l.b16 %v305
      %v384 = vunpack.c.l.b16 %v319
      %v385 = vunpack.c.l.b16 %v333
      %v386 = vunpack.c.l.b16 %v347
      %v387 = vunpack.c.l.b16 %v361
      %v388 = vunpack.c.l.b16 %v375
      %v389 = vpack.c.b16 %v382, %v381
      %v390 = vpack.c.b16 %v384, %v383
      %v391 = vpack.c.b16 %v386, %v385
      %v392 = vpack.c.b16 %v388, %v387
      %v397 = vunpack.c.l.b16 %v377
      %v398 = vunpack.c.l.b16 %v378
      %v399 = vunpack.c.l.b16 %v379
      %v400 = vunpack.c.l.b16 %v380
      %v401 = vpack.c.b16 %v398, %v397
      %v402 = vpack.c.b16 %v400, %v399
      %vm405 = vcmask 261120
      %v407 = vsel %vm405, %v389, 0
      %v410 = vsel %vm405, %v390, 0
      %v413 = vsel %vm405, %v391, 0
      %v416 = vsel %vm405, %v392, 0
      %418 = vmatprep.subr.bf16.mxu0 0
      %419 = vmatpush1.bf16.msra.mxu0 0
      %420 = vmatprep.subr.bf16.mxu0 0
      %421 = vmatpush1.bf16.msra.mxu0 0
      %422 = vmatprep.subr.bf16.mxu0 0
      %423 = vmatpush1.bf16.msra.mxu0 0
      %424 = vmatprep.subr.bf16.mxu0 0
      %425 = vmatpush1.bf16.msra.mxu0 0
      %426 = vmatprep.subr.bf16.mxu0 0
      %427 = vmatpush1.bf16.msra.mxu0 0
      %428 = vmatprep.subr.bf16.mxu0 0
      %429 = vmatpush1.bf16.msra.mxu0 0
      %430 = vmatprep.subr.bf16.mxu0 0
      %431 = vmatpush1.bf16.msra.mxu0 %v402
      %432 = vmatprep.subr.bf16.mxu0 0
      %433 = vmatpush1.bf16.msra.mxu0 %v401
      %434 = vmatprep.subr.bf16.mxu0 0
      %435 = vmatpush2.bf16.msra.mxu0 0
      %436 = vmatprep.subr.bf16.mxu0 0
      %437 = vmatpush2.bf16.msra.mxu0 0
      %438 = vmatprep.subr.bf16.mxu0 0
      %439 = vmatpush2.bf16.msra.mxu0 0
      %440 = vmatprep.subr.bf16.mxu0 0
      %441 = vmatpush2.bf16.msra.mxu0 0
      %442 = vmatprep.subr.bf16.mxu0 0
      %443 = vmatpush2.bf16.msra.mxu0 0
      %444 = vmatprep.subr.bf16.mxu0 0
      %445 = vmatpush2.bf16.msra.mxu0 0
      %446 = vmatprep.subr.bf16.mxu0 0
      %447 = vmatpush2.bf16.msra.mxu0 0
      %448 = vmatprep.subr.bf16.mxu0 0
      %449 = vmatpush2.bf16.msra.mxu0 0
      %450 = vmatprep.mubr.bf16.mxu0 0
      %451 = vmatmul.mubr.bf16.gmra.mxu0 %v407
      %v452 = vpop.f32.mrf.mxu0
      %v453 = vadd.f32 0.0, %v452
      %v454 = vpop.f32.mrf.mxu0
      %v455 = vpop.f32.mrf.mxu0
      %v456 = vadd.f32 0.0, %v455
      %v457 = vpop.f32.mrf.mxu0
      %458 = vmatprep.mubr.bf16.mxu0 0
      %459 = vmatmul.mubr.bf16.gmra.mxu0 %v410
      %v460 = vpop.f32.mrf.mxu0
      %v461 = vadd.f32 0.0, %v460
      %v462 = vpop.f32.mrf.mxu0
      %v463 = vpop.f32.mrf.mxu0
      %v464 = vadd.f32 0.0, %v463
      %v465 = vpop.f32.mrf.mxu0
      %466 = vmatprep.mubr.bf16.mxu0 0
      %467 = vmatmul.mubr.bf16.gmra.mxu0 %v413
      %v468 = vpop.f32.mrf.mxu0
      %v469 = vadd.f32 0.0, %v468
      %v470 = vpop.f32.mrf.mxu0
      %v471 = vpop.f32.mrf.mxu0
      %v472 = vadd.f32 0.0, %v471
      %v473 = vpop.f32.mrf.mxu0
      %474 = vmatprep.mubr.bf16.mxu0 0
      %475 = vmatmul.mubr.bf16.gmra.mxu0 %v416
      %v476 = vpop.f32.mrf.mxu0
      %v477 = vadd.f32 0.0, %v476
      %v478 = vpop.f32.mrf.mxu0
      %v479 = vpop.f32.mrf.mxu0
      %v480 = vadd.f32 0.0, %v479
      %v481 = vpop.f32.mrf.mxu0
      %482 = vdwg.mxu0
      %v491 = vunpack.c.l.b16 %v241
      %v492 = vunpack.c.l.b16 %v242
      %v493 = vunpack.c.l.b16 %v243
      %v494 = vunpack.c.l.b16 %v244
      %v495 = vunpack.c.l.b16 %v245
      %v496 = vunpack.c.l.b16 %v246
      %v497 = vunpack.c.l.b16 %v247
      %v498 = vunpack.c.l.b16 %v248
      %v499 = vpack.c.b16 %v492, %v491
      %v500 = vpack.c.b16 %v494, %v493
      %v501 = vpack.c.b16 %v496, %v495
      %v502 = vpack.c.b16 %v498, %v497
      %v507 = vunpack.c.l.b16 %v249
      %v508 = vunpack.c.l.b16 %v250
      %v509 = vunpack.c.l.b16 %v251
      %v510 = vunpack.c.l.b16 %v252
      %v511 = vpack.c.b16 %v508, %v507
      %v512 = vpack.c.b16 %v510, %v509
      %v516 = vsel %vm405, %v499, 0
      %v519 = vsel %vm405, %v500, 0
      %v522 = vsel %vm405, %v501, 0
      %v525 = vsel %vm405, %v502, 0
      %527 = vmatprep.subr.bf16.mxu0 0
      %528 = vmatpush1.bf16.msra.mxu0 0
      %529 = vmatprep.subr.bf16.mxu0 0
      %530 = vmatpush1.bf16.msra.mxu0 0
      %531 = vmatprep.subr.bf16.mxu0 0
      %532 = vmatpush1.bf16.msra.mxu0 0
      %533 = vmatprep.subr.bf16.mxu0 0
      %534 = vmatpush1.bf16.msra.mxu0 0
      %535 = vmatprep.subr.bf16.mxu0 0
      %536 = vmatpush1.bf16.msra.mxu0 0
      %537 = vmatprep.subr.bf16.mxu0 0
      %538 = vmatpush1.bf16.msra.mxu0 0
      %539 = vmatprep.subr.bf16.mxu0 0
      %540 = vmatpush1.bf16.msra.mxu0 %v512
      %541 = vmatprep.subr.bf16.mxu0 0
      %542 = vmatpush1.bf16.msra.mxu0 %v511
      %543 = vmatprep.subr.bf16.mxu0 0
      %544 = vmatpush2.bf16.msra.mxu0 0
      %545 = vmatprep.subr.bf16.mxu0 0
      %546 = vmatpush2.bf16.msra.mxu0 0
      %547 = vmatprep.subr.bf16.mxu0 0
      %548 = vmatpush2.bf16.msra.mxu0 0
      %549 = vmatprep.subr.bf16.mxu0 0
      %550 = vmatpush2.bf16.msra.mxu0 0
      %551 = vmatprep.subr.bf16.mxu0 0
      %552 = vmatpush2.bf16.msra.mxu0 0
      %553 = vmatprep.subr.bf16.mxu0 0
      %554 = vmatpush2.bf16.msra.mxu0 0
      %555 = vmatprep.subr.bf16.mxu0 0
      %556 = vmatpush2.bf16.msra.mxu0 0
      %557 = vmatprep.subr.bf16.mxu0 0
      %558 = vmatpush2.bf16.msra.mxu0 0
      %559 = vmatprep.mubr.bf16.mxu0 0
      %560 = vmatmul.mubr.bf16.gmra.mxu0 %v516
      %v561 = vpop.f32.mrf.mxu0
      %v562 = vadd.f32 %v453, %v561
      %v563 = vpop.f32.mrf.mxu0
      %v564 = vpop.f32.mrf.mxu0
      %v565 = vadd.f32 %v456, %v564
      %v566 = vpop.f32.mrf.mxu0
      %567 = vmatprep.mubr.bf16.mxu0 0
      %568 = vmatmul.mubr.bf16.gmra.mxu0 %v519
      %v569 = vpop.f32.mrf.mxu0
      %v570 = vadd.f32 %v461, %v569
      %v571 = vpop.f32.mrf.mxu0
      %v572 = vpop.f32.mrf.mxu0
      %v573 = vadd.f32 %v464, %v572
      %v574 = vpop.f32.mrf.mxu0
      %575 = vmatprep.mubr.bf16.mxu0 0
      %576 = vmatmul.mubr.bf16.gmra.mxu0 %v522
      %v577 = vpop.f32.mrf.mxu0
      %v578 = vadd.f32 %v469, %v577
      %v579 = vpop.f32.mrf.mxu0
      %v580 = vpop.f32.mrf.mxu0
      %v581 = vadd.f32 %v472, %v580
      %v582 = vpop.f32.mrf.mxu0
      %583 = vmatprep.mubr.bf16.mxu0 0
      %584 = vmatmul.mubr.bf16.gmra.mxu0 %v525
      %v585 = vpop.f32.mrf.mxu0
      %v586 = vadd.f32 %v477, %v585
      %v587 = vpop.f32.mrf.mxu0
      %v588 = vpop.f32.mrf.mxu0
      %v589 = vadd.f32 %v480, %v588
      %v590 = vpop.f32.mrf.mxu0
      %591 = vdwg.mxu0
      %s592 = scalar_lea.vmem %s222, 8
      %v593 = vld [vmem:[%s592] sm:$0xf]
      %v594 = vld [vmem:[%s592 + $0x8] sm:$0xf]
      %v595 = vld [vmem:[%s592 + $0x10] sm:$0xf]
      %v596 = vld [vmem:[%s592 + $0x18] sm:$0xf]
      %v597 = vld [vmem:[%s592 + $0x20] sm:$0xf]
      %v598 = vld [vmem:[%s592 + $0x28] sm:$0xf]
      %v599 = vld [vmem:[%s592 + $0x30] sm:$0xf]
      %v600 = vld [vmem:[%s592 + $0x38] sm:$0xf]
      %s601 = scalar_lea.vmem %s1, 32
      %v602 = vld [vmem:[%s601] sm:$0xf]
      %v603 = vld [vmem:[%s601 + $0x4] sm:$0xf]
      %v604 = vld [vmem:[%s601 + $0x8] sm:$0xf]
      %v605 = vld [vmem:[%s601 + $0xc] sm:$0xf]
      %v614 = vunpack.c.l.b16 %v593
      %v615 = vunpack.c.l.b16 %v594
      %v616 = vunpack.c.l.b16 %v595
      %v617 = vunpack.c.l.b16 %v596
      %v618 = vunpack.c.l.b16 %v597
      %v619 = vunpack.c.l.b16 %v598
      %v620 = vunpack.c.l.b16 %v599
      %v621 = vunpack.c.l.b16 %v600
      %v622 = vpack.c.b16 %v615, %v614
      %v623 = vpack.c.b16 %v617, %v616
      %v624 = vpack.c.b16 %v619, %v618
      %v625 = vpack.c.b16 %v621, %v620
      %v630 = vunpack.c.l.b16 %v602
      %v631 = vunpack.c.l.b16 %v603
      %v632 = vunpack.c.l.b16 %v604
      %v633 = vunpack.c.l.b16 %v605
      %v634 = vpack.c.b16 %v631, %v630
      %v635 = vpack.c.b16 %v633, %v632
      %v639 = vsel %vm405, %v622, 0
      %v642 = vsel %vm405, %v623, 0
      %v645 = vsel %vm405, %v624, 0
      %v648 = vsel %vm405, %v625, 0
      %650 = vmatprep.subr.bf16.mxu0 0
      %651 = vmatpush1.bf16.msra.mxu0 0
      %652 = vmatprep.subr.bf16.mxu0 0
      %653 = vmatpush1.bf16.msra.mxu0 0
      %654 = vmatprep.subr.bf16.mxu0 0
      %655 = vmatpush1.bf16.msra.mxu0 0
      %656 = vmatprep.subr.bf16.mxu0 0
      %657 = vmatpush1.bf16.msra.mxu0 0
      %658 = vmatprep.subr.bf16.mxu0 0
      %659 = vmatpush1.bf16.msra.mxu0 0
      %660 = vmatprep.subr.bf16.mxu0 0
      %661 = vmatpush1.bf16.msra.mxu0 0
      %662 = vmatprep.subr.bf16.mxu0 0
      %663 = vmatpush1.bf16.msra.mxu0 %v635
      %664 = vmatprep.subr.bf16.mxu0 0
      %665 = vmatpush1.bf16.msra.mxu0 %v634
      %666 = vmatprep.subr.bf16.mxu0 0
      %667 = vmatpush2.bf16.msra.mxu0 0
      %668 = vmatprep.subr.bf16.mxu0 0
      %669 = vmatpush2.bf16.msra.mxu0 0
      %670 = vmatprep.subr.bf16.mxu0 0
      %671 = vmatpush2.bf16.msra.mxu0 0
      %672 = vmatprep.subr.bf16.mxu0 0
      %673 = vmatpush2.bf16.msra.mxu0 0
      %674 = vmatprep.subr.bf16.mxu0 0
      %675 = vmatpush2.bf16.msra.mxu0 0
      %676 = vmatprep.subr.bf16.mxu0 0
      %677 = vmatpush2.bf16.msra.mxu0 0
      %678 = vmatprep.subr.bf16.mxu0 0
      %679 = vmatpush2.bf16.msra.mxu0 0
      %680 = vmatprep.subr.bf16.mxu0 0
      %681 = vmatpush2.bf16.msra.mxu0 0
      %682 = vmatprep.mubr.bf16.mxu0 0
      %683 = vmatmul.mubr.bf16.gmra.mxu0 %v639
      %v684 = vpop.f32.mrf.mxu0
      %v685 = vadd.f32 0.0, %v684
      %v686 = vpop.f32.mrf.mxu0
      %v687 = vpop.f32.mrf.mxu0
      %v688 = vadd.f32 0.0, %v687
      %v689 = vpop.f32.mrf.mxu0
      %690 = vmatprep.mubr.bf16.mxu0 0
      %691 = vmatmul.mubr.bf16.gmra.mxu0 %v642
      %v692 = vpop.f32.mrf.mxu0
      %v693 = vadd.f32 0.0, %v692
      %v694 = vpop.f32.mrf.mxu0
      %v695 = vpop.f32.mrf.mxu0
      %v696 = vadd.f32 0.0, %v695
      %v697 = vpop.f32.mrf.mxu0
      %698 = vmatprep.mubr.bf16.mxu0 0
      %699 = vmatmul.mubr.bf16.gmra.mxu0 %v645
      %v700 = vpop.f32.mrf.mxu0
      %v701 = vadd.f32 0.0, %v700
      %v702 = vpop.f32.mrf.mxu0
      %v703 = vpop.f32.mrf.mxu0
      %v704 = vadd.f32 0.0, %v703
      %v705 = vpop.f32.mrf.mxu0
      %706 = vmatprep.mubr.bf16.mxu0 0
      %707 = vmatmul.mubr.bf16.gmra.mxu0 %v648
      %v708 = vpop.f32.mrf.mxu0
      %v709 = vadd.f32 0.0, %v708
      %v710 = vpop.f32.mrf.mxu0
      %v711 = vpop.f32.mrf.mxu0
      %v712 = vadd.f32 0.0, %v711
      %v713 = vpop.f32.mrf.mxu0
      %714 = vdwg.mxu0
      %v715 = vadd.f32 %v562, %v685
      %v716 = vadd.f32 %v565, %v688
      %v717 = vadd.f32 %v570, %v693
      %v718 = vadd.f32 %v573, %v696
      %v719 = vadd.f32 %v578, %v701
      %v720 = vadd.f32 %v581, %v704
      %v721 = vadd.f32 %v586, %v709
      %v722 = vadd.f32 %v589, %v712
      %v723 = vld [vmem:[%s592] sm:$0xf]
      %v724 = vld [vmem:[%s592 + $0x4] sm:$0x1]
      %v725 = vld [vmem:[%s592 + $0x8] sm:$0xf]
      %v726 = vld [vmem:[%s592 + $0xc] sm:$0x1]
      %v727 = vld [vmem:[%s592 + $0x10] sm:$0xf]
      %v728 = vld [vmem:[%s592 + $0x14] sm:$0x1]
      %v729 = vld [vmem:[%s592 + $0x18] sm:$0xf]
      %v730 = vld [vmem:[%s592 + $0x1c] sm:$0x1]
      %v731 = vld [vmem:[%s592 + $0x20] sm:$0xf]
      %v732 = vld [vmem:[%s592 + $0x24] sm:$0x1]
      %v733 = vld [vmem:[%s592 + $0x28] sm:$0xf]
      %v734 = vld [vmem:[%s592 + $0x2c] sm:$0x1]
      %v735 = vld [vmem:[%s592 + $0x30] sm:$0xf]
      %v736 = vld [vmem:[%s592 + $0x34] sm:$0x1]
      %v737 = vld [vmem:[%s592 + $0x38] sm:$0xf]
      %v738 = vld [vmem:[%s592 + $0x3c] sm:$0x1]
      %v740 = vshrl.u32 %v723, 16
      %v742 = vrot.slane %v740, 4
      %v743 = vshll.u32 %v723, 16
      %v745 = vrot.slane %v743, 5
      %v746 = vor.u32 %v742, %v745
      %v747 = vrot.slane %v746, 4
      %v749 = vshll.u32 %v724, 16
      %v751 = vrot.slane %v749, 5
      %v752 = vsel %vm263, %v747, %v751
      %v754 = vshrl.u32 %v725, 16
      %v756 = vrot.slane %v754, 4
      %v757 = vshll.u32 %v725, 16
      %v759 = vrot.slane %v757, 5
      %v760 = vor.u32 %v756, %v759
      %v761 = vrot.slane %v760, 4
      %v763 = vshll.u32 %v726, 16
      %v765 = vrot.slane %v763, 5
      %v766 = vsel %vm263, %v761, %v765
      %v768 = vshrl.u32 %v727, 16
      %v770 = vrot.slane %v768, 4
      %v771 = vshll.u32 %v727, 16
      %v773 = vrot.slane %v771, 5
      %v774 = vor.u32 %v770, %v773
      %v775 = vrot.slane %v774, 4
      %v777 = vshll.u32 %v728, 16
      %v779 = vrot.slane %v777, 5
      %v780 = vsel %vm263, %v775, %v779
      %v782 = vshrl.u32 %v729, 16
      %v784 = vrot.slane %v782, 4
      %v785 = vshll.u32 %v729, 16
      %v787 = vrot.slane %v785, 5
      %v788 = vor.u32 %v784, %v787
      %v789 = vrot.slane %v788, 4
      %v791 = vshll.u32 %v730, 16
      %v793 = vrot.slane %v791, 5
      %v794 = vsel %vm263, %v789, %v793
      %v796 = vshrl.u32 %v731, 16
      %v798 = vrot.slane %v796, 4
      %v799 = vshll.u32 %v731, 16
      %v801 = vrot.slane %v799, 5
      %v802 = vor.u32 %v798, %v801
      %v803 = vrot.slane %v802, 4
      %v805 = vshll.u32 %v732, 16
      %v807 = vrot.slane %v805, 5
      %v808 = vsel %vm263, %v803, %v807
      %v810 = vshrl.u32 %v733, 16
      %v812 = vrot.slane %v810, 4
      %v813 = vshll.u32 %v733, 16
      %v815 = vrot.slane %v813, 5
      %v816 = vor.u32 %v812, %v815
      %v817 = vrot.slane %v816, 4
      %v819 = vshll.u32 %v734, 16
      %v821 = vrot.slane %v819, 5
      %v822 = vsel %vm263, %v817, %v821
      %v824 = vshrl.u32 %v735, 16
      %v826 = vrot.slane %v824, 4
      %v827 = vshll.u32 %v735, 16
      %v829 = vrot.slane %v827, 5
      %v830 = vor.u32 %v826, %v829
      %v831 = vrot.slane %v830, 4
      %v833 = vshll.u32 %v736, 16
      %v835 = vrot.slane %v833, 5
      %v836 = vsel %vm263, %v831, %v835
      %v838 = vshrl.u32 %v737, 16
      %v840 = vrot.slane %v838, 4
      %v841 = vshll.u32 %v737, 16
      %v843 = vrot.slane %v841, 5
      %v844 = vor.u32 %v840, %v843
      %v845 = vrot.slane %v844, 4
      %v847 = vshll.u32 %v738, 16
      %v849 = vrot.slane %v847, 5
      %v850 = vsel %vm263, %v845, %v849
      %s851 = scalar_lea.vmem %s1, 48
      %v852 = vld [vmem:[%s851] sm:$0xf]
      %v853 = vld [vmem:[%s851 + $0x4] sm:$0xf]
      %v854 = vld [vmem:[%s851 + $0x8] sm:$0xf]
      %v855 = vld [vmem:[%s851 + $0xc] sm:$0xf]
      %v856 = vunpack.c.l.b16 %v752
      %v857 = vunpack.c.l.b16 %v766
      %v858 = vunpack.c.l.b16 %v780
      %v859 = vunpack.c.l.b16 %v794
      %v860 = vunpack.c.l.b16 %v808
      %v861 = vunpack.c.l.b16 %v822
      %v862 = vunpack.c.l.b16 %v836
      %v863 = vunpack.c.l.b16 %v850
      %v864 = vpack.c.b16 %v857, %v856
      %v865 = vpack.c.b16 %v859, %v858
      %v866 = vpack.c.b16 %v861, %v860
      %v867 = vpack.c.b16 %v863, %v862
      %v872 = vunpack.c.l.b16 %v852
      %v873 = vunpack.c.l.b16 %v853
      %v874 = vunpack.c.l.b16 %v854
      %v875 = vunpack.c.l.b16 %v855
      %v876 = vpack.c.b16 %v873, %v872
      %v877 = vpack.c.b16 %v875, %v874
      %v881 = vsel %vm405, %v864, 0
      %v884 = vsel %vm405, %v865, 0
      %v887 = vsel %vm405, %v866, 0
      %v890 = vsel %vm405, %v867, 0
      %892 = vmatprep.subr.bf16.mxu0 0
      %893 = vmatpush1.bf16.msra.mxu0 0
      %894 = vmatprep.subr.bf16.mxu0 0
      %895 = vmatpush1.bf16.msra.mxu0 0
      %896 = vmatprep.subr.bf16.mxu0 0
      %897 = vmatpush1.bf16.msra.mxu0 0
      %898 = vmatprep.subr.bf16.mxu0 0
      %899 = vmatpush1.bf16.msra.mxu0 0
      %900 = vmatprep.subr.bf16.mxu0 0
      %901 = vmatpush1.bf16.msra.mxu0 0
      %902 = vmatprep.subr.bf16.mxu0 0
      %903 = vmatpush1.bf16.msra.mxu0 0
      %904 = vmatprep.subr.bf16.mxu0 0
      %905 = vmatpush1.bf16.msra.mxu0 %v877
      %906 = vmatprep.subr.bf16.mxu0 0
      %907 = vmatpush1.bf16.msra.mxu0 %v876
      %908 = vmatprep.subr.bf16.mxu0 0
      %909 = vmatpush2.bf16.msra.mxu0 0
      %910 = vmatprep.subr.bf16.mxu0 0
      %911 = vmatpush2.bf16.msra.mxu0 0
      %912 = vmatprep.subr.bf16.mxu0 0
      %913 = vmatpush2.bf16.msra.mxu0 0
      %914 = vmatprep.subr.bf16.mxu0 0
      %915 = vmatpush2.bf16.msra.mxu0 0
      %916 = vmatprep.subr.bf16.mxu0 0
      %917 = vmatpush2.bf16.msra.mxu0 0
      %918 = vmatprep.subr.bf16.mxu0 0
      %919 = vmatpush2.bf16.msra.mxu0 0
      %920 = vmatprep.subr.bf16.mxu0 0
      %921 = vmatpush2.bf16.msra.mxu0 0
      %922 = vmatprep.subr.bf16.mxu0 0
      %923 = vmatpush2.bf16.msra.mxu0 0
      %924 = vmatprep.mubr.bf16.mxu0 0
      %925 = vmatmul.mubr.bf16.gmra.mxu0 %v881
      %v926 = vpop.f32.mrf.mxu0
      %v927 = vadd.f32 0.0, %v926
      %v928 = vpop.f32.mrf.mxu0
      %v929 = vpop.f32.mrf.mxu0
      %v930 = vadd.f32 0.0, %v929
      %v931 = vpop.f32.mrf.mxu0
      %932 = vmatprep.mubr.bf16.mxu0 0
      %933 = vmatmul.mubr.bf16.gmra.mxu0 %v884
      %v934 = vpop.f32.mrf.mxu0
      %v935 = vadd.f32 0.0, %v934
      %v936 = vpop.f32.mrf.mxu0
      %v937 = vpop.f32.mrf.mxu0
      %v938 = vadd.f32 0.0, %v937
      %v939 = vpop.f32.mrf.mxu0
      %940 = vmatprep.mubr.bf16.mxu0 0
      %941 = vmatmul.mubr.bf16.gmra.mxu0 %v887
      %v942 = vpop.f32.mrf.mxu0
      %v943 = vadd.f32 0.0, %v942
      %v944 = vpop.f32.mrf.mxu0
      %v945 = vpop.f32.mrf.mxu0
      %v946 = vadd.f32 0.0, %v945
      %v947 = vpop.f32.mrf.mxu0
      %948 = vmatprep.mubr.bf16.mxu0 0
      %949 = vmatmul.mubr.bf16.gmra.mxu0 %v890
      %v950 = vpop.f32.mrf.mxu0
      %v951 = vadd.f32 0.0, %v950
      %v952 = vpop.f32.mrf.mxu0
      %v953 = vpop.f32.mrf.mxu0
      %v954 = vadd.f32 0.0, %v953
      %v955 = vpop.f32.mrf.mxu0
      %956 = vdwg.mxu0
      %v957 = vadd.f32 %v715, %v927
      %v958 = vadd.f32 %v716, %v930
      %v959 = vadd.f32 %v717, %v935
      %v960 = vadd.f32 %v718, %v938
      %v961 = vadd.f32 %v719, %v943
      %v962 = vadd.f32 %v720, %v946
      %v963 = vadd.f32 %v721, %v951
      %v964 = vadd.f32 %v722, %v954
      %v965 = vld [vmem:[%s2] sm:$0x1]
      %v967 = vlaneseq
      %v968 = vshrl.u32 %v967, 7
      %v969 = vsub.s32 0, %v968
      %v970 = vrot.slane %v965, %v969
      %v972 = vadd.f32 %v957, %v970
      %v973 = vadd.f32 %v958, %v970
      %v974 = vadd.f32 %v959, %v970
      %v975 = vadd.f32 %v960, %v970
      %v976 = vadd.f32 %v961, %v970
      %v977 = vadd.f32 %v962, %v970
      %v978 = vadd.f32 %v963, %v970
      %v979 = vadd.f32 %v964, %v970
      %v980 = vpack.c.bf16 %v973, %v972
      %v981 = vpack.c.bf16 %v975, %v974
      %v982 = vpack.c.bf16 %v977, %v976
      %v983 = vpack.c.bf16 %v979, %v978
      %v988 = vunpack.c.l.b16 %v980
      %v989 = vunpack.c.h.b16 %v980
      %v990 = vunpack.c.l.b16 %v981
      %v991 = vunpack.c.h.b16 %v981
      %v992 = vunpack.c.l.b16 %v982
      %v993 = vunpack.c.h.b16 %v982
      %v994 = vunpack.c.l.b16 %v983
      %v995 = vunpack.c.h.b16 %v983
      %v996 = vpack.c.b16 %v988, %v988
      %v997 = vpack.c.b16 %v989, %v989
      %v998 = vpack.c.b16 %v990, %v990
      %v999 = vpack.c.b16 %v991, %v991
      %v1000 = vpack.c.b16 %v992, %v992
      %v1001 = vpack.c.b16 %v993, %v993
      %v1002 = vpack.c.b16 %v994, %v994
      %v1003 = vpack.c.b16 %v995, %v995
      %vm1012 = vcmask 257024
      %1013 = vst.msk [vmem:[%s231] sm:$0xf] %vm1012, %v996
      %1014 = vst.msk [vmem:[%s231 + $0x4] sm:$0xf] %vm1012, %v997
      %1015 = vst.msk [vmem:[%s231 + $0x8] sm:$0xf] %vm1012, %v998
      %1016 = vst.msk [vmem:[%s231 + $0xc] sm:$0xf] %vm1012, %v999
      %1017 = vst.msk [vmem:[%s231 + $0x10] sm:$0xf] %vm1012, %v1000
      %1018 = vst.msk [vmem:[%s231 + $0x14] sm:$0xf] %vm1012, %v1001
      %1019 = vst.msk [vmem:[%s231 + $0x18] sm:$0xf] %vm1012, %v1002
      %1020 = vst.msk [vmem:[%s231 + $0x1c] sm:$0xf] %vm1012, %v1003
      %v1021 = vunpack.c.l.bf16 %v980
      %v1022 = vunpack.c.h.bf16 %v980
      %v1023 = vunpack.c.l.bf16 %v981
      %v1024 = vunpack.c.h.bf16 %v981
      %v1025 = vunpack.c.l.bf16 %v982
      %v1026 = vunpack.c.h.bf16 %v982
      %v1027 = vunpack.c.l.bf16 %v983
      %v1028 = vunpack.c.h.bf16 %v983
      %v1029 = vsel %vm405, %v1021, 0.0
      %v1030 = vsel %vm405, %v1022, 0.0
      %v1031 = vadd.f32 %v1029, %v1030
      %v1032 = vsel %vm405, %v1023, 0.0
      %v1033 = vadd.f32 %v1031, %v1032
      %v1034 = vsel %vm405, %v1024, 0.0
      %v1035 = vadd.f32 %v1033, %v1034
      %v1036 = vsel %vm405, %v1025, 0.0
      %v1037 = vadd.f32 %v1035, %v1036
      %v1038 = vsel %vm405, %v1026, 0.0
      %v1039 = vadd.f32 %v1037, %v1038
      %v1040 = vsel %vm405, %v1027, 0.0
      %v1041 = vadd.f32 %v1039, %v1040
      %v1042 = vsel %vm405, %v1028, 0.0
      %v1043 = vadd.f32 %v1041, %v1042
      %v1044 = vrot.slane %v1043, 4
      %v1045 = vadd.f32 %v1043, %v1044
      %v1046 = vrot.slane %v1045, 2
      %v1047 = vadd.f32 %v1045, %v1046
      %v1048 = vrot.slane %v1047, 1
      %v1049 = vadd.f32 %v1047, %v1048
      %v1050 = vmul.f32 %v1021, %v1021
      %v1051 = vmul.f32 %v1022, %v1022
      %v1052 = vmul.f32 %v1023, %v1023
      %v1053 = vmul.f32 %v1024, %v1024
      %v1054 = vmul.f32 %v1025, %v1025
      %v1055 = vmul.f32 %v1026, %v1026
      %v1056 = vmul.f32 %v1027, %v1027
      %v1057 = vmul.f32 %v1028, %v1028
      %v1058 = vsel %vm405, %v1050, 0.0
      %v1059 = vsel %vm405, %v1051, 0.0
      %v1060 = vadd.f32 %v1058, %v1059
      %v1061 = vsel %vm405, %v1052, 0.0
      %v1062 = vadd.f32 %v1060, %v1061
      %v1063 = vsel %vm405, %v1053, 0.0
      %v1064 = vadd.f32 %v1062, %v1063
      %v1065 = vsel %vm405, %v1054, 0.0
      %v1066 = vadd.f32 %v1064, %v1065
      %v1067 = vsel %vm405, %v1055, 0.0
      %v1068 = vadd.f32 %v1066, %v1067
      %v1069 = vsel %vm405, %v1056, 0.0
      %v1070 = vadd.f32 %v1068, %v1069
      %v1071 = vsel %vm405, %v1057, 0.0
      %v1072 = vadd.f32 %v1070, %v1071
      %v1073 = vrot.slane %v1072, 4
      %v1074 = vadd.f32 %v1072, %v1073
      %v1075 = vrot.slane %v1074, 2
      %v1076 = vadd.f32 %v1074, %v1075
      %v1077 = vrot.slane %v1076, 1
      %v1078 = vadd.f32 %v1076, %v1077
      %vm1079 = vcmask 1040384
      %v1080 = vsel %vm1079, %v1049, %v1078
      %vm1081 = vcmask 254976
      %1082 = vst.msk [vmem:[%s239] sm:$0x3] %vm1081, %v1080
      %s1083 = smul.u32 8, %s21
      %p1084 = scmp.lt.s32.totalorder %s20, 1
      %s1085 = scalar_select %p1084, %s20, 1
      %p1086 = scmp.lt.s32.totalorder %s1083, 7
      %s1087 = scalar_select %p1086, %s1083, 7
      %s1088 = smul.addr %s1085, 8
      %s1089 = sadd.s32 %s1087, %s1088
      %s1090 = smul.addr %s1089, 4
      %s1091 = scalar_lea.vmem %s3, %s1090
      %p1092 = scmp.lt.s32.totalorder %s20, 1
      %s1093 = scalar_select %p1092, %s20, 1
      %p1094 = scmp.lt.s32.totalorder %s21, 0
      %s1095 = scalar_select %p1094, %s21, 0
      %s1096 = sadd.s32 %s1095, %s1093
      %s1097 = smul.addr %s1096, 2
      %s1098 = scalar_lea.vmem %s4, %s1097
      // Predicated region
      $region33: #{discriminator_forward.5} parent=31 // pred_check
        %p1099 = pneg %p116
      $region34: #{discriminator_forward.5} parent=31 // pred_check_branch
        %1101 = sbr.rel (%p1099) target = $region36
      $region35: #{discriminator_forward.5} parent=31 // pred_region
        %s1102 = smul.u32 8, %s21
      $region36: #{discriminator_forward.5} parent=31 // pred_fallthru
        _
      // Predicated region
      $region37: #{discriminator_forward.5} parent=31 // pred_check
        %p1103 = pneg %p144
      $region38: #{discriminator_forward.5} parent=31 // pred_check_branch
        %1105 = sbr.rel (%p1103) target = $region40
      $region39: #{discriminator_forward.5} parent=31 // pred_region
        _
      $region40: #{discriminator_forward.5} parent=31 // pred_fallthru
        _
    $region32: #{discriminator_forward.5} parent=5 // pred_fallthru
      _
    %p1106 = scmp.le.s32.totalorder 2, %s11
    // Predicated region
    $region41: #{discriminator_forward.5} parent=5 // pred_check
      %p1107 = pneg %p1106
    $region42: #{discriminator_forward.5} parent=5 // pred_check_branch
      %1109 = sbr.rel (%p1107) target = $region44
    $region43: #{discriminator_forward.5} parent=5 // pred_region
      %s1110 = ssub.s32 %s11, 2
      // Predicated region
      $region45: #{discriminator_forward.5} parent=43 // pred_check
        %p1111 = pneg %p122
      $region46: #{discriminator_forward.5} parent=43 // pred_check_branch
        %1113 = sbr.rel (%p1111) target = $region48
      $region47: #{discriminator_forward.5} parent=43 // pred_region
        %s1114 = smul.u32 8, %s23
        %p1115 = scmp.lt.s32.totalorder %s22, 1
        %s1116 = scalar_select %p1115, %s22, 1
        %p1117 = scmp.lt.s32.totalorder %s1114, 7
        %s1118 = scalar_select %p1117, %s1114, 7
        %s1119 = smul.addr %s1116, 8
        %s1120 = sadd.s32 %s1118, %s1119
        %s1121 = smul.addr %s1120, 4
        %s1122 = scalar_lea.vmem %s3, %s1121
      $region48: #{discriminator_forward.5} parent=43 // pred_fallthru
        _
      // Predicated region
      $region49: #{discriminator_forward.5} parent=43 // pred_check
        %p1123 = pneg %p150
      $region50: #{discriminator_forward.5} parent=43 // pred_check_branch
        %1125 = sbr.rel (%p1123) target = $region52
      $region51: #{discriminator_forward.5} parent=43 // pred_region
        %p1126 = scmp.lt.s32.totalorder %s22, 1
        %s1127 = scalar_select %p1126, %s22, 1
        %p1128 = scmp.lt.s32.totalorder %s23, 0
        %s1129 = scalar_select %p1128, %s23, 0
        %s1130 = sadd.s32 %s1129, %s1127
        %s1131 = smul.addr %s1130, 2
        %s1132 = scalar_lea.vmem %s4, %s1131
      $region52: #{discriminator_forward.5} parent=43 // pred_fallthru
        _
    $region44: #{discriminator_forward.5} parent=5 // pred_fallthru
      _
  $region6: #{discriminator_forward.5} parent=0 // loop_footer
    %s15 = sadd.s32 1, %s11
  $region7: #{discriminator_forward.5} parent=0 // loop_footer_branch
    %10 = sbr.rel target = $region3
  $region8: #{discriminator_forward.5} parent=0 // loop_exit
    _

// kernel: discriminator_forward.7
$region0: #{discriminator_forward.7}
  #allocation0 [shape = 'u32[]', space=smem, size = 0x4, offset = 0x4, fixed_abs, tag = 'smem constant byte address 0x4 - core index']
  #allocation1 [shape = 'u32[144,128]{1,0:T(1,128)}', space=vmem, size = 0x12000, scoped, tag = 'internal scratch']
  #allocation2 [shape = 'f32[1,1]{1,0:T(1,128)S(1)}', space=vmem, size = 0x200, scoped, tag = 'scoped memory for discriminator_forward.7']
  %s0 = inlined_call_operand.vmem [shape: bf16[2,16,64], index: 0, kind: input, shape index: {}]
  %s1 = inlined_call_operand.vmem [shape: f32[1,64], index: 1, kind: input, shape index: {}]
  %s2 = inlined_call_operand.vmem [shape: f32[1,64], index: 2, kind: input, shape index: {}]
  %s3 = inlined_call_operand.vmem [shape: f32[16,64], index: 3, kind: input, shape index: {}]
  %s4 = inlined_call_operand.<no memory space> [shape: f32[1,1], index: 4, kind: input, shape index: {}]
  %s5 = inlined_call_operand.vmem [shape: f32[2,1,1], index: 5, kind: output, shape index: {}]
  %s6 = sld [smem:[#allocation0]]
  $region53: #{discriminator_forward.7} parent=0
    _
  %s8 = ssub.s32 1, %s6
  %s9 = scalar_select 0, %s8, %s6
  %v10 = vstv %s4
  %11 = vst [vmem:[#allocation2] sm:$0x1] %v10
  loop: start=0, step=1, limit=4
  $region2: #{discriminator_forward.7} parent=0 // loop_pre_header
    _
  $region3: #{discriminator_forward.7} parent=0 // loop_header
    %s13 = sphi 0, %s17
    %p14 = scmp.ge.s32.totalorder %s13, 4
    %s23 = sphi 0, %s25
    %s26 = sphi 0, %s23
    %s27 = sphi 0, %s26
    %s43 = sphi 0, %s27
    %s47 = sphi 0, %s47
    %s49 = sphi 0, %s47
    %s50 = sphi 0, %s49
    %s64 = sphi 0, %s50
    %s68 = sphi 0, %s68
    %s70 = sphi 0, %s68
    %s71 = sphi 0, %s70
    %s85 = sphi 0, %s71
    %s89 = sphi 0, %s89
    %s91 = sphi 0, %s89
    %s92 = sphi 0, %s91
    %s106 = sphi 0, %s92
    %s110 = sphi 0, %s110
    %s112 = sphi 0, %s110
    %s113 = sphi 0, %s112
    %s127 = sphi 0, %s113
    %s133 = sphi 0, %s135
    %s136 = sphi 0, %s133
    %s137 = sphi 0, %s136
    %s153 = sphi 0, %s137
  $region4: #{discriminator_forward.7} parent=0 // loop_header_branch
    %16 = sbr.rel (%p14) target = $region8
  $region5: #{discriminator_forward.7} parent=0 // loop_body
    %s18 = ssub.s32 %s13, 1
    %s19 = ssub.s32 %s13, 2
    %s20 = sadd.s32 %s13, 1
    %s21 = ssub.s32 %s13, %s20
    %p22 = scmp.eq.s32.totalorder %s21, 0
    %s24 = sadd.s32 %s23, 1
    %s25 = scalar_select %p22, %s23, %s24
    %p28 = pneg %p22
    %p29 = scmp.eq.s32.totalorder %s13, 1
    %p30 = por %p28, %p29
    %p31 = scmp.ne.s32.totalorder %s23, %s26
    %p32 = scmp.eq.s32.totalorder %s13, 0
    %p33 = por %p31, %p32
    %p34 = scmp.ne.s32.totalorder %s23, %s26
    %p35 = scmp.eq.s32.totalorder %s18, 1
    %p36 = por %p34, %p35
    %p37 = scmp.ne.s32.totalorder %s26, %s27
    %p38 = scmp.eq.s32.totalorder %s18, 0
    %p39 = por %p37, %p38
    %p40 = scmp.ne.s32.totalorder %s26, %s27
    %p41 = scmp.eq.s32.totalorder %s19, 1
    %p42 = por %p40, %p41
    %p44 = scmp.ne.s32.totalorder %s27, %s43
    %p45 = scmp.eq.s32.totalorder %s19, 0
    %p46 = por %p44, %p45
    %s48 = sadd.s32 %s47, 1
    %p51 = scmp.eq.s32.totalorder %s13, 1
    %p52 = scmp.ne.s32.totalorder %s47, %s49
    %p53 = scmp.eq.s32.totalorder %s13, 0
    %p54 = por %p52, %p53
    %p55 = scmp.ne.s32.totalorder %s47, %s49
    %p56 = scmp.eq.s32.totalorder %s18, 1
    %p57 = por %p55, %p56
    %p58 = scmp.ne.s32.totalorder %s49, %s50
    %p59 = scmp.eq.s32.totalorder %s18, 0
    %p60 = por %p58, %p59
    %p61 = scmp.ne.s32.totalorder %s49, %s50
    %p62 = scmp.eq.s32.totalorder %s19, 1
    %p63 = por %p61, %p62
    %p65 = scmp.ne.s32.totalorder %s50, %s64
    %p66 = scmp.eq.s32.totalorder %s19, 0
    %p67 = por %p65, %p66
    %s69 = sadd.s32 %s68, 1
    %p72 = scmp.eq.s32.totalorder %s13, 1
    %p73 = scmp.ne.s32.totalorder %s68, %s70
    %p74 = scmp.eq.s32.totalorder %s13, 0
    %p75 = por %p73, %p74
    %p76 = scmp.ne.s32.totalorder %s68, %s70
    %p77 = scmp.eq.s32.totalorder %s18, 1
    %p78 = por %p76, %p77
    %p79 = scmp.ne.s32.totalorder %s70, %s71
    %p80 = scmp.eq.s32.totalorder %s18, 0
    %p81 = por %p79, %p80
    %p82 = scmp.ne.s32.totalorder %s70, %s71
    %p83 = scmp.eq.s32.totalorder %s19, 1
    %p84 = por %p82, %p83
    %p86 = scmp.ne.s32.totalorder %s71, %s85
    %p87 = scmp.eq.s32.totalorder %s19, 0
    %p88 = por %p86, %p87
    %s90 = sadd.s32 %s89, 1
    %p93 = scmp.eq.s32.totalorder %s13, 1
    %p94 = scmp.ne.s32.totalorder %s89, %s91
    %p95 = scmp.eq.s32.totalorder %s13, 0
    %p96 = por %p94, %p95
    %p97 = scmp.ne.s32.totalorder %s89, %s91
    %p98 = scmp.eq.s32.totalorder %s18, 1
    %p99 = por %p97, %p98
    %p100 = scmp.ne.s32.totalorder %s91, %s92
    %p101 = scmp.eq.s32.totalorder %s18, 0
    %p102 = por %p100, %p101
    %p103 = scmp.ne.s32.totalorder %s91, %s92
    %p104 = scmp.eq.s32.totalorder %s19, 1
    %p105 = por %p103, %p104
    %p107 = scmp.ne.s32.totalorder %s92, %s106
    %p108 = scmp.eq.s32.totalorder %s19, 0
    %p109 = por %p107, %p108
    %s111 = sadd.s32 %s110, 1
    %p114 = scmp.eq.s32.totalorder %s13, 1
    %p115 = scmp.ne.s32.totalorder %s110, %s112
    %p116 = scmp.eq.s32.totalorder %s13, 0
    %p117 = por %p115, %p116
    %p118 = scmp.ne.s32.totalorder %s110, %s112
    %p119 = scmp.eq.s32.totalorder %s18, 1
    %p120 = por %p118, %p119
    %p121 = scmp.ne.s32.totalorder %s112, %s113
    %p122 = scmp.eq.s32.totalorder %s18, 0
    %p123 = por %p121, %p122
    %p124 = scmp.ne.s32.totalorder %s112, %s113
    %p125 = scmp.eq.s32.totalorder %s19, 1
    %p126 = por %p124, %p125
    %p128 = scmp.ne.s32.totalorder %s113, %s127
    %p129 = scmp.eq.s32.totalorder %s19, 0
    %p130 = por %p128, %p129
    %s131 = ssub.s32 %s13, %s20
    %p132 = scmp.eq.s32.totalorder %s131, 0
    %s134 = sadd.s32 %s133, 1
    %s135 = scalar_select %p132, %s133, %s134
    %p138 = pneg %p132
    %p139 = scmp.eq.s32.totalorder %s13, 1
    %p140 = por %p138, %p139
    %p141 = scmp.ne.s32.totalorder %s133, %s136
    %p142 = scmp.eq.s32.totalorder %s13, 0
    %p143 = por %p141, %p142
    %p144 = scmp.ne.s32.totalorder %s133, %s136
    %p145 = scmp.eq.s32.totalorder %s18, 1
    %p146 = por %p144, %p145
    %p147 = scmp.ne.s32.totalorder %s136, %s137
    %p148 = scmp.eq.s32.totalorder %s18, 0
    %p149 = por %p147, %p148
    %p150 = scmp.ne.s32.totalorder %s136, %s137
    %p151 = scmp.eq.s32.totalorder %s19, 1
    %p152 = por %p150, %p151
    %p154 = scmp.ne.s32.totalorder %s137, %s153
    %p155 = scmp.eq.s32.totalorder %s19, 0
    %p156 = por %p154, %p155
    %p157 = scmp.le.s32.totalorder 1, %s13
    %p158 = scmp.lt.s32.totalorder %s13, 3
    %p159 = pnand %p157, %p158
    %p160 = pneg %p159
    // Predicated region
    $region9: #{discriminator_forward.7} parent=5 // pred_check
      _
    $region10: #{discriminator_forward.7} parent=5 // pred_check_branch
      %162 = sbr.rel (%p159) target = $region12
    $region11: #{discriminator_forward.7} parent=5 // pred_region
      %s163 = ssub.s32 %s13, 1
      // Predicated region
      $region13: #{discriminator_forward.7} parent=11 // pred_check
        %p164 = pneg %p60
      $region14: #{discriminator_forward.7} parent=11 // pred_check_branch
        %166 = sbr.rel (%p164) target = $region16
      $region15: #{discriminator_forward.7} parent=11 // pred_region
        _
      $region16: #{discriminator_forward.7} parent=11 // pred_fallthru
        _
      // Predicated region
      $region17: #{discriminator_forward.7} parent=11 // pred_check
        %p167 = pneg %p81
      $region18: #{discriminator_forward.7} parent=11 // pred_check_branch
        %169 = sbr.rel (%p167) target = $region20
      $region19: #{discriminator_forward.7} parent=11 // pred_region
        _
      $region20: #{discriminator_forward.7} parent=11 // pred_fallthru
        _
      // Predicated region
      $region21: #{discriminator_forward.7} parent=11 // pred_check
        %p170 = pneg %p102
      $region22: #{discriminator_forward.7} parent=11 // pred_check_branch
        %172 = sbr.rel (%p170) target = $region24
      $region23: #{discriminator_forward.7} parent=11 // pred_region
        _
      $region24: #{discriminator_forward.7} parent=11 // pred_fallthru
        _
      // Predicated region
      $region25: #{discriminator_forward.7} parent=11 // pred_check
        %p173 = pneg %p123
      $region26: #{discriminator_forward.7} parent=11 // pred_check_branch
        %175 = sbr.rel (%p173) target = $region28
      $region27: #{discriminator_forward.7} parent=11 // pred_region
        _
      $region28: #{discriminator_forward.7} parent=11 // pred_fallthru
        _
    $region12: #{discriminator_forward.7} parent=5 // pred_fallthru
      _
    %p176 = scmp.lt.s32.totalorder %s13, 2
    // Predicated region
    $region29: #{discriminator_forward.7} parent=5 // pred_check
      %p177 = pneg %p176
    $region30: #{discriminator_forward.7} parent=5 // pred_check_branch
      %179 = sbr.rel (%p177) target = $region32
    $region31: #{discriminator_forward.7} parent=5 // pred_region
      // Predicated region
      $region33: #{discriminator_forward.7} parent=31 // pred_check
        %p180 = pneg %p33
      $region34: #{discriminator_forward.7} parent=31 // pred_check_branch
        %182 = sbr.rel (%p180) target = $region36
      $region35: #{discriminator_forward.7} parent=31 // pred_region
        %p183 = scmp.lt.s32.totalorder %s13, 1
        %s184 = scalar_select %p183, %s13, 1
        %s185 = smul.addr %s184, 2
        %s186 = smul.addr %s185, 4
        %s187 = scalar_lea.vmem %s0, %s186
      $region36: #{discriminator_forward.7} parent=31 // pred_fallthru
        _
    $region32: #{discriminator_forward.7} parent=5 // pred_fallthru
      _
    %p188 = scmp.le.s32.totalorder 1, %s13
    %p189 = scmp.lt.s32.totalorder %s13, 3
    %p190 = pnand %p188, %p189
    %p191 = pneg %p190
    // Predicated region
    $region37: #{discriminator_forward.7} parent=5 // pred_check
      _
    $region38: #{discriminator_forward.7} parent=5 // pred_check_branch
      %193 = sbr.rel (%p190) target = $region40
    $region39: #{discriminator_forward.7} parent=5 // pred_region
      %s194 = ssub.s32 %s13, 1
      %p195 = scmp.lt.s32.totalorder %s18, 1
      %s196 = scalar_select %p195, %s18, 1
      %s197 = smul.addr %s196, 2
      %s198 = smul.addr %s197, 4
      %s199 = scalar_lea.vmem %s0, %s198
      %p200 = pneg %p39
      %p201 = pneg %p36
      %p202 = pneg %p60
      %p203 = pneg %p57
      %p204 = pneg %p81
      %p205 = pneg %p78
      %p206 = pneg %p102
      %p207 = pneg %p99
      %p208 = pneg %p123
      %p209 = pneg %p120
      %p210 = pneg %p149
      %p211 = pneg %p146
      %p212 = scmp.lt.s32.totalorder %s18, 1
      %s213 = scalar_select %p212, %s18, 1
      %s214 = scalar_lea.vmem %s5, %s213
      %p215 = scmp.lt.s32.totalorder %s18, 1
      %s216 = scalar_select %p215, %s18, 1
      %s217 = smul.addr %s216, 2
      %s218 = smul.addr %s217, 4
      %s219 = scalar_lea.vmem %s0, %s218
      %p220 = scmp.lt.s32.totalorder %s18, 1
      %s221 = scalar_select %p220, %s18, 1
      %s222 = scalar_lea.vmem %s5, %s221
      %v223 = vld [vmem:[%s219] sm:$0xf]
      %v224 = vld [vmem:[%s219 + $0x4] sm:$0xf]
      %v225 = vunpack.c.l.bf16 %v223
      %v226 = vunpack.c.l.bf16 %v224
      %v227 = vld [vmem:[%s1] sm:$0x1]
      %v229 = vlaneseq
      %v230 = vshrl.u32 %v229, 7
      %v231 = vsub.s32 0, %v230
      %v232 = vrot.slane %v227, %v231
      %v234 = vmul.f32 %v225, %v232
      %v235 = vmul.f32 %v226, %v232
      %v236 = vld [vmem:[%s2] sm:$0x1]
      %v238 = vlaneseq
      %v239 = vshrl.u32 %v238, 7
      %v240 = vsub.s32 0, %v239
      %v241 = vrot.slane %v236, %v240
      %v243 = vadd.f32 %v234, %v241
      %v244 = vadd.f32 %v235, %v241
      %vm245 = vcmp.ge.f32.partialorder %v243, 0.0
      %vm246 = vcmp.ge.f32.partialorder %v244, 0.0
      %v247 = vmul.f32 %v243, 0.2
      %v248 = vmul.f32 %v244, 0.2
      %v249 = vsel %vm245, %v243, %v247
      %v250 = vsel %vm246, %v244, %v248
      %v251 = vld [vmem:[%s3] sm:$0xff]
      %v252 = vld [vmem:[%s3 + $0x8] sm:$0xff]
      %v253 = vmul.f32 %v249, %v251
      %v254 = vmul.f32 %v250, %v252
      %vm255 = vcmask 523264
      %v256 = vsel %vm255, %v253, 0.0
      %257 = vadd.xlane.f32.xlu0 %v256
      %v258 = vpop.xlane.xlu0 %257
      %v259 = vsel %vm255, %v254, 0.0
      %260 = vadd.xlane.f32.xlu0 %v259
      %v261 = vpop.xlane.xlu0 %260
      %v262 = vadd.f32 %v258, %v261
      %v263 = vrot.slane %v262, 4
      %v264 = vadd.f32 %v262, %v263
      %v265 = vrot.slane %v264, 2
      %v266 = vadd.f32 %v264, %v265
      %v267 = vrot.slane %v266, 1
      %v268 = vadd.f32 %v266, %v267
      %v269 = vld [vmem:[#allocation2] sm:$0x1]
      %v270 = vadd.f32 %v268, %v269
      %v271 = vsub.f32 0.0, %v270
      %v272 = vmul.f32 %v271, 1.442695
      %v273 = vpow.pop %v272
      %v274 = vadd.f32 %v273, 1.0
      %v275 = vrcp.pop %v274
      %v276 = vmul.f32 1.0, %v275
      %vm277 = vcmask 0
      %278 = vst.msk [vmem:[%s222] sm:$0x1] %vm277, %v276
      %p279 = scmp.lt.s32.totalorder %s18, 1
      %s280 = scalar_select %p279, %s18, 1
      %s281 = scalar_lea.vmem %s5, %s280
      // Predicated region
      $region41: #{discriminator_forward.7} parent=39 // pred_check
        %p282 = pneg %p146
      $region42: #{discriminator_forward.7} parent=39 // pred_check_branch
        %284 = sbr.rel (%p282) target = $region44
      $region43: #{discriminator_forward.7} parent=39 // pred_region
        _
      $region44: #{discriminator_forward.7} parent=39 // pred_fallthru
        _
    $region40: #{discriminator_forward.7} parent=5 // pred_fallthru
      _
    %p285 = scmp.le.s32.totalorder 2, %s13
    // Predicated region
    $region45: #{discriminator_forward.7} parent=5 // pred_check
      %p286 = pneg %p285
    $region46: #{discriminator_forward.7} parent=5 // pred_check_branch
      %288 = sbr.rel (%p286) target = $region48
    $region47: #{discriminator_forward.7} parent=5 // pred_region
      %s289 = ssub.s32 %s13, 2
      // Predicated region
      $region49: #{discriminator_forward.7} parent=47 // pred_check
        %p290 = pneg %p152
      $region50: #{discriminator_forward.7} parent=47 // pred_check_branch
        %292 = sbr.rel (%p290) target = $region52
      $region51: #{discriminator_forward.7} parent=47 // pred_region
        %p293 = scmp.lt.s32.totalorder %s19, 1
        %s294 = scalar_select %p293, %s19, 1
        %s295 = scalar_lea.vmem %s5, %s294
      $region52: #{discriminator_forward.7} parent=47 // pred_fallthru
        _
    $region48: #{discriminator_forward.7} parent=5 // pred_fallthru
      _
  $region6: #{discriminator_forward.7} parent=0 // loop_footer
    %s17 = sadd.s32 1, %s13
  $region7: #{discriminator_forward.7} parent=0 // loop_footer_branch
    %12 = sbr.rel target = $region3
  $region8: #{discriminator_forward.7} parent=0 // loop_exit
    _

// kernel: discriminator_forward.6
$region0: #{discriminator_forward.6}
  #allocation0 [shape = 'u32[]', space=smem, size = 0x4, offset = 0x4, fixed_abs, tag = 'smem constant byte address 0x4 - core index']
  #allocation1 [shape = 'u32[144,128]{1,0:T(1,128)}', space=vmem, size = 0x12000, scoped, tag = 'internal scratch']
  #allocation2 [shape = 'bf16[16,512]{1,0:T(8,128)(2,1)}', space=vmem, size = 0x4000, scoped, tag = 'scratch operand']
  %s0 = inlined_call_operand.vmem [shape: bf16[2,5,5,128], index: 0, kind: input, shape index: {}]
  %s1 = inlined_call_operand.vmem [shape: bf16[512,128], index: 1, kind: input, shape index: {}]
  %s2 = inlined_call_operand.vmem [shape: f32[1,64], index: 2, kind: input, shape index: {}]
  %s3 = inlined_call_operand.vmem [shape: bf16[2,16,64], index: 3, kind: output, shape index: {0}]
  %s4 = inlined_call_operand.vmem [shape: f32[2,1,2,64], index: 4, kind: output, shape index: {1}]
  %5 = xla_tuple %s3, %s4
  %s6 = sld [smem:[#allocation0]]
  $region53: #{discriminator_forward.6} parent=0
    _
  %s8 = ssub.s32 1, %s6
  %s9 = scalar_select 0, %s8, %s6
  loop: start=0, step=1, limit=4
  $region2: #{discriminator_forward.6} parent=0 // loop_pre_header
    _
  $region3: #{discriminator_forward.6} parent=0 // loop_header
    %s11 = sphi 0, %s15
    %p12 = scmp.ge.s32.totalorder %s11, 4
    %s18 = sphi 0, %s30
    %s19 = sphi 0, %s26
    %s20 = sphi 0, %s18
    %s21 = sphi 0, %s19
    %s22 = sphi 0, %s20
    %s23 = sphi 0, %s21
    %s33 = sphi 0, %s35
    %s36 = sphi 0, %s33
    %s37 = sphi 0, %s36
    %s53 = sphi 0, %s37
    %s57 = sphi 0, %s57
    %s59 = sphi 0, %s57
    %s60 = sphi 0, %s59
    %s74 = sphi 0, %s60
    %s78 = sphi 0, %s78
    %s80 = sphi 0, %s78
    %s81 = sphi 0, %s80
    %s95 = sphi 0, %s81
    %s103 = sphi 0, %s105
    %s106 = sphi 0, %s103
    %s107 = sphi 0, %s106
    %s123 = sphi 0, %s107
    %s131 = sphi 0, %s133
    %s134 = sphi 0, %s131
    %s135 = sphi 0, %s134
    %s151 = sphi 0, %s135
  $region4: #{discriminator_forward.6} parent=0 // loop_header_branch
    %14 = sbr.rel (%p12) target = $region8
  $region5: #{discriminator_forward.6} parent=0 // loop_body
    %s16 = ssub.s32 %s11, 1
    %s17 = ssub.s32 %s11, 2
    %s24 = sadd.s32 1, %s19
    %p25 = scmp.ge.s32.totalorder %s24, 1
    %s26 = scalar_select %p25, 0, %s24
    %s27 = sadd.s32 1, %s18
    %s28 = scalar_select %p25, %s27, %s18
    %p29 = scmp.ge.s32.totalorder %s28, 2
    %s30 = scalar_select %p29, 0, %s28
    %s31 = ssub.s32 %s18, %s30
    %p32 = scmp.eq.s32.totalorder %s31, 0
    %s34 = sadd.s32 %s33, 1
    %s35 = scalar_select %p32, %s33, %s34
    %p38 = pneg %p32
    %p39 = scmp.eq.s32.totalorder %s11, 1
    %p40 = por %p38, %p39
    %p41 = scmp.ne.s32.totalorder %s33, %s36
    %p42 = scmp.eq.s32.totalorder %s11, 0
    %p43 = por %p41, %p42
    %p44 = scmp.ne.s32.totalorder %s33, %s36
    %p45 = scmp.eq.s32.totalorder %s16, 1
    %p46 = por %p44, %p45
    %p47 = scmp.ne.s32.totalorder %s36, %s37
    %p48 = scmp.eq.s32.totalorder %s16, 0
    %p49 = por %p47, %p48
    %p50 = scmp.ne.s32.totalorder %s36, %s37
    %p51 = scmp.eq.s32.totalorder %s17, 1
    %p52 = por %p50, %p51
    %p54 = scmp.ne.s32.totalorder %s37, %s53
    %p55 = scmp.eq.s32.totalorder %s17, 0
    %p56 = por %p54, %p55
    %s58 = sadd.s32 %s57, 1
    %p61 = scmp.eq.s32.totalorder %s11, 1
    %p62 = scmp.ne.s32.totalorder %s57, %s59
    %p63 = scmp.eq.s32.totalorder %s11, 0
    %p64 = por %p62, %p63
    %p65 = scmp.ne.s32.totalorder %s57, %s59
    %p66 = scmp.eq.s32.totalorder %s16, 1
    %p67 = por %p65, %p66
    %p68 = scmp.ne.s32.totalorder %s59, %s60
    %p69 = scmp.eq.s32.totalorder %s16, 0
    %p70 = por %p68, %p69
    %p71 = scmp.ne.s32.totalorder %s59, %s60
    %p72 = scmp.eq.s32.totalorder %s17, 1
    %p73 = por %p71, %p72
    %p75 = scmp.ne.s32.totalorder %s60, %s74
    %p76 = scmp.eq.s32.totalorder %s17, 0
    %p77 = por %p75, %p76
    %s79 = sadd.s32 %s78, 1
    %p82 = scmp.eq.s32.totalorder %s11, 1
    %p83 = scmp.ne.s32.totalorder %s78, %s80
    %p84 = scmp.eq.s32.totalorder %s11, 0
    %p85 = por %p83, %p84
    %p86 = scmp.ne.s32.totalorder %s78, %s80
    %p87 = scmp.eq.s32.totalorder %s16, 1
    %p88 = por %p86, %p87
    %p89 = scmp.ne.s32.totalorder %s80, %s81
    %p90 = scmp.eq.s32.totalorder %s16, 0
    %p91 = por %p89, %p90
    %p92 = scmp.ne.s32.totalorder %s80, %s81
    %p93 = scmp.eq.s32.totalorder %s17, 1
    %p94 = por %p92, %p93
    %p96 = scmp.ne.s32.totalorder %s81, %s95
    %p97 = scmp.eq.s32.totalorder %s17, 0
    %p98 = por %p96, %p97
    %s99 = ssub.s32 %s18, %s30
    %s100 = ssub.s32 %s19, %s26
    %s101 = sor.u32 %s99, %s100
    %p102 = scmp.eq.s32.totalorder %s101, 0
    %s104 = sadd.s32 %s103, 1
    %s105 = scalar_select %p102, %s103, %s104
    %p108 = pneg %p102
    %p109 = scmp.eq.s32.totalorder %s11, 1
    %p110 = por %p108, %p109
    %p111 = scmp.ne.s32.totalorder %s103, %s106
    %p112 = scmp.eq.s32.totalorder %s11, 0
    %p113 = por %p111, %p112
    %p114 = scmp.ne.s32.totalorder %s103, %s106
    %p115 = scmp.eq.s32.totalorder %s16, 1
    %p116 = por %p114, %p115
    %p117 = scmp.ne.s32.totalorder %s106, %s107
    %p118 = scmp.eq.s32.totalorder %s16, 0
    %p119 = por %p117, %p118
    %p120 = scmp.ne.s32.totalorder %s106, %s107
    %p121 = scmp.eq.s32.totalorder %s17, 1
    %p122 = por %p120, %p121
    %p124 = scmp.ne.s32.totalorder %s107, %s123
    %p125 = scmp.eq.s32.totalorder %s17, 0
    %p126 = por %p124, %p125
    %s127 = ssub.s32 %s18, %s30
    %s128 = ssub.s32 %s19, %s26
    %s129 = sor.u32 %s127, %s128
    %p130 = scmp.eq.s32.totalorder %s129, 0
    %s132 = sadd.s32 %s131, 1
    %s133 = scalar_select %p130, %s131, %s132
    %p136 = pneg %p130
    %p137 = scmp.eq.s32.totalorder %s11, 1
    %p138 = por %p136, %p137
    %p139 = scmp.ne.s32.totalorder %s131, %s134
    %p140 = scmp.eq.s32.totalorder %s11, 0
    %p141 = por %p139, %p140
    %p142 = scmp.ne.s32.totalorder %s131, %s134
    %p143 = scmp.eq.s32.totalorder %s16, 1
    %p144 = por %p142, %p143
    %p145 = scmp.ne.s32.totalorder %s134, %s135
    %p146 = scmp.eq.s32.totalorder %s16, 0
    %p147 = por %p145, %p146
    %p148 = scmp.ne.s32.totalorder %s134, %s135
    %p149 = scmp.eq.s32.totalorder %s17, 1
    %p150 = por %p148, %p149
    %p152 = scmp.ne.s32.totalorder %s135, %s151
    %p153 = scmp.eq.s32.totalorder %s17, 0
    %p154 = por %p152, %p153
    %p155 = scmp.le.s32.totalorder 1, %s11
    %p156 = scmp.lt.s32.totalorder %s11, 3
    %p157 = pnand %p155, %p156
    %p158 = pneg %p157
    // Predicated region
    $region9: #{discriminator_forward.6} parent=5 // pred_check
      _
    $region10: #{discriminator_forward.6} parent=5 // pred_check_branch
      %160 = sbr.rel (%p157) target = $region12
    $region11: #{discriminator_forward.6} parent=5 // pred_region
      %s161 = ssub.s32 %s11, 1
      // Predicated region
      $region13: #{discriminator_forward.6} parent=11 // pred_check
        %p162 = pneg %p70
      $region14: #{discriminator_forward.6} parent=11 // pred_check_branch
        %164 = sbr.rel (%p162) target = $region16
      $region15: #{discriminator_forward.6} parent=11 // pred_region
        _
      $region16: #{discriminator_forward.6} parent=11 // pred_fallthru
        _
      // Predicated region
      $region17: #{discriminator_forward.6} parent=11 // pred_check
        %p165 = pneg %p91
      $region18: #{discriminator_forward.6} parent=11 // pred_check_branch
        %167 = sbr.rel (%p165) target = $region20
      $region19: #{discriminator_forward.6} parent=11 // pred_region
        _
      $region20: #{discriminator_forward.6} parent=11 // pred_fallthru
        _
    $region12: #{discriminator_forward.6} parent=5 // pred_fallthru
      _
    %p168 = scmp.lt.s32.totalorder %s11, 2
    // Predicated region
    $region21: #{discriminator_forward.6} parent=5 // pred_check
      %p169 = pneg %p168
    $region22: #{discriminator_forward.6} parent=5 // pred_check_branch
      %171 = sbr.rel (%p169) target = $region24
    $region23: #{discriminator_forward.6} parent=5 // pred_region
      // Predicated region
      $region25: #{discriminator_forward.6} parent=23 // pred_check
        %p172 = pneg %p43
      $region26: #{discriminator_forward.6} parent=23 // pred_check_branch
        %174 = sbr.rel (%p172) target = $region28
      $region27: #{discriminator_forward.6} parent=23 // pred_region
        %p175 = scmp.lt.s32.totalorder %s18, 1
        %s176 = scalar_select %p175, %s18, 1
        %s177 = smul.addr %s176, 5
        %s178 = smul.addr %s177, 4
        %s179 = scalar_lea.vmem %s0, %s178
      $region28: #{discriminator_forward.6} parent=23 // pred_fallthru
        _
    $region24: #{discriminator_forward.6} parent=5 // pred_fallthru
      _
    %p180 = scmp.le.s32.totalorder 1, %s11
    %p181 = scmp.lt.s32.totalorder %s11, 3
    %p182 = pnand %p180, %p181
    %p183 = pneg %p182
    // Predicated region
    $region29: #{discriminator_forward.6} parent=5 // pred_check
      _
    $region30: #{discriminator_forward.6} parent=5 // pred_check_branch
      %185 = sbr.rel (%p182) target = $region32
    $region31: #{discriminator_forward.6} parent=5 // pred_region
      %s186 = ssub.s32 %s11, 1
      %p187 = scmp.lt.s32.totalorder %s20, 1
      %s188 = scalar_select %p187, %s20, 1
      %s189 = smul.addr %s188, 5
      %s190 = smul.addr %s189, 4
      %s191 = scalar_lea.vmem %s0, %s190
      %p192 = pneg %p49
      %p193 = pneg %p46
      %p194 = pneg %p70
      %p195 = pneg %p67
      %p196 = pneg %p91
      %p197 = pneg %p88
      %p198 = pneg %p119
      %p199 = pneg %p116
      %s200 = smul.u32 2, %s21
      %p201 = scmp.lt.s32.totalorder %s20, 1
      %s202 = scalar_select %p201, %s20, 1
      %p203 = scmp.lt.s32.totalorder %s200, 1
      %s204 = scalar_select %p203, %s200, 1
      %s205 = smul.addr %s202, 2
      %s206 = sadd.s32 %s204, %s205
      %s207 = smul.addr %s206, 4
      %s208 = scalar_lea.vmem %s3, %s207
      %p209 = pneg %p147
      %p210 = pneg %p144
      %p211 = scmp.lt.s32.totalorder %s20, 1
      %s212 = scalar_select %p211, %s20, 1
      %p213 = scmp.lt.s32.totalorder %s21, 0
      %s214 = scalar_select %p213, %s21, 0
      %s215 = sadd.s32 %s214, %s212
      %s216 = smul.addr %s215, 2
      %s217 = scalar_lea.vmem %s4, %s216
      %p218 = scmp.lt.s32.totalorder %s20, 1
      %s219 = scalar_select %p218, %s20, 1
      %s220 = smul.addr %s219, 5
      %s221 = smul.addr %s220, 4
      %s222 = scalar_lea.vmem %s0, %s221
      %s223 = smul.u32 2, %s21
      %p224 = scmp.lt.s32.totalorder %s20, 1
      %s225 = scalar_select %p224, %s20, 1
      %p226 = scmp.lt.s32.totalorder %s223, 1
      %s227 = scalar_select %p226, %s223, 1
      %s228 = smul.addr %s225, 2
      %s229 = sadd.s32 %s227, %s228
      %s230 = smul.addr %s229, 4
      %s231 = scalar_lea.vmem %s3, %s230
      %s232 = smul.u32 2, %s21
      %p233 = scmp.lt.s32.totalorder %s20, 1
      %s234 = scalar_select %p233, %s20, 1
      %p235 = scmp.lt.s32.totalorder %s21, 0
      %s236 = scalar_select %p235, %s21, 0
      %s237 = sadd.s32 %s236, %s234
      %s238 = smul.addr %s237, 2
      %s239 = scalar_lea.vmem %s4, %s238
      %v241 = vld [vmem:[%s222] sm:$0x3]
      %v242 = vld [vmem:[%s222 + $0x4] sm:$0x3]
      %v243 = vld [vmem:[%s222 + $0x8] sm:$0x3]
      %v244 = vld [vmem:[%s222 + $0xc] sm:$0x3]
      %v249 = vcombine.low %v241, %v242
      %v251 = vunpack.c.l.s4 1983009808
      %v252 = vunpack.c.0.s8 %v251
      %v253 = vlaneseq
      %v254 = vshrl.u32 %v253, 7
      %v255 = vsub.s32 %v252, %v254
      %v256 = vrot.slane %v249, %v255
      %v257 = vcombine.low %v243, %v244
      %v259 = vunpack.c.l.s4 1983009808
      %v260 = vunpack.c.0.s8 %v259
      %v261 = vlaneseq
      %v262 = vshrl.u32 %v261, 7
      %v263 = vsub.s32 %v260, %v262
      %v264 = vrot.slane %v257, %v263
      %267 = vst [vmem:[#allocation2] sm:$0xf] %v256
      %268 = vst [vmem:[#allocation2 + $0x10] sm:$0xf] %v264
      %v269 = vld [vmem:[%s222] sm:$0x7]
      %v270 = vld [vmem:[%s222 + $0x4] sm:$0x7]
      %v271 = vld [vmem:[%s222 + $0x8] sm:$0x7]
      %v272 = vld [vmem:[%s222 + $0xc] sm:$0x7]
      %v278 = vunpack.c.l.s4 1983009808
      %v279 = vunpack.c.0.s8 %v278
      %v280 = vlaneseq
      %v281 = vshrl.u32 %v280, 7
      %v282 = vsub.s32 %v279, %v281
      %v283 = vrot.slane %v269, %v282
      %v284 = vcombine.high %v283, %v283
      %v286 = vunpack.c.l.s4 1983009808
      %v287 = vunpack.c.0.s8 %v286
      %v288 = vlaneseq
      %v289 = vshrl.u32 %v288, 7
      %v290 = vsub.s32 %v287, %v289
      %v291 = vrot.slane %v270, %v290
      %v292 = vcombine.high %v291, %v291
      %v294 = vunpack.c.l.s4 1983009808
      %v295 = vunpack.c.0.s8 %v294
      %v296 = vlaneseq
      %v297 = vshrl.u32 %v296, 7
      %v298 = vsub.s32 %v295, %v297
      %v299 = vrot.slane %v271, %v298
      %v300 = vcombine.high %v299, %v299
      %v302 = vunpack.c.l.s4 1983009808
      %v303 = vunpack.c.0.s8 %v302
      %v304 = vlaneseq
      %v305 = vshrl.u32 %v304, 7
      %v306 = vsub.s32 %v303, %v305
      %v307 = vrot.slane %v272, %v306
      %v308 = vcombine.high %v307, %v307
      %vm309 = vsmask.f32 1280
      %vm310 = vsmask.f32 3336
      %vm311 = vmor %vm309, %vm310
      %vm312 = vsmask.f32 5392
      %vm313 = vmor %vm311, %vm312
      %vm314 = vsmask.f32 7448
      %vm315 = vmor %vm313, %vm314
      %v317 = vshrl.u32 %v283, 16
      %v319 = vrot.slane %v317, 6
      %v320 = vshll.u32 %v283, 16
      %v322 = vrot.slane %v320, 7
      %v323 = vor.u32 %v319, %v322
      %v324 = vrot.slane %v323, 2
      %v326 = vshll.u32 %v284, 16
      %v328 = vrot.slane %v326, 7
      %v329 = vsel %vm315, %v324, %v328
      %v331 = vshrl.u32 %v291, 16
      %v333 = vrot.slane %v331, 6
      %v334 = vshll.u32 %v291, 16
      %v336 = vrot.slane %v334, 7
      %v337 = vor.u32 %v333, %v336
      %v338 = vrot.slane %v337, 2
      %v340 = vshll.u32 %v292, 16
      %v342 = vrot.slane %v340, 7
      %v343 = vsel %vm315, %v338, %v342
      %v345 = vshrl.u32 %v299, 16
      %v347 = vrot.slane %v345, 6
      %v348 = vshll.u32 %v299, 16
      %v350 = vrot.slane %v348, 7
      %v351 = vor.u32 %v347, %v350
      %v352 = vrot.slane %v351, 2
      %v354 = vshll.u32 %v300, 16
      %v356 = vrot.slane %v354, 7
      %v357 = vsel %vm315, %v352, %v356
      %v359 = vshrl.u32 %v307, 16
      %v361 = vrot.slane %v359, 6
      %v362 = vshll.u32 %v307, 16
      %v364 = vrot.slane %v362, 7
      %v365 = vor.u32 %v361, %v364
      %v366 = vrot.slane %v365, 2
      %v368 = vshll.u32 %v308, 16
      %v370 = vrot.slane %v368, 7
      %v371 = vsel %vm315, %v366, %v370
      %v372 = vcombine.low %v329, %v343
      %v374 = vunpack.c.l.s4 1983009808
      %v375 = vunpack.c.0.s8 %v374
      %v376 = vlaneseq
      %v377 = vshrl.u32 %v376, 7
      %v378 = vsub.s32 %v375, %v377
      %v379 = vrot.slane %v372, %v378
      %v380 = vcombine.low %v357, %v371
      %v382 = vunpack.c.l.s4 1983009808
      %v383 = vunpack.c.0.s8 %v382
      %v384 = vlaneseq
      %v385 = vshrl.u32 %v384, 7
      %v386 = vsub.s32 %v383, %v385
      %v387 = vrot.slane %v380, %v386
      %390 = vst [vmem:[#allocation2 + $0x4] sm:$0xf] %v379
      %391 = vst [vmem:[#allocation2 + $0x14] sm:$0xf] %v387
      %s392 = scalar_lea.vmem %s222, 4
      %v393 = vld [vmem:[%s392] sm:$0x3]
      %v394 = vld [vmem:[%s392 + $0x4] sm:$0x3]
      %v395 = vld [vmem:[%s392 + $0x8] sm:$0x3]
      %v396 = vld [vmem:[%s392 + $0xc] sm:$0x3]
      %v401 = vcombine.low %v393, %v394
      %v403 = vunpack.c.l.s4 1983009808
      %v404 = vunpack.c.0.s8 %v403
      %v405 = vlaneseq
      %v406 = vshrl.u32 %v405, 7
      %v407 = vsub.s32 %v404, %v406
      %v408 = vrot.slane %v401, %v407
      %v409 = vcombine.low %v395, %v396
      %v411 = vunpack.c.l.s4 1983009808
      %v412 = vunpack.c.0.s8 %v411
      %v413 = vlaneseq
      %v414 = vshrl.u32 %v413, 7
      %v415 = vsub.s32 %v412, %v414
      %v416 = vrot.slane %v409, %v415
      %419 = vst [vmem:[#allocation2 + $0x8] sm:$0xf] %v408
      %420 = vst [vmem:[#allocation2 + $0x18] sm:$0xf] %v416
      %v421 = vld [vmem:[%s392] sm:$0x7]
      %v422 = vld [vmem:[%s392 + $0x4] sm:$0x7]
      %v423 = vld [vmem:[%s392 + $0x8] sm:$0x7]
      %v424 = vld [vmem:[%s392 + $0xc] sm:$0x7]
      %v430 = vunpack.c.l.s4 1983009808
      %v431 = vunpack.c.0.s8 %v430
      %v432 = vlaneseq
      %v433 = vshrl.u32 %v432, 7
      %v434 = vsub.s32 %v431, %v433
      %v435 = vrot.slane %v421, %v434
      %v436 = vcombine.high %v435, %v435
      %v438 = vunpack.c.l.s4 1983009808
      %v439 = vunpack.c.0.s8 %v438
      %v440 = vlaneseq
      %v441 = vshrl.u32 %v440, 7
      %v442 = vsub.s32 %v439, %v441
      %v443 = vrot.slane %v422, %v442
      %v444 = vcombine.high %v443, %v443
      %v446 = vunpack.c.l.s4 1983009808
      %v447 = vunpack.c.0.s8 %v446
      %v448 = vlaneseq
      %v449 = vshrl.u32 %v448, 7
      %v450 = vsub.s32 %v447, %v449
      %v451 = vrot.slane %v423, %v450
      %v452 = vcombine.high %v451, %v451
      %v454 = vunpack.c.l.s4 1983009808
      %v455 = vunpack.c.0.s8 %v454
      %v456 = vlaneseq
      %v457 = vshrl.u32 %v456, 7
      %v458 = vsub.s32 %v455, %v457
      %v459 = vrot.slane %v424, %v458
      %v460 = vcombine.high %v459, %v459
      %v462 = vshrl.u32 %v435, 16
      %v464 = vrot.slane %v462, 6
      %v465 = vshll.u32 %v435, 16
      %v467 = vrot.slane %v465, 7
      %v468 = vor.u32 %v464, %v467
      %v469 = vrot.slane %v468, 2
      %v471 = vshll.u32 %v436, 16
      %v473 = vrot.slane %v471, 7
      %v474 = vsel %vm315, %v469, %v473
      %v476 = vshrl.u32 %v443, 16
      %v478 = vrot.slane %v476, 6
      %v479 = vshll.u32 %v443, 16
      %v481 = vrot.slane %v479, 7
      %v482 = vor.u32 %v478, %v481
      %v483 = vrot.slane %v482, 2
      %v485 = vshll.u32 %v444, 16
      %v487 = vrot.slane %v485, 7
      %v488 = vsel %vm315, %v483, %v487
      %v490 = vshrl.u32 %v451, 16
      %v492 = vrot.slane %v490, 6
      %v493 = vshll.u32 %v451, 16
      %v495 = vrot.slane %v493, 7
      %v496 = vor.u32 %v492, %v495
      %v497 = vrot.slane %v496, 2
      %v499 = vshll.u32 %v452, 16
      %v501 = vrot.slane %v499, 7
      %v502 = vsel %vm315, %v497, %v501
      %v504 = vshrl.u32 %v459, 16
      %v506 = vrot.slane %v504, 6
      %v507 = vshll.u32 %v459, 16
      %v509 = vrot.slane %v507, 7
      %v510 = vor.u32 %v506, %v509
      %v511 = vrot.slane %v510, 2
      %v513 = vshll.u32 %v460, 16
      %v515 = vrot.slane %v513, 7
      %v516 = vsel %vm315, %v511, %v515
      %v517 = vcombine.low %v474, %v488
      %v519 = vunpack.c.l.s4 1983009808
      %v520 = vunpack.c.0.s8 %v519
      %v521 = vlaneseq
      %v522 = vshrl.u32 %v521, 7
      %v523 = vsub.s32 %v520, %v522
      %v524 = vrot.slane %v517, %v523
      %v525 = vcombine.low %v502, %v516
      %v527 = vunpack.c.l.s4 1983009808
      %v528 = vunpack.c.0.s8 %v527
      %v529 = vlaneseq
      %v530 = vshrl.u32 %v529, 7
      %v531 = vsub.s32 %v528, %v530
      %v532 = vrot.slane %v525, %v531
      %535 = vst [vmem:[#allocation2 + $0xc] sm:$0xf] %v524
      %536 = vst [vmem:[#allocation2 + $0x1c] sm:$0xf] %v532
      %v537 = vld [vmem:[#allocation2] sm:$0xff]
      %v538 = vld [vmem:[#allocation2 + $0x8] sm:$0xff]
      %v539 = vld [vmem:[#allocation2 + $0x10] sm:$0xff]
      %v540 = vld [vmem:[#allocation2 + $0x18] sm:$0xff]
      %v541 = vld [vmem:[%s1] sm:$0xf]
      %v542 = vld [vmem:[%s1 + $0x4] sm:$0xf]
      %v543 = vld [vmem:[%s1 + $0x8] sm:$0xf]
      %v544 = vld [vmem:[%s1 + $0xc] sm:$0xf]
      %v545 = vld [vmem:[%s1 + $0x10] sm:$0xf]
      %v546 = vld [vmem:[%s1 + $0x14] sm:$0xf]
      %v547 = vld [vmem:[%s1 + $0x18] sm:$0xf]
      %v548 = vld [vmem:[%s1 + $0x1c] sm:$0xf]
      %v549 = vld [vmem:[%s1 + $0x20] sm:$0xf]
      %v550 = vld [vmem:[%s1 + $0x24] sm:$0xf]
      %v551 = vld [vmem:[%s1 + $0x28] sm:$0xf]
      %v552 = vld [vmem:[%s1 + $0x2c] sm:$0xf]
      %v553 = vld [vmem:[%s1 + $0x30] sm:$0xf]
      %v554 = vld [vmem:[%s1 + $0x34] sm:$0xf]
      %v555 = vld [vmem:[%s1 + $0x38] sm:$0xf]
      %v556 = vld [vmem:[%s1 + $0x3c] sm:$0xf]
      %v557 = vld [vmem:[%s1 + $0x40] sm:$0xf]
      %v558 = vld [vmem:[%s1 + $0x44] sm:$0xf]
      %v559 = vld [vmem:[%s1 + $0x48] sm:$0xf]
      %v560 = vld [vmem:[%s1 + $0x4c] sm:$0xf]
      %v561 = vld [vmem:[%s1 + $0x50] sm:$0xf]
      %v562 = vld [vmem:[%s1 + $0x54] sm:$0xf]
      %v563 = vld [vmem:[%s1 + $0x58] sm:$0xf]
      %v564 = vld [vmem:[%s1 + $0x5c] sm:$0xf]
      %v565 = vld [vmem:[%s1 + $0x60] sm:$0xf]
      %v566 = vld [vmem:[%s1 + $0x64] sm:$0xf]
      %v567 = vld [vmem:[%s1 + $0x68] sm:$0xf]
      %v568 = vld [vmem:[%s1 + $0x6c] sm:$0xf]
      %v569 = vld [vmem:[%s1 + $0x70] sm:$0xf]
      %v570 = vld [vmem:[%s1 + $0x74] sm:$0xf]
      %v571 = vld [vmem:[%s1 + $0x78] sm:$0xf]
      %v572 = vld [vmem:[%s1 + $0x7c] sm:$0xf]
      %v573 = vld [vmem:[%s1 + $0x80] sm:$0xf]
      %v574 = vld [vmem:[%s1 + $0x84] sm:$0xf]
      %v575 = vld [vmem:[%s1 + $0x88] sm:$0xf]
      %v576 = vld [vmem:[%s1 + $0x8c] sm:$0xf]
      %v577 = vld [vmem:[%s1 + $0x90] sm:$0xf]
      %v578 = vld [vmem:[%s1 + $0x94] sm:$0xf]
      %v579 = vld [vmem:[%s1 + $0x98] sm:$0xf]
      %v580 = vld [vmem:[%s1 + $0x9c] sm:$0xf]
      %v581 = vld [vmem:[%s1 + $0xa0] sm:$0xf]
      %v582 = vld [vmem:[%s1 + $0xa4] sm:$0xf]
      %v583 = vld [vmem:[%s1 + $0xa8] sm:$0xf]
      %v584 = vld [vmem:[%s1 + $0xac] sm:$0xf]
      %v585 = vld [vmem:[%s1 + $0xb0] sm:$0xf]
      %v586 = vld [vmem:[%s1 + $0xb4] sm:$0xf]
      %v587 = vld [vmem:[%s1 + $0xb8] sm:$0xf]
      %v588 = vld [vmem:[%s1 + $0xbc] sm:$0xf]
      %v589 = vld [vmem:[%s1 + $0xc0] sm:$0xf]
      %v590 = vld [vmem:[%s1 + $0xc4] sm:$0xf]
      %v591 = vld [vmem:[%s1 + $0xc8] sm:$0xf]
      %v592 = vld [vmem:[%s1 + $0xcc] sm:$0xf]
      %v593 = vld [vmem:[%s1 + $0xd0] sm:$0xf]
      %v594 = vld [vmem:[%s1 + $0xd4] sm:$0xf]
      %v595 = vld [vmem:[%s1 + $0xd8] sm:$0xf]
      %v596 = vld [vmem:[%s1 + $0xdc] sm:$0xf]
      %v597 = vld [vmem:[%s1 + $0xe0] sm:$0xf]
      %v598 = vld [vmem:[%s1 + $0xe4] sm:$0xf]
      %v599 = vld [vmem:[%s1 + $0xe8] sm:$0xf]
      %v600 = vld [vmem:[%s1 + $0xec] sm:$0xf]
      %v601 = vld [vmem:[%s1 + $0xf0] sm:$0xf]
      %v602 = vld [vmem:[%s1 + $0xf4] sm:$0xf]
      %v603 = vld [vmem:[%s1 + $0xf8] sm:$0xf]
      %v604 = vld [vmem:[%s1 + $0xfc] sm:$0xf]
      %v609 = vunpack.c.l.b16 %v537
      %v610 = vunpack.c.h.b16 %v537
      %v611 = vunpack.c.l.b16 %v538
      %v612 = vunpack.c.h.b16 %v538
      %v613 = vunpack.c.l.b16 %v539
      %v614 = vunpack.c.h.b16 %v539
      %v615 = vunpack.c.l.b16 %v540
      %v616 = vunpack.c.h.b16 %v540
      %v617 = vpack.c.b16 %v613, %v609
      %v618 = vpack.c.b16 %v614, %v610
      %v619 = vpack.c.b16 %v615, %v611
      %v620 = vpack.c.b16 %v616, %v612
      %v689 = vunpack.c.l.b16 %v541
      %v690 = vunpack.c.l.b16 %v542
      %v691 = vunpack.c.l.b16 %v543
      %v692 = vunpack.c.l.b16 %v544
      %v693 = vunpack.c.l.b16 %v545
      %v694 = vunpack.c.l.b16 %v546
      %v695 = vunpack.c.l.b16 %v547
      %v696 = vunpack.c.l.b16 %v548
      %v697 = vunpack.c.l.b16 %v549
      %v698 = vunpack.c.l.b16 %v550
      %v699 = vunpack.c.l.b16 %v551
      %v700 = vunpack.c.l.b16 %v552
      %v701 = vunpack.c.l.b16 %v553
      %v702 = vunpack.c.l.b16 %v554
      %v703 = vunpack.c.l.b16 %v555
      %v704 = vunpack.c.l.b16 %v556
      %v705 = vunpack.c.l.b16 %v557
      %v706 = vunpack.c.l.b16 %v558
      %v707 = vunpack.c.l.b16 %v559
      %v708 = vunpack.c.l.b16 %v560
      %v709 = vunpack.c.l.b16 %v561
      %v710 = vunpack.c.l.b16 %v562
      %v711 = vunpack.c.l.b16 %v563
      %v712 = vunpack.c.l.b16 %v564
      %v713 = vunpack.c.l.b16 %v565
      %v714 = vunpack.c.l.b16 %v566
      %v715 = vunpack.c.l.b16 %v567
      %v716 = vunpack.c.l.b16 %v568
      %v717 = vunpack.c.l.b16 %v569
      %v718 = vunpack.c.l.b16 %v570
      %v719 = vunpack.c.l.b16 %v571
      %v720 = vunpack.c.l.b16 %v572
      %v721 = vunpack.c.l.b16 %v573
      %v722 = vunpack.c.l.b16 %v574
      %v723 = vunpack.c.l.b16 %v575
      %v724 = vunpack.c.l.b16 %v576
      %v725 = vunpack.c.l.b16 %v577
      %v726 = vunpack.c.l.b16 %v578
      %v727 = vunpack.c.l.b16 %v579
      %v728 = vunpack.c.l.b16 %v580
      %v729 = vunpack.c.l.b16 %v581
      %v730 = vunpack.c.l.b16 %v582
      %v731 = vunpack.c.l.b16 %v583
      %v732 = vunpack.c.l.b16 %v584
      %v733 = vunpack.c.l.b16 %v585
      %v734 = vunpack.c.l.b16 %v586
      %v735 = vunpack.c.l.b16 %v587
      %v736 = vunpack.c.l.b16 %v588
      %v737 = vunpack.c.l.b16 %v589
      %v738 = vunpack.c.l.b16 %v590
      %v739 = vunpack.c.l.b16 %v591
      %v740 = vunpack.c.l.b16 %v592
      %v741 = vunpack.c.l.b16 %v593
      %v742 = vunpack.c.l.b16 %v594
      %v743 = vunpack.c.l.b16 %v595
      %v744 = vunpack.c.l.b16 %v596
      %v745 = vunpack.c.l.b16 %v597
      %v746 = vunpack.c.l.b16 %v598
      %v747 = vunpack.c.l.b16 %v599
      %v748 = vunpack.c.l.b16 %v600
      %v749 = vunpack.c.l.b16 %v601
      %v750 = vunpack.c.l.b16 %v602
      %v751 = vunpack.c.l.b16 %v603
      %v752 = vunpack.c.l.b16 %v604
      %v753 = vpack.c.b16 %v690, %v689
      %v754 = vpack.c.b16 %v692, %v691
      %v755 = vpack.c.b16 %v694, %v693
      %v756 = vpack.c.b16 %v696, %v695
      %v757 = vpack.c.b16 %v698, %v697
      %v758 = vpack.c.b16 %v700, %v699
      %v759 = vpack.c.b16 %v702, %v701
      %v760 = vpack.c.b16 %v704, %v703
      %v761 = vpack.c.b16 %v706, %v705
      %v762 = vpack.c.b16 %v708, %v707
      %v763 = vpack.c.b16 %v710, %v709
      %v764 = vpack.c.b16 %v712, %v711
      %v765 = vpack.c.b16 %v714, %v713
      %v766 = vpack.c.b16 %v716, %v715
      %v767 = vpack.c.b16 %v718, %v717
      %v768 = vpack.c.b16 %v720, %v719
      %v769 = vpack.c.b16 %v722, %v721
      %v770 = vpack.c.b16 %v724, %v723
      %v771 = vpack.c.b16 %v726, %v725
      %v772 = vpack.c.b16 %v728, %v727
      %v773 = vpack.c.b16 %v730, %v729
      %v774 = vpack.c.b16 %v732, %v731
      %v775 = vpack.c.b16 %v734, %v733
      %v776 = vpack.c.b16 %v736, %v735
      %v777 = vpack.c.b16 %v738, %v737
      %v778 = vpack.c.b16 %v740, %v739
      %v779 = vpack.c.b16 %v742, %v741
      %v780 = vpack.c.b16 %v744, %v743
      %v781 = vpack.c.b16 %v746, %v745
      %v782 = vpack.c.b16 %v748, %v747
      %v783 = vpack.c.b16 %v750, %v749
      %v784 = vpack.c.b16 %v752, %v751
      %817 = vmatprep.subr.bf16.mxu0 0
      %818 = vmatpush1.bf16.msra.mxu0 %v760
      %819 = vmatprep.subr.bf16.mxu0 0
      %820 = vmatpush1.bf16.msra.mxu0 %v759
      %821 = vmatprep.subr.bf16.mxu0 0
      %822 = vmatpush1.bf16.msra.mxu0 %v758
      %823 = vmatprep.subr.bf16.mxu0 0
      %824 = vmatpush1.bf16.msra.mxu0 %v757
      %825 = vmatprep.subr.bf16.mxu0 0
      %826 = vmatpush1.bf16.msra.mxu0 %v756
      %827 = vmatprep.subr.bf16.mxu0 0
      %828 = vmatpush1.bf16.msra.mxu0 %v755
      %829 = vmatprep.subr.bf16.mxu0 0
      %830 = vmatpush1.bf16.msra.mxu0 %v754
      %831 = vmatprep.subr.bf16.mxu0 0
      %832 = vmatpush1.bf16.msra.mxu0 %v753
      %833 = vmatprep.subr.bf16.mxu0 0
      %834 = vmatpush2.bf16.msra.mxu0 %v768
      %835 = vmatprep.subr.bf16.mxu0 0
      %836 = vmatpush2.bf16.msra.mxu0 %v767
      %837 = vmatprep.subr.bf16.mxu0 0
      %838 = vmatpush2.bf16.msra.mxu0 %v766
      %839 = vmatprep.subr.bf16.mxu0 0
      %840 = vmatpush2.bf16.msra.mxu0 %v765
      %841 = vmatprep.subr.bf16.mxu0 0
      %842 = vmatpush2.bf16.msra.mxu0 %v764
      %843 = vmatprep.subr.bf16.mxu0 0
      %844 = vmatpush2.bf16.msra.mxu0 %v763
      %845 = vmatprep.subr.bf16.mxu0 0
      %846 = vmatpush2.bf16.msra.mxu0 %v762
      %847 = vmatprep.subr.bf16.mxu0 0
      %848 = vmatpush2.bf16.msra.mxu0 %v761
      %849 = vmatprep.mubr.bf16.mxu0 %v618
      %850 = vmatmul.mubr.bf16.gmra.mxu0 %v617
      %v851 = vpop.f32.mrf.mxu0
      %v852 = vadd.f32 0.0, %v851
      %v853 = vpop.f32.mrf.mxu0
      %v854 = vpop.f32.mrf.mxu0
      %v855 = vadd.f32 0.0, %v854
      %v856 = vpop.f32.mrf.mxu0
      %857 = vdwg.mxu0
      %858 = vmatprep.subr.bf16.mxu0 0
      %859 = vmatpush1.bf16.msra.mxu0 %v776
      %860 = vmatprep.subr.bf16.mxu0 0
      %861 = vmatpush1.bf16.msra.mxu0 %v775
      %862 = vmatprep.subr.bf16.mxu0 0
      %863 = vmatpush1.bf16.msra.mxu0 %v774
      %864 = vmatprep.subr.bf16.mxu0 0
      %865 = vmatpush1.bf16.msra.mxu0 %v773
      %866 = vmatprep.subr.bf16.mxu0 0
      %867 = vmatpush1.bf16.msra.mxu0 %v772
      %868 = vmatprep.subr.bf16.mxu0 0
      %869 = vmatpush1.bf16.msra.mxu0 %v771
      %870 = vmatprep.subr.bf16.mxu0 0
      %871 = vmatpush1.bf16.msra.mxu0 %v770
      %872 = vmatprep.subr.bf16.mxu0 0
      %873 = vmatpush1.bf16.msra.mxu0 %v769
      %874 = vmatprep.subr.bf16.mxu0 0
      %875 = vmatpush2.bf16.msra.mxu0 %v784
      %876 = vmatprep.subr.bf16.mxu0 0
      %877 = vmatpush2.bf16.msra.mxu0 %v783
      %878 = vmatprep.subr.bf16.mxu0 0
      %879 = vmatpush2.bf16.msra.mxu0 %v782
      %880 = vmatprep.subr.bf16.mxu0 0
      %881 = vmatpush2.bf16.msra.mxu0 %v781
      %882 = vmatprep.subr.bf16.mxu0 0
      %883 = vmatpush2.bf16.msra.mxu0 %v780
      %884 = vmatprep.subr.bf16.mxu0 0
      %885 = vmatpush2.bf16.msra.mxu0 %v779
      %886 = vmatprep.subr.bf16.mxu0 0
      %887 = vmatpush2.bf16.msra.mxu0 %v778
      %888 = vmatprep.subr.bf16.mxu0 0
      %889 = vmatpush2.bf16.msra.mxu0 %v777
      %890 = vmatprep.mubr.bf16.mxu0 %v620
      %891 = vmatmul.mubr.bf16.gmra.mxu0 %v619
      %v892 = vpop.f32.mrf.mxu0
      %v893 = vadd.f32 %v852, %v892
      %v894 = vpop.f32.mrf.mxu0
      %v895 = vpop.f32.mrf.mxu0
      %v896 = vadd.f32 %v855, %v895
      %v897 = vpop.f32.mrf.mxu0
      %898 = vdwg.mxu0
      %v899 = vld [vmem:[%s2] sm:$0x1]
      %v901 = vlaneseq
      %v902 = vshrl.u32 %v901, 7
      %v903 = vsub.s32 0, %v902
      %v904 = vrot.slane %v899, %v903
      %v906 = vadd.f32 %v893, %v904
      %v907 = vadd.f32 %v896, %v904
      %v908 = vpack.c.bf16 %v907, %v906
      %v910 = vunpack.c.l.b16 %v908
      %v911 = vunpack.c.h.b16 %v908
      %v912 = vpack.c.b16 %v910, %v910
      %v913 = vpack.c.b16 %v911, %v911
      %vm916 = vcmask 519168
      %917 = vst.msk [vmem:[%s231] sm:$0xf] %vm916, %v912
      %918 = vst.msk [vmem:[%s231 + $0x4] sm:$0xf] %vm916, %v913
      %v919 = vunpack.c.l.bf16 %v908
      %v920 = vunpack.c.h.bf16 %v908
      %vm921 = vcmask 523264
      %v922 = vsel %vm921, %v919, 0.0
      %v923 = vsel %vm921, %v920, 0.0
      %v924 = vadd.f32 %v922, %v923
      %v925 = vrot.slane %v924, 4
      %v926 = vadd.f32 %v924, %v925
      %v927 = vrot.slane %v926, 2
      %v928 = vadd.f32 %v926, %v927
      %v929 = vrot.slane %v928, 1
      %v930 = vadd.f32 %v928, %v929
      %v931 = vmul.f32 %v919, %v919
      %v932 = vmul.f32 %v920, %v920
      %v933 = vsel %vm921, %v931, 0.0
      %v934 = vsel %vm921, %v932, 0.0
      %v935 = vadd.f32 %v933, %v934
      %v936 = vrot.slane %v935, 4
      %v937 = vadd.f32 %v935, %v936
      %v938 = vrot.slane %v937, 2
      %v939 = vadd.f32 %v937, %v938
      %v940 = vrot.slane %v939, 1
      %v941 = vadd.f32 %v939, %v940
      %vm942 = vcmask 1040384
      %v943 = vsel %vm942, %v930, %v941
      %vm944 = vcmask 517120
      %945 = vst.msk [vmem:[%s239] sm:$0x3] %vm944, %v943
      %s946 = smul.u32 2, %s21
      %p947 = scmp.lt.s32.totalorder %s20, 1
      %s948 = scalar_select %p947, %s20, 1
      %p949 = scmp.lt.s32.totalorder %s946, 1
      %s950 = scalar_select %p949, %s946, 1
      %s951 = smul.addr %s948, 2
      %s952 = sadd.s32 %s950, %s951
      %s953 = smul.addr %s952, 4
      %s954 = scalar_lea.vmem %s3, %s953
      %p955 = scmp.lt.s32.totalorder %s20, 1
      %s956 = scalar_select %p955, %s20, 1
      %p957 = scmp.lt.s32.totalorder %s21, 0
      %s958 = scalar_select %p957, %s21, 0
      %s959 = sadd.s32 %s958, %s956
      %s960 = smul.addr %s959, 2
      %s961 = scalar_lea.vmem %s4, %s960
      // Predicated region
      $region33: #{discriminator_forward.6} parent=31 // pred_check
        %p962 = pneg %p116
      $region34: #{discriminator_forward.6} parent=31 // pred_check_branch
        %964 = sbr.rel (%p962) target = $region36
      $region35: #{discriminator_forward.6} parent=31 // pred_region
        %s965 = smul.u32 2, %s21
      $region36: #{discriminator_forward.6} parent=31 // pred_fallthru
        _
      // Predicated region
      $region37: #{discriminator_forward.6} parent=31 // pred_check
        %p966 = pneg %p144
      $region38: #{discriminator_forward.6} parent=31 // pred_check_branch
        %968 = sbr.rel (%p966) target = $region40
      $region39: #{discriminator_forward.6} parent=31 // pred_region
        _
      $region40: #{discriminator_forward.6} parent=31 // pred_fallthru
        _
    $region32: #{discriminator_forward.6} parent=5 // pred_fallthru
      _
    %p969 = scmp.le.s32.totalorder 2, %s11
    // Predicated region
    $region41: #{discriminator_forward.6} parent=5 // pred_check
      %p970 = pneg %p969
    $region42: #{discriminator_forward.6} parent=5 // pred_check_branch
      %972 = sbr.rel (%p970) target = $region44
    $region43: #{discriminator_forward.6} parent=5 // pred_region
      %s973 = ssub.s32 %s11, 2
      // Predicated region
      $region45: #{discriminator_forward.6} parent=43 // pred_check
        %p974 = pneg %p122
      $region46: #{discriminator_forward.6} parent=43 // pred_check_branch
        %976 = sbr.rel (%p974) target = $region48
      $region47: #{discriminator_forward.6} parent=43 // pred_region
        %s977 = smul.u32 2, %s23
        %p978 = scmp.lt.s32.totalorder %s22, 1
        %s979 = scalar_select %p978, %s22, 1
        %p980 = scmp.lt.s32.totalorder %s977, 1
        %s981 = scalar_select %p980, %s977, 1
        %s982 = smul.addr %s979, 2
        %s983 = sadd.s32 %s981, %s982
        %s984 = smul.addr %s983, 4
        %s985 = scalar_lea.vmem %s3, %s984
      $region48: #{discriminator_forward.6} parent=43 // pred_fallthru
        _
      // Predicated region
      $region49: #{discriminator_forward.6} parent=43 // pred_check
        %p986 = pneg %p150
      $region50: #{discriminator_forward.6} parent=43 // pred_check_branch
        %988 = sbr.rel (%p986) target = $region52
      $region51: #{discriminator_forward.6} parent=43 // pred_region
        %p989 = scmp.lt.s32.totalorder %s22, 1
        %s990 = scalar_select %p989, %s22, 1
        %p991 = scmp.lt.s32.totalorder %s23, 0
        %s992 = scalar_select %p991, %s23, 0
        %s993 = sadd.s32 %s992, %s990
        %s994 = smul.addr %s993, 2
        %s995 = scalar_lea.vmem %s4, %s994
      $region52: #{discriminator_forward.6} parent=43 // pred_fallthru
        _
    $region44: #{discriminator_forward.6} parent=5 // pred_fallthru
      _
  $region6: #{discriminator_forward.6} parent=0 // loop_footer
    %s15 = sadd.s32 1, %s11
  $region7: #{discriminator_forward.6} parent=0 // loop_footer_branch
    %10 = sbr.rel target = $region3
  $region8: #{discriminator_forward.6} parent=0 // loop_exit
    _

</llo_original>
